<compile_context>
chip_gen: v7x
topology: tpu7x:2x2x1
jax: 0.10.0
libtpu: 0.0.40
codegen_flags: <defaults>
</compile_context>

<pallas_src>
import math

import jax
import jax.numpy as jnp
from jax.experimental import pallas as pl
from jax.experimental.pallas import tpu as pltpu


_HAS_BUFFERED = hasattr(pl, "Buffered")


# ---------------------------------------------------------------------------
# Kernel
# ---------------------------------------------------------------------------
def discriminator_kernel(x_ref, w1_ref, b1_ref, w2_ref, b2_ref, w3_ref, b3_ref,
                         o_ref, acc_ref):
    """One (batch-tile, K-tile) step of the fused 3-layer MLP head."""
    k = pl.program_id(1)

    @pl.when(k == 0)
    def _():
        acc_ref[...] = jnp.zeros_like(acc_ref)

    # Layer 1 partial product: cast x to bf16 in-register, MXU matmul, f32 acc.
    x = x_ref[...].astype(jnp.bfloat16)                          # (TILE_M, TILE_K)
    acc_ref[...] += jnp.dot(x, w1_ref[...],
                            preferred_element_type=jnp.float32)  # (TILE_M, 512)

    @pl.when(k == pl.num_programs(1) - 1)
    def _():
        # Layer 1 epilogue: bias + LeakyReLU(0.2) in f32.
        h1 = acc_ref[...] + b1_ref[...]                          # (1, 512) bcast
        h1 = jnp.where(h1 > 0, h1, 0.2 * h1)

        # Layer 2: bf16 MXU matmul, f32 accumulate; bias + LeakyReLU(0.2).
        h2 = jnp.dot(h1.astype(jnp.bfloat16), w2_ref[...],
                     preferred_element_type=jnp.float32)         # (TILE_M, 256)
        h2 = h2 + b2_ref[...]
        h2 = jnp.where(h2 > 0, h2, 0.2 * h2)

        # Layer 3 (256 -> 1): VPU multiply + XLU lane reduction (no degenerate
        # 1-column MXU matmul); bias comes from an SMEM scalar.
        logits = jnp.sum(h2 * w3_ref[...], axis=-1, keepdims=True) + b3_ref[0, 0]
        o_ref[...] = jax.nn.sigmoid(logits).astype(o_ref.dtype)  # (TILE_M, 1)


# ---------------------------------------------------------------------------
# Sizing helpers (generation-aware)
# ---------------------------------------------------------------------------
def _round_up(x, m):
    return ((x + m - 1) // m) * m


def _vmem_capacity_bytes():
    try:
        cap = int(pltpu.get_tpu_info().vmem_capacity_bytes)
        if cap > 0:
            return cap
    except Exception:
        pass
    return 64 * 1024 * 1024   # conservative default (v7x per-TC VMEM)


def _pick_tile_k(d, vmem_cap):
    """Feature (K) tile for layer 1. Keep w1 fully resident unless it would eat
    more than ~1/6 of VMEM (only relevant for very large flattened images on
    v7x's 64 MiB); otherwise split K and accumulate in scratch."""
    w1_bytes = d * 512 * 2                      # bf16
    if d % 128 != 0 or w1_bytes <= vmem_cap // 6:
        return d
    rows = max(128, ((vmem_cap // 8) // (2 * 512 * 2)) // 128 * 128)
    rows = min(rows, d)
    while d % rows != 0:                        # d % 128 == 0 -> terminates at 128
        rows -= 128
    return rows


def _pick_tile_m(b_pad, tile_k, vmem_cap):
    """MXU-aligned batch tile: a multiple of 128 that divides b_pad, sized so
    batch-dependent VMEM (double-buffered f32 x tile + f32 acc/h1/h2 + out
    tiles) stays within ~40% of VMEM; prefer >=2 grid steps so both v7x
    TensorCores get work."""
    per_row = 2 * tile_k * 4 + (512 + 512 + 256 + 2 * 128) * 4
    cap_rows = max(128, (int(0.4 * vmem_cap) // per_row) // 128 * 128)
    candidates = [r for r in range(128, b_pad + 1, 128)
                  if b_pad % r == 0 and r <= cap_rows] or [128]
    multi = [r for r in candidates if b_pad // r >= 2]
    return (multi or candidates)[-1]


def _vmem_limit_bytes(tile_m, tile_k, vmem_cap):
    """Conservative actual-need estimate (assumes double-buffered weights in
    case Buffered(1) is unsupported) with 2x headroom, clamped to ~3/4 of the
    generation's physical VMEM."""
    f32, bf16 = 4, 2
    need = (
        2 * tile_m * tile_k * f32           # double-buffered f32 x tiles
        + 2 * tile_k * 512 * bf16           # w1 slab(s)
        + 2 * 512 * 256 * bf16              # w2
        + 2 * 8 * (512 + 256 + 256) * f32   # b1, b2, w3 (sublane-padded)
        + 2 * tile_m * 128 * f32            # out tiles (lane-padded)
        + tile_m * 512 * f32                # layer-1 f32 accumulator scratch
        + tile_m * (512 + 256) * f32        # live h1 / h2 intermediates
    )
    return int(min(3 * vmem_cap // 4, max(2 * need, 32 * 1024 * 1024)))


# ---------------------------------------------------------------------------
# pallas_call builder + wrapper
# ---------------------------------------------------------------------------
def _build_call(B_pad, tile_m, tile_k, num_m, num_k, vmem_limit, single_buffer):
    def resident_spec(shape):
        # Constant index across the grid: single-buffer when supported.
        if single_buffer:
            return pl.BlockSpec(shape, lambda i, k: (0, 0),
                                pipeline_mode=pl.Buffered(1))
        return pl.BlockSpec(shape, lambda i, k: (0, 0))

    w1_spec = (resident_spec((tile_k, 512)) if num_k == 1 else
               pl.BlockSpec((tile_k, 512), lambda i, k: (k, 0)))

    return pl.pallas_call(
        discriminator_kernel,
        out_shape=jax.ShapeDtypeStruct((B_pad, 1), jnp.float32),
        grid=(num_m, num_k),
        in_specs=[
            pl.BlockSpec((tile_m, tile_k), lambda i, k: (i, k)),   # x (f32)
            w1_spec,                                               # w1 (bf16)
            resident_spec((1, 512)),                               # b1
            resident_spec((512, 256)),                             # w2 (bf16)
            resident_spec((1, 256)),                               # b2
            resident_spec((1, 256)),                               # w3 row
            pl.BlockSpec(memory_space=pltpu.MemorySpace.SMEM),     # b3 scalar
        ],
        out_specs=pl.BlockSpec((tile_m, 1), lambda i, k: (i, 0)),
        scratch_shapes=[pltpu.VMEM((tile_m, 512), jnp.float32)],
        compiler_params=pltpu.CompilerParams(
            dimension_semantics=("parallel", "arbitrary"),  # batch parallel (megacore)
            vmem_limit_bytes=vmem_limit,
        ),
    )


def prepare_params(params):
    """One-time conversion to kernel-ready dtypes/layouts. Cache the result and
    reuse it across forward calls to avoid a per-call HBM convert pass over w1."""
    if isinstance(params, dict) and params.get("_prepared", False):
        return params
    return {
        "_prepared": True,
        "w1": jnp.asarray(params["w1"], jnp.bfloat16),                 # (D, 512)
        "b1": jnp.asarray(params["b1"], jnp.float32).reshape(1, 512),
        "w2": jnp.asarray(params["w2"], jnp.bfloat16),                 # (512, 256)
        "b2": jnp.asarray(params["b2"], jnp.float32).reshape(1, 256),
        "w3_row": jnp.asarray(params["w3"], jnp.float32).reshape(1, 256),
        "b3": jnp.asarray(params["b3"], jnp.float32).reshape(1, 1),    # SMEM scalar
    }


def discriminator_forward(img, params, *, tile_m=None, tile_k=None):
    """img: (B, C, H, W) float32. Returns (B, 1) float32 sigmoid probabilities."""
    kp = prepare_params(params)

    B = img.shape[0]
    D = int(math.prod(img.shape[1:]))
    x = img.reshape(B, D).astype(jnp.float32)   # stays f32; kernel casts to bf16

    # Pad batch only to the next multiple of 128; waste bounded by < 128 rows.
    B_pad = _round_up(B, 128)
    if B_pad != B:
        x = jnp.pad(x, ((0, B_pad - B), (0, 0)))

    vmem_cap = _vmem_capacity_bytes()
    if tile_k is None:
        tile_k = _pick_tile_k(D, vmem_cap)
    num_k = D // tile_k
    if tile_m is None:
        tile_m = _pick_tile_m(B_pad, tile_k, vmem_cap)
    num_m = B_pad // tile_m

    vmem_limit = _vmem_limit_bytes(tile_m, tile_k, vmem_cap)
    args = (x, kp["w1"], kp["b1"], kp["w2"], kp["b2"], kp["w3_row"], kp["b3"])

    if _HAS_BUFFERED:
        try:
            out = _build_call(B_pad, tile_m, tile_k, num_m, num_k, vmem_limit,
                              single_buffer=True)(*args)
        except Exception:
            # pipeline_mode=pl.Buffered(1) unsupported here -> default buffering.
            out = _build_call(B_pad, tile_m, tile_k, num_m, num_k, vmem_limit,
                              single_buffer=False)(*args)
    else:
        out = _build_call(B_pad, tile_m, tile_k, num_m, num_k, vmem_limit,
                          single_buffer=False)(*args)

    return out[:B]      # drop batch padding; shape (B, 1)


# ---------------------------------------------------------------------------
# Reference + init
# ---------------------------------------------------------------------------
def discriminator_reference(img, params):
    """Pure-JAX f32 reference (matches the PyTorch module)."""
    B = img.shape[0]
    x = img.reshape(B, -1).astype(jnp.float32)

    def leaky(v):
        return jnp.where(v > 0, v, 0.2 * v)

    h1 = leaky(x @ params["w1"] + params["b1"])
    h2 = leaky(h1 @ params["w2"] + params["b2"])
    logits = h2 @ params["w3"] + params["b3"]
    return jax.nn.sigmoid(logits)


def init_params(key, in_features):
    """PyTorch-Linear-style init U(-1/sqrt(fan_in), 1/sqrt(fan_in)).
    Weights stored as (in_features, out_features) so y = x @ W + b."""
    dims = [(in_features, 512), (512, 256), (256, 1)]
    params = {}
    keys = jax.random.split(key, 2 * len(dims))
    for i, (fan_in, fan_out) in enumerate(dims):
        bound = 1.0 / math.sqrt(fan_in)
        params[f"w{i+1}"] = jax.random.uniform(
            keys[2 * i], (fan_in, fan_out),
            minval=-bound, maxval=bound, dtype=jnp.float32)
        params[f"b{i+1}"] = jax.random.uniform(
            keys[2 * i + 1], (1, fan_out),
            minval=-bound, maxval=bound, dtype=jnp.float32)
    return params


if __name__ == "__main__":
    key = jax.random.PRNGKey(0)
    k_img, k_par = jax.random.split(key)

    # Small image shape consistent with the module: (C, H, W) = (1, 16, 16)
    B, C, H, W = 4, 1, 16, 16
    in_features = C * H * W

    img = jax.random.normal(k_img, (B, C, H, W), dtype=jnp.float32)
    params = init_params(k_par, in_features)
    kernel_params = prepare_params(params)   # one-time bf16 weight prep

    validity = discriminator_forward(img, kernel_params)
    validity = jax.block_until_ready(validity)

    assert validity.shape == (B, 1)
    assert bool(jnp.all((validity >= 0.0) & (validity <= 1.0)))

    # Numerical check against the f32 reference (bf16 MXU tolerance).
    ref = discriminator_reference(img, params)
    max_err = float(jnp.max(jnp.abs(validity - ref)))
    assert max_err <= 3e-2, f"max abs error {max_err} too large"

    print("KERNEL_OK")
</pallas_src>

<mosaic_0001>
module attributes {stable_mosaic.version = 11 : i64} {
  func.func @discriminator_kernel(%arg0: i32, %arg1: i32, %arg2: memref<128x256xf32, #tpu.memory_space<vmem>>, %arg3: memref<256x512xbf16, #tpu.memory_space<vmem>>, %arg4: memref<1x512xf32, #tpu.memory_space<vmem>>, %arg5: memref<512x256xbf16, #tpu.memory_space<vmem>>, %arg6: memref<1x256xf32, #tpu.memory_space<vmem>>, %arg7: memref<1x256xf32, #tpu.memory_space<vmem>>, %arg8: memref<1x1xf32, #tpu.memory_space<smem>>, %arg9: memref<128x1xf32, #tpu.memory_space<vmem>>, %arg10: memref<128x512xf32, #tpu.memory_space<vmem>>) attributes {dimension_semantics = [#tpu.dimension_semantics<parallel>, #tpu.dimension_semantics<arbitrary>], iteration_bounds = array<i64: 1, 1>, scalar_prefetch = 0 : i64, scratch_operands = 1 : i64, tpu.core_type = #tpu.core_type<tc>, window_params = [{transform_indices = @transform_0, window_bounds = array<i64: 128, 256>}, {pipeline_mode = #tpu.pipeline_mode<synchronous>, transform_indices = @transform_1, window_bounds = array<i64: 256, 512>}, {pipeline_mode = #tpu.pipeline_mode<synchronous>, transform_indices = @transform_2, window_bounds = array<i64: 1, 512>}, {pipeline_mode = #tpu.pipeline_mode<synchronous>, transform_indices = @transform_3, window_bounds = array<i64: 512, 256>}, {pipeline_mode = #tpu.pipeline_mode<synchronous>, transform_indices = @transform_4, window_bounds = array<i64: 1, 256>}, {pipeline_mode = #tpu.pipeline_mode<synchronous>, transform_indices = @transform_5, window_bounds = array<i64: 1, 256>}, {transform_indices = @transform_6, window_bounds = array<i64: 1, 1>}, {transform_indices = @transform_7, window_bounds = array<i64: 128, 1>}]} {
    %c0_i32 = arith.constant 0 : i32
    %0 = arith.cmpi eq, %arg1, %c0_i32 : i32
    %1 = arith.extui %0 : i1 to i32
    %c0_i32_0 = arith.constant 0 : i32
    %2 = arith.cmpi ne, %1, %c0_i32_0 : i32
    scf.if %2 {
      %cst_10 = arith.constant 0.000000e+00 : f32
      %13 = vector.broadcast %cst_10 : f32 to vector<128x512xf32>
      %c0_11 = arith.constant 0 : index
      %c0_12 = arith.constant 0 : index
      %14 = vector.load %arg10[%c0_11, %c0_12] : memref<128x512xf32, #tpu.memory_space<vmem>>, vector<128x512xf32>
      tpu.vector_store %arg10[%c0_11, %c0_12], %13 {strides = array<i32>} : memref<128x512xf32, #tpu.memory_space<vmem>>, vector<128x512xf32>,
    } else {
    }
    %c0 = arith.constant 0 : index
    %c0_1 = arith.constant 0 : index
    %3 = vector.load %arg2[%c0, %c0_1] : memref<128x256xf32, #tpu.memory_space<vmem>>, vector<128x256xf32>
    %4 = arith.truncf %3 : vector<128x256xf32> to vector<128x256xbf16>
    %c0_2 = arith.constant 0 : index
    %c0_3 = arith.constant 0 : index
    %5 = vector.load %arg10[%c0_2, %c0_3] : memref<128x512xf32, #tpu.memory_space<vmem>>, vector<128x512xf32>
    %c0_4 = arith.constant 0 : index
    %c0_5 = arith.constant 0 : index
    %6 = vector.load %arg3[%c0_4, %c0_5] : memref<256x512xbf16, #tpu.memory_space<vmem>>, vector<256x512xbf16>
    %cst = arith.constant dense<0.000000e+00> : vector<128x512xf32>
    %7 = tpu.matmul %4, %6, %cst {dimension_numbers = #tpu.dot_dimension_numbers<[1], [0], [0], [1], [0, 0, 1, 1], [], []>} : vector<128x256xbf16>, vector<256x512xbf16>, vector<128x512xf32> -> vector<128x512xf32>
    %8 = arith.addf %5, %7 : vector<128x512xf32>
    %c0_6 = arith.constant 0 : index
    %c0_7 = arith.constant 0 : index
    %9 = vector.load %arg10[%c0_6, %c0_7] : memref<128x512xf32, #tpu.memory_space<vmem>>, vector<128x512xf32>
    tpu.vector_store %arg10[%c0_6, %c0_7], %8 {strides = array<i32>} : memref<128x512xf32, #tpu.memory_space<vmem>>, vector<128x512xf32>,
    %c0_i32_8 = arith.constant 0 : i32
    %10 = arith.cmpi eq, %arg1, %c0_i32_8 : i32
    %11 = arith.extui %10 : i1 to i32
    %c0_i32_9 = arith.constant 0 : i32
    %12 = arith.cmpi ne, %11, %c0_i32_9 : i32
    scf.if %12 {
      %c0_10 = arith.constant 0 : index
      %c0_11 = arith.constant 0 : index
      %13 = vector.load %arg10[%c0_10, %c0_11] : memref<128x512xf32, #tpu.memory_space<vmem>>, vector<128x512xf32>
      %c0_12 = arith.constant 0 : index
      %c0_13 = arith.constant 0 : index
      %14 = vector.load %arg4[%c0_12, %c0_13] : memref<1x512xf32, #tpu.memory_space<vmem>>, vector<1x512xf32>
      %15 = vector.broadcast %14 : vector<1x512xf32> to vector<128x512xf32>
      %16 = arith.addf %13, %15 : vector<128x512xf32>
      %cst_14 = arith.constant 0.000000e+00 : f32
      %17 = vector.broadcast %cst_14 : f32 to vector<128x512xf32>
      %18 = arith.cmpf ogt, %16, %17 : vector<128x512xf32>
      %cst_15 = arith.constant 2.000000e-01 : f32
      %19 = vector.broadcast %cst_15 : f32 to vector<128x512xf32>
      %20 = arith.mulf %19, %16 : vector<128x512xf32>
      %21 = arith.select %18, %16, %20 : vector<128x512xi1>, vector<128x512xf32>
      %22 = arith.truncf %21 : vector<128x512xf32> to vector<128x512xbf16>
      %c0_16 = arith.constant 0 : index
      %c0_17 = arith.constant 0 : index
      %23 = vector.load %arg5[%c0_16, %c0_17] : memref<512x256xbf16, #tpu.memory_space<vmem>>, vector<512x256xbf16>
      %cst_18 = arith.constant dense<0.000000e+00> : vector<128x256xf32>
      %24 = tpu.matmul %22, %23, %cst_18 {dimension_numbers = #tpu.dot_dimension_numbers<[1], [0], [0], [1], [0, 0, 1, 1], [], []>} : vector<128x512xbf16>, vector<512x256xbf16>, vector<128x256xf32> -> vector<128x256xf32>
      %c0_19 = arith.constant 0 : index
      %c0_20 = arith.constant 0 : index
      %25 = vector.load %arg6[%c0_19, %c0_20] : memref<1x256xf32, #tpu.memory_space<vmem>>, vector<1x256xf32>
      %26 = vector.broadcast %25 : vector<1x256xf32> to vector<128x256xf32>
      %27 = arith.addf %24, %26 : vector<128x256xf32>
      %cst_21 = arith.constant 0.000000e+00 : f32
      %28 = vector.broadcast %cst_21 : f32 to vector<128x256xf32>
      %29 = arith.cmpf ogt, %27, %28 : vector<128x256xf32>
      %cst_22 = arith.constant 2.000000e-01 : f32
      %30 = vector.broadcast %cst_22 : f32 to vector<128x256xf32>
      %31 = arith.mulf %30, %27 : vector<128x256xf32>
      %32 = arith.select %29, %27, %31 : vector<128x256xi1>, vector<128x256xf32>
      %c0_23 = arith.constant 0 : index
      %c0_24 = arith.constant 0 : index
      %33 = vector.load %arg7[%c0_23, %c0_24] : memref<1x256xf32, #tpu.memory_space<vmem>>, vector<1x256xf32>
      %34 = vector.broadcast %33 : vector<1x256xf32> to vector<128x256xf32>
      %35 = arith.mulf %32, %34 : vector<128x256xf32>
      %cst_25 = arith.constant dense<0.000000e+00> : vector<128xf32>
      %36 = vector.multi_reduction <add>, %35, %cst_25 [1] : vector<128x256xf32> to vector<128xf32>
      %37 = vector.shape_cast %36 : vector<128xf32> to vector<128x1xf32>
      %c0_26 = arith.constant 0 : index
      %c0_27 = arith.constant 0 : index
      %38 = memref.load %arg8[%c0_26, %c0_27] : memref<1x1xf32, #tpu.memory_space<smem>>
      %39 = vector.broadcast %38 : f32 to vector<128x1xf32>
      %40 = arith.addf %37, %39 : vector<128x1xf32>
      %41 = arith.negf %40 : vector<128x1xf32>
      %42 = math.exp %41 : vector<128x1xf32>
      %cst_28 = arith.constant 1.000000e+00 : f32
      %43 = vector.broadcast %cst_28 : f32 to vector<128x1xf32>
      %44 = arith.addf %43, %42 : vector<128x1xf32>
      %45 = arith.divf %43, %44 : vector<128x1xf32>
      %c0_29 = arith.constant 0 : index
      %c0_30 = arith.constant 0 : index
      %46 = vector.load %arg9[%c0_29, %c0_30] : memref<128x1xf32, #tpu.memory_space<vmem>>, vector<128x1xf32>
      tpu.vector_store %arg9[%c0_29, %c0_30], %45 {strides = array<i32>} : memref<128x1xf32, #tpu.memory_space<vmem>>, vector<128x1xf32>,
    } else {
    }
    return
  }
  func.func @transform_0(%arg0: i32, %arg1: i32) -> (i32, i32) {
    %c0_i32 = arith.constant 0 : i32
    return %arg0, %arg1 : i32, i32
  }
  func.func @transform_1(%arg0: i32, %arg1: i32) -> (i32, i32) {
    %c0_i32 = arith.constant 0 : i32
    %c0_i32_0 = arith.constant 0 : i32
    %c0_i32_1 = arith.constant 0 : i32
    return %c0_i32, %c0_i32_0 : i32, i32
  }
  func.func @transform_2(%arg0: i32, %arg1: i32) -> (i32, i32) {
    %c0_i32 = arith.constant 0 : i32
    %c0_i32_0 = arith.constant 0 : i32
    %c0_i32_1 = arith.constant 0 : i32
    return %c0_i32, %c0_i32_0 : i32, i32
  }
  func.func @transform_3(%arg0: i32, %arg1: i32) -> (i32, i32) {
    %c0_i32 = arith.constant 0 : i32
    %c0_i32_0 = arith.constant 0 : i32
    %c0_i32_1 = arith.constant 0 : i32
    return %c0_i32, %c0_i32_0 : i32, i32
  }
  func.func @transform_4(%arg0: i32, %arg1: i32) -> (i32, i32) {
    %c0_i32 = arith.constant 0 : i32
    %c0_i32_0 = arith.constant 0 : i32
    %c0_i32_1 = arith.constant 0 : i32
    return %c0_i32, %c0_i32_0 : i32, i32
  }
  func.func @transform_5(%arg0: i32, %arg1: i32) -> (i32, i32) {
    %c0_i32 = arith.constant 0 : i32
    %c0_i32_0 = arith.constant 0 : i32
    %c0_i32_1 = arith.constant 0 : i32
    return %c0_i32, %c0_i32_0 : i32, i32
  }
  func.func @transform_6(%arg0: i32, %arg1: i32) -> (i32, i32) {
    %c0_i32 = arith.constant 0 : i32
    %c0_i32_0 = arith.constant 0 : i32
    %c0_i32_1 = arith.constant 0 : i32
    return %c0_i32, %c0_i32_0 : i32, i32
  }
  func.func @transform_7(%arg0: i32, %arg1: i32) -> (i32, i32) {
    %c0_i32 = arith.constant 0 : i32
    %c0_i32_0 = arith.constant 0 : i32
    return %arg0, %c0_i32 : i32, i32
  }
}

module attributes {stable_mosaic.version = 11 : i64} {
  func.func @discriminator_kernel(%arg0: i32, %arg1: i32, %arg2: memref<128x256xf32, #tpu.memory_space<vmem>>, %arg3: memref<256x512xbf16, #tpu.memory_space<vmem>>, %arg4: memref<1x512xf32, #tpu.memory_space<vmem>>, %arg5: memref<512x256xbf16, #tpu.memory_space<vmem>>, %arg6: memref<1x256xf32, #tpu.memory_space<vmem>>, %arg7: memref<1x256xf32, #tpu.memory_space<vmem>>, %arg8: memref<1x1xf32, #tpu.memory_space<smem>>, %arg9: memref<128x1xf32, #tpu.memory_space<vmem>>, %arg10: memref<128x512xf32, #tpu.memory_space<vmem>>) attributes {dimension_semantics = [#tpu.dimension_semantics<parallel>, #tpu.dimension_semantics<arbitrary>], iteration_bounds = array<i64: 1, 1>, scalar_prefetch = 0 : i64, scratch_operands = 1 : i64, tpu.core_type = #tpu.core_type<tc>, window_params = [{transform_indices = @transform_0, window_bounds = array<i64: 128, 256>}, {pipeline_mode = #tpu.pipeline_mode<synchronous>, transform_indices = @transform_1, window_bounds = array<i64: 256, 512>}, {pipeline_mode = #tpu.pipeline_mode<synchronous>, transform_indices = @transform_2, window_bounds = array<i64: 1, 512>}, {pipeline_mode = #tpu.pipeline_mode<synchronous>, transform_indices = @transform_3, window_bounds = array<i64: 512, 256>}, {pipeline_mode = #tpu.pipeline_mode<synchronous>, transform_indices = @transform_4, window_bounds = array<i64: 1, 256>}, {pipeline_mode = #tpu.pipeline_mode<synchronous>, transform_indices = @transform_5, window_bounds = array<i64: 1, 256>}, {transform_indices = @transform_6, window_bounds = array<i64: 1, 1>}, {transform_indices = @transform_7, window_bounds = array<i64: 128, 1>}]} {
    %c0_i32 = arith.constant 0 : i32
    %0 = arith.cmpi eq, %arg1, %c0_i32 : i32
    %1 = arith.extui %0 : i1 to i32
    %c0_i32_0 = arith.constant 0 : i32
    %2 = arith.cmpi ne, %1, %c0_i32_0 : i32
    scf.if %2 {
      %cst_10 = arith.constant 0.000000e+00 : f32
      %13 = vector.broadcast %cst_10 : f32 to vector<128x512xf32>
      %c0_11 = arith.constant 0 : index
      %c0_12 = arith.constant 0 : index
      %14 = vector.load %arg10[%c0_11, %c0_12] : memref<128x512xf32, #tpu.memory_space<vmem>>, vector<128x512xf32>
      tpu.vector_store %arg10[%c0_11, %c0_12], %13 {strides = array<i32>} : memref<128x512xf32, #tpu.memory_space<vmem>>, vector<128x512xf32>,
    } else {
    }
    %c0 = arith.constant 0 : index
    %c0_1 = arith.constant 0 : index
    %3 = vector.load %arg2[%c0, %c0_1] : memref<128x256xf32, #tpu.memory_space<vmem>>, vector<128x256xf32>
    %4 = arith.truncf %3 : vector<128x256xf32> to vector<128x256xbf16>
    %c0_2 = arith.constant 0 : index
    %c0_3 = arith.constant 0 : index
    %5 = vector.load %arg10[%c0_2, %c0_3] : memref<128x512xf32, #tpu.memory_space<vmem>>, vector<128x512xf32>
    %c0_4 = arith.constant 0 : index
    %c0_5 = arith.constant 0 : index
    %6 = vector.load %arg3[%c0_4, %c0_5] : memref<256x512xbf16, #tpu.memory_space<vmem>>, vector<256x512xbf16>
    %cst = arith.constant dense<0.000000e+00> : vector<128x512xf32>
    %7 = tpu.matmul %4, %6, %cst {dimension_numbers = #tpu.dot_dimension_numbers<[1], [0], [0], [1], [0, 0, 1, 1], [], []>} : vector<128x256xbf16>, vector<256x512xbf16>, vector<128x512xf32> -> vector<128x512xf32>
    %8 = arith.addf %5, %7 : vector<128x512xf32>
    %c0_6 = arith.constant 0 : index
    %c0_7 = arith.constant 0 : index
    %9 = vector.load %arg10[%c0_6, %c0_7] : memref<128x512xf32, #tpu.memory_space<vmem>>, vector<128x512xf32>
    tpu.vector_store %arg10[%c0_6, %c0_7], %8 {strides = array<i32>} : memref<128x512xf32, #tpu.memory_space<vmem>>, vector<128x512xf32>,
    %c0_i32_8 = arith.constant 0 : i32
    %10 = arith.cmpi eq, %arg1, %c0_i32_8 : i32
    %11 = arith.extui %10 : i1 to i32
    %c0_i32_9 = arith.constant 0 : i32
    %12 = arith.cmpi ne, %11, %c0_i32_9 : i32
    scf.if %12 {
      %c0_10 = arith.constant 0 : index
      %c0_11 = arith.constant 0 : index
      %13 = vector.load %arg10[%c0_10, %c0_11] : memref<128x512xf32, #tpu.memory_space<vmem>>, vector<128x512xf32>
      %c0_12 = arith.constant 0 : index
      %c0_13 = arith.constant 0 : index
      %14 = vector.load %arg4[%c0_12, %c0_13] : memref<1x512xf32, #tpu.memory_space<vmem>>, vector<1x512xf32>
      %15 = vector.broadcast %14 : vector<1x512xf32> to vector<128x512xf32>
      %16 = arith.addf %13, %15 : vector<128x512xf32>
      %cst_14 = arith.constant 0.000000e+00 : f32
      %17 = vector.broadcast %cst_14 : f32 to vector<128x512xf32>
      %18 = arith.cmpf ogt, %16, %17 : vector<128x512xf32>
      %cst_15 = arith.constant 2.000000e-01 : f32
      %19 = vector.broadcast %cst_15 : f32 to vector<128x512xf32>
      %20 = arith.mulf %19, %16 : vector<128x512xf32>
      %21 = arith.select %18, %16, %20 : vector<128x512xi1>, vector<128x512xf32>
      %22 = arith.truncf %21 : vector<128x512xf32> to vector<128x512xbf16>
      %c0_16 = arith.constant 0 : index
      %c0_17 = arith.constant 0 : index
      %23 = vector.load %arg5[%c0_16, %c0_17] : memref<512x256xbf16, #tpu.memory_space<vmem>>, vector<512x256xbf16>
      %cst_18 = arith.constant dense<0.000000e+00> : vector<128x256xf32>
      %24 = tpu.matmul %22, %23, %cst_18 {dimension_numbers = #tpu.dot_dimension_numbers<[1], [0], [0], [1], [0, 0, 1, 1], [], []>} : vector<128x512xbf16>, vector<512x256xbf16>, vector<128x256xf32> -> vector<128x256xf32>
      %c0_19 = arith.constant 0 : index
      %c0_20 = arith.constant 0 : index
      %25 = vector.load %arg6[%c0_19, %c0_20] : memref<1x256xf32, #tpu.memory_space<vmem>>, vector<1x256xf32>
      %26 = vector.broadcast %25 : vector<1x256xf32> to vector<128x256xf32>
      %27 = arith.addf %24, %26 : vector<128x256xf32>
      %cst_21 = arith.constant 0.000000e+00 : f32
      %28 = vector.broadcast %cst_21 : f32 to vector<128x256xf32>
      %29 = arith.cmpf ogt, %27, %28 : vector<128x256xf32>
      %cst_22 = arith.constant 2.000000e-01 : f32
      %30 = vector.broadcast %cst_22 : f32 to vector<128x256xf32>
      %31 = arith.mulf %30, %27 : vector<128x256xf32>
      %32 = arith.select %29, %27, %31 : vector<128x256xi1>, vector<128x256xf32>
      %c0_23 = arith.constant 0 : index
      %c0_24 = arith.constant 0 : index
      %33 = vector.load %arg7[%c0_23, %c0_24] : memref<1x256xf32, #tpu.memory_space<vmem>>, vector<1x256xf32>
      %34 = vector.broadcast %33 : vector<1x256xf32> to vector<128x256xf32>
      %35 = arith.mulf %32, %34 : vector<128x256xf32>
      %cst_25 = arith.constant dense<0.000000e+00> : vector<128xf32>
      %36 = vector.multi_reduction <add>, %35, %cst_25 [1] : vector<128x256xf32> to vector<128xf32>
      %37 = vector.shape_cast %36 : vector<128xf32> to vector<128x1xf32>
      %c0_26 = arith.constant 0 : index
      %c0_27 = arith.constant 0 : index
      %38 = memref.load %arg8[%c0_26, %c0_27] : memref<1x1xf32, #tpu.memory_space<smem>>
      %39 = vector.broadcast %38 : f32 to vector<128x1xf32>
      %40 = arith.addf %37, %39 : vector<128x1xf32>
      %41 = arith.negf %40 : vector<128x1xf32>
      %42 = math.exp %41 : vector<128x1xf32>
      %cst_28 = arith.constant 1.000000e+00 : f32
      %43 = vector.broadcast %cst_28 : f32 to vector<128x1xf32>
      %44 = arith.addf %43, %42 : vector<128x1xf32>
      %45 = arith.divf %43, %44 : vector<128x1xf32>
      %c0_29 = arith.constant 0 : index
      %c0_30 = arith.constant 0 : index
      %46 = vector.load %arg9[%c0_29, %c0_30] : memref<128x1xf32, #tpu.memory_space<vmem>>, vector<128x1xf32>
      tpu.vector_store %arg9[%c0_29, %c0_30], %45 {strides = array<i32>} : memref<128x1xf32, #tpu.memory_space<vmem>>, vector<128x1xf32>,
    } else {
    }
    return
  }
  func.func @transform_0(%arg0: i32, %arg1: i32) -> (i32, i32) {
    %c0_i32 = arith.constant 0 : i32
    return %arg0, %arg1 : i32, i32
  }
  func.func @transform_1(%arg0: i32, %arg1: i32) -> (i32, i32) {
    %c0_i32 = arith.constant 0 : i32
    %c0_i32_0 = arith.constant 0 : i32
    %c0_i32_1 = arith.constant 0 : i32
    return %c0_i32, %c0_i32_0 : i32, i32
  }
  func.func @transform_2(%arg0: i32, %arg1: i32) -> (i32, i32) {
    %c0_i32 = arith.constant 0 : i32
    %c0_i32_0 = arith.constant 0 : i32
    %c0_i32_1 = arith.constant 0 : i32
    return %c0_i32, %c0_i32_0 : i32, i32
  }
  func.func @transform_3(%arg0: i32, %arg1: i32) -> (i32, i32) {
    %c0_i32 = arith.constant 0 : i32
    %c0_i32_0 = arith.constant 0 : i32
    %c0_i32_1 = arith.constant 0 : i32
    return %c0_i32, %c0_i32_0 : i32, i32
  }
  func.func @transform_4(%arg0: i32, %arg1: i32) -> (i32, i32) {
    %c0_i32 = arith.constant 0 : i32
    %c0_i32_0 = arith.constant 0 : i32
    %c0_i32_1 = arith.constant 0 : i32
    return %c0_i32, %c0_i32_0 : i32, i32
  }
  func.func @transform_5(%arg0: i32, %arg1: i32) -> (i32, i32) {
    %c0_i32 = arith.constant 0 : i32
    %c0_i32_0 = arith.constant 0 : i32
    %c0_i32_1 = arith.constant 0 : i32
    return %c0_i32, %c0_i32_0 : i32, i32
  }
  func.func @transform_6(%arg0: i32, %arg1: i32) -> (i32, i32) {
    %c0_i32 = arith.constant 0 : i32
    %c0_i32_0 = arith.constant 0 : i32
    %c0_i32_1 = arith.constant 0 : i32
    return %c0_i32, %c0_i32_0 : i32, i32
  }
  func.func @transform_7(%arg0: i32, %arg1: i32) -> (i32, i32) {
    %c0_i32 = arith.constant 0 : i32
    %c0_i32_0 = arith.constant 0 : i32
    return %arg0, %c0_i32 : i32, i32
  }
}

</mosaic_0001>

<llo_original>
// kernel: tpu_custom_call.1
$region0: #{tpu_custom_call.1}
  #allocation0 [shape = 'u32[]', space=smem, size = 0x4, offset = 0x4, fixed_abs, tag = 'smem constant byte address 0x4 - core index']
  #allocation1 [shape = 'u32[144,128]{1,0:T(1,128)}', space=vmem, size = 0x12000, scoped, tag = 'internal scratch']
  #allocation2 [shape = 'f32[128,512]{1,0:T(8,128)}', space=vmem, size = 0x40000, scoped, tag = 'scratch operand']
  #allocation3 [shape = 'f32[1,1]{1,0:T(1,128)S(6)}', space=smem, size = 0x200, scoped, tag = 'scoped memory for tpu_custom_call.1']
  %s0 = inlined_call_operand.hbm [shape: f32[128,256], index: 0, kind: input, shape index: {}]
  %s1 = inlined_call_operand.hbm [shape: bf16[256,512], index: 1, kind: input, shape index: {}]
  %s2 = inlined_call_operand.vmem [shape: f32[1,512], index: 2, kind: input, shape index: {}]
  %s3 = inlined_call_operand.hbm [shape: bf16[512,256], index: 3, kind: input, shape index: {}]
  %s4 = inlined_call_operand.vmem [shape: f32[1,256], index: 4, kind: input, shape index: {}]
  %s5 = inlined_call_operand.vmem [shape: f32[1,256], index: 5, kind: input, shape index: {}]
  %s6 = inlined_call_operand.<no memory space> [shape: f32[1,1], index: 6, kind: input, shape index: {}]
  %s7 = inlined_call_operand.vmem [shape: f32[128,1], index: 7, kind: output, shape index: {}]
  %s8 = sld [smem:[#allocation0]]
  $region58: #{tpu_custom_call.1} parent=0
    _
  %s10 = ssub.s32 1, %s8
  %s11 = scalar_select 0, %s10, %s8
  %12 = sst [smem:[#allocation3]] %s6
  $region1: #{tpu_custom_call.1} parent=0
    #allocation4 [shape = 'u8[131072]{0}', space=vmem, size = 0x20000, scoped, tag = 'input window, operand 0, single buffered']
    #allocation5 [shape = 's32[1]{0}', space=sflag, size = 0x4, scoped, tag = 'scoped memory for tpu_custom_call.1']
    #allocation6 [shape = 'u8[262144]{0}', space=vmem, size = 0x40000, scoped, tag = 'input window, operand 1, single buffered']
    #allocation7 [shape = 's32[1]{0}', space=sflag, size = 0x4, scoped, tag = 'scoped memory for tpu_custom_call.1']
    #allocation8 [shape = 'u8[262144]{0}', space=vmem, size = 0x40000, scoped, tag = 'input window, operand 3, single buffered']
    %13 = vsyncpa [#allocation5], 0
    %14 = vsyncpa [#allocation7], 0
    // Predicated region
    $region2: #{tpu_custom_call.1} parent=1 // pred_check
      _
    $region3: #{tpu_custom_call.1} parent=1 // pred_check_branch
      %16 = sbr.rel (0) target = $region5
    $region4: #{tpu_custom_call.1} parent=1 // pred_region
      %s18 = ssub.s32 4096, 4096
      %19 = vsyncadd [#allocation5], %s18
      %s20 = sshll.u32 [#allocation4], 4
      %s21 = int_to_ptr.vmem [resolvable:$true] %s20
      %26 = dma.hbm_to_vmem [thread:$0]  %s0, 4096, %s21, [#allocation5], 256, 256, 16
    $region5: #{tpu_custom_call.1} parent=1 // pred_fallthru
      _
    // Predicated region
    $region6: #{tpu_custom_call.1} parent=1 // pred_check
      _
    $region7: #{tpu_custom_call.1} parent=1 // pred_check_branch
      %28 = sbr.rel (0) target = $region9
    $region8: #{tpu_custom_call.1} parent=1 // pred_region
      %s30 = ssub.s32 8192, 8192
      %31 = vsyncadd [#allocation7], %s30
      %s32 = sshll.u32 [#allocation6], 4
      %s33 = int_to_ptr.vmem [resolvable:$true] %s32
      %38 = dma.hbm_to_vmem [thread:$0]  %s1, 8192, %s33, [#allocation7], 256, 256, 16
    $region9: #{tpu_custom_call.1} parent=1 // pred_fallthru
      _
    // Predicated region
    $region10: #{tpu_custom_call.1} parent=1 // pred_check
      _
    $region11: #{tpu_custom_call.1} parent=1 // pred_check_branch
      %40 = sbr.rel (0) target = $region13
    $region12: #{tpu_custom_call.1} parent=1 // pred_region
      _
    $region13: #{tpu_custom_call.1} parent=1 // pred_fallthru
      _
    // Predicated region
    $region14: #{tpu_custom_call.1} parent=1 // pred_check
      _
    $region15: #{tpu_custom_call.1} parent=1 // pred_check_branch
      %42 = sbr.rel (0) target = $region17
    $region16: #{tpu_custom_call.1} parent=1 // pred_region
      %s44 = ssub.s32 8192, 8192
      %45 = vsyncadd [#allocation7], %s44
      %s46 = sshll.u32 [#allocation8], 4
      %s47 = int_to_ptr.vmem [resolvable:$true] %s46
      %52 = dma.hbm_to_vmem [thread:$0]  %s3, 8192, %s47, [#allocation7], 128, 128, 8
    $region17: #{tpu_custom_call.1} parent=1 // pred_fallthru
      _
    // Predicated region
    $region18: #{tpu_custom_call.1} parent=1 // pred_check
      _
    $region19: #{tpu_custom_call.1} parent=1 // pred_check_branch
      %54 = sbr.rel (0) target = $region21
    $region20: #{tpu_custom_call.1} parent=1 // pred_region
      _
    $region21: #{tpu_custom_call.1} parent=1 // pred_fallthru
      _
    // Predicated region
    $region22: #{tpu_custom_call.1} parent=1 // pred_check
      _
    $region23: #{tpu_custom_call.1} parent=1 // pred_check_branch
      %56 = sbr.rel (0) target = $region25
    $region24: #{tpu_custom_call.1} parent=1 // pred_region
      _
    $region25: #{tpu_custom_call.1} parent=1 // pred_fallthru
      _
    // Predicated region
    $region26: #{tpu_custom_call.1} parent=1 // pred_check
      _
    $region27: #{tpu_custom_call.1} parent=1 // pred_check_branch
      %58 = sbr.rel (0) target = $region29
    $region28: #{tpu_custom_call.1} parent=1 // pred_region
      _
    $region29: #{tpu_custom_call.1} parent=1 // pred_fallthru
      _
    // Predicated region
    $region30: #{tpu_custom_call.1} parent=1 // pred_check
      _
    $region31: #{tpu_custom_call.1} parent=1 // pred_check_branch
      %60 = sbr.rel (0) target = $region33
    $region32: #{tpu_custom_call.1} parent=1 // pred_region
      %61 = dma.done [#allocation5], 4096
    $region33: #{tpu_custom_call.1} parent=1 // pred_fallthru
      _
    // Predicated region
    $region34: #{tpu_custom_call.1} parent=1 // pred_check
      _
    $region35: #{tpu_custom_call.1} parent=1 // pred_check_branch
      %63 = sbr.rel (0) target = $region37
    $region36: #{tpu_custom_call.1} parent=1 // pred_region
      %64 = dma.done [#allocation7], 8192
    $region37: #{tpu_custom_call.1} parent=1 // pred_fallthru
      _
    // Predicated region
    $region38: #{tpu_custom_call.1} parent=1 // pred_check
      _
    $region39: #{tpu_custom_call.1} parent=1 // pred_check_branch
      %66 = sbr.rel (0) target = $region41
    $region40: #{tpu_custom_call.1} parent=1 // pred_region
      %67 = dma.done [#allocation7], 8192
    $region41: #{tpu_custom_call.1} parent=1 // pred_fallthru
      _
    %p68 = scmp.eq.s32.totalorder 0, 0
    // Predicated region
    $region42: #{tpu_custom_call.1} parent=1 // pred_check
      %p69 = pneg %p68
    $region43: #{tpu_custom_call.1} parent=1 // pred_check_branch
      %71 = sbr.rel (%p69) target = $region45
    $region44: #{tpu_custom_call.1} parent=1 // pred_region
      %72 = vst [vmem:[#allocation2] sm:$0xff] 0.0
      %73 = vst [vmem:[#allocation2 + $0x8] sm:$0xff] 0.0
      %74 = vst [vmem:[#allocation2 + $0x10] sm:$0xff] 0.0
      %75 = vst [vmem:[#allocation2 + $0x18] sm:$0xff] 0.0
      %76 = vst [vmem:[#allocation2 + $0x20] sm:$0xff] 0.0
      %77 = vst [vmem:[#allocation2 + $0x28] sm:$0xff] 0.0
      %78 = vst [vmem:[#allocation2 + $0x30] sm:$0xff] 0.0
      %79 = vst [vmem:[#allocation2 + $0x38] sm:$0xff] 0.0
      %80 = vst [vmem:[#allocation2 + $0x40] sm:$0xff] 0.0
      %81 = vst [vmem:[#allocation2 + $0x48] sm:$0xff] 0.0
      %82 = vst [vmem:[#allocation2 + $0x50] sm:$0xff] 0.0
      %83 = vst [vmem:[#allocation2 + $0x58] sm:$0xff] 0.0
      %84 = vst [vmem:[#allocation2 + $0x60] sm:$0xff] 0.0
      %85 = vst [vmem:[#allocation2 + $0x68] sm:$0xff] 0.0
      %86 = vst [vmem:[#allocation2 + $0x70] sm:$0xff] 0.0
      %87 = vst [vmem:[#allocation2 + $0x78] sm:$0xff] 0.0
      %88 = vst [vmem:[#allocation2 + $0x80] sm:$0xff] 0.0
      %89 = vst [vmem:[#allocation2 + $0x88] sm:$0xff] 0.0
      %90 = vst [vmem:[#allocation2 + $0x90] sm:$0xff] 0.0
      %91 = vst [vmem:[#allocation2 + $0x98] sm:$0xff] 0.0
      %92 = vst [vmem:[#allocation2 + $0xa0] sm:$0xff] 0.0
      %93 = vst [vmem:[#allocation2 + $0xa8] sm:$0xff] 0.0
      %94 = vst [vmem:[#allocation2 + $0xb0] sm:$0xff] 0.0
      %95 = vst [vmem:[#allocation2 + $0xb8] sm:$0xff] 0.0
      %96 = vst [vmem:[#allocation2 + $0xc0] sm:$0xff] 0.0
      %97 = vst [vmem:[#allocation2 + $0xc8] sm:$0xff] 0.0
      %98 = vst [vmem:[#allocation2 + $0xd0] sm:$0xff] 0.0
      %99 = vst [vmem:[#allocation2 + $0xd8] sm:$0xff] 0.0
      %100 = vst [vmem:[#allocation2 + $0xe0] sm:$0xff] 0.0
      %101 = vst [vmem:[#allocation2 + $0xe8] sm:$0xff] 0.0
      %102 = vst [vmem:[#allocation2 + $0xf0] sm:$0xff] 0.0
      %103 = vst [vmem:[#allocation2 + $0xf8] sm:$0xff] 0.0
      %104 = vst [vmem:[#allocation2 + $0x100] sm:$0xff] 0.0
      %105 = vst [vmem:[#allocation2 + $0x108] sm:$0xff] 0.0
      %106 = vst [vmem:[#allocation2 + $0x110] sm:$0xff] 0.0
      %107 = vst [vmem:[#allocation2 + $0x118] sm:$0xff] 0.0
      %108 = vst [vmem:[#allocation2 + $0x120] sm:$0xff] 0.0
      %109 = vst [vmem:[#allocation2 + $0x128] sm:$0xff] 0.0
      %110 = vst [vmem:[#allocation2 + $0x130] sm:$0xff] 0.0
      %111 = vst [vmem:[#allocation2 + $0x138] sm:$0xff] 0.0
      %112 = vst [vmem:[#allocation2 + $0x140] sm:$0xff] 0.0
      %113 = vst [vmem:[#allocation2 + $0x148] sm:$0xff] 0.0
      %114 = vst [vmem:[#allocation2 + $0x150] sm:$0xff] 0.0
      %115 = vst [vmem:[#allocation2 + $0x158] sm:$0xff] 0.0
      %116 = vst [vmem:[#allocation2 + $0x160] sm:$0xff] 0.0
      %117 = vst [vmem:[#allocation2 + $0x168] sm:$0xff] 0.0
      %118 = vst [vmem:[#allocation2 + $0x170] sm:$0xff] 0.0
      %119 = vst [vmem:[#allocation2 + $0x178] sm:$0xff] 0.0
      %120 = vst [vmem:[#allocation2 + $0x180] sm:$0xff] 0.0
      %121 = vst [vmem:[#allocation2 + $0x188] sm:$0xff] 0.0
      %122 = vst [vmem:[#allocation2 + $0x190] sm:$0xff] 0.0
      %123 = vst [vmem:[#allocation2 + $0x198] sm:$0xff] 0.0
      %124 = vst [vmem:[#allocation2 + $0x1a0] sm:$0xff] 0.0
      %125 = vst [vmem:[#allocation2 + $0x1a8] sm:$0xff] 0.0
      %126 = vst [vmem:[#allocation2 + $0x1b0] sm:$0xff] 0.0
      %127 = vst [vmem:[#allocation2 + $0x1b8] sm:$0xff] 0.0
      %128 = vst [vmem:[#allocation2 + $0x1c0] sm:$0xff] 0.0
      %129 = vst [vmem:[#allocation2 + $0x1c8] sm:$0xff] 0.0
      %130 = vst [vmem:[#allocation2 + $0x1d0] sm:$0xff] 0.0
      %131 = vst [vmem:[#allocation2 + $0x1d8] sm:$0xff] 0.0
      %132 = vst [vmem:[#allocation2 + $0x1e0] sm:$0xff] 0.0
      %133 = vst [vmem:[#allocation2 + $0x1e8] sm:$0xff] 0.0
      %134 = vst [vmem:[#allocation2 + $0x1f0] sm:$0xff] 0.0
      %135 = vst [vmem:[#allocation2 + $0x1f8] sm:$0xff] 0.0
    $region45: #{tpu_custom_call.1} parent=1 // pred_fallthru
      _
    %v136 = vld [vmem:[#allocation4] sm:$0xff]
    %v137 = vld [vmem:[#allocation4 + $0x8] sm:$0xff]
    %v138 = vld [vmem:[#allocation4 + $0x10] sm:$0xff]
    %v139 = vld [vmem:[#allocation4 + $0x18] sm:$0xff]
    %v140 = vld [vmem:[#allocation4 + $0x20] sm:$0xff]
    %v141 = vld [vmem:[#allocation4 + $0x28] sm:$0xff]
    %v142 = vld [vmem:[#allocation4 + $0x30] sm:$0xff]
    %v143 = vld [vmem:[#allocation4 + $0x38] sm:$0xff]
    %v144 = vld [vmem:[#allocation4 + $0x40] sm:$0xff]
    %v145 = vld [vmem:[#allocation4 + $0x48] sm:$0xff]
    %v146 = vld [vmem:[#allocation4 + $0x50] sm:$0xff]
    %v147 = vld [vmem:[#allocation4 + $0x58] sm:$0xff]
    %v148 = vld [vmem:[#allocation4 + $0x60] sm:$0xff]
    %v149 = vld [vmem:[#allocation4 + $0x68] sm:$0xff]
    %v150 = vld [vmem:[#allocation4 + $0x70] sm:$0xff]
    %v151 = vld [vmem:[#allocation4 + $0x78] sm:$0xff]
    %v152 = vld [vmem:[#allocation4 + $0x80] sm:$0xff]
    %v153 = vld [vmem:[#allocation4 + $0x88] sm:$0xff]
    %v154 = vld [vmem:[#allocation4 + $0x90] sm:$0xff]
    %v155 = vld [vmem:[#allocation4 + $0x98] sm:$0xff]
    %v156 = vld [vmem:[#allocation4 + $0xa0] sm:$0xff]
    %v157 = vld [vmem:[#allocation4 + $0xa8] sm:$0xff]
    %v158 = vld [vmem:[#allocation4 + $0xb0] sm:$0xff]
    %v159 = vld [vmem:[#allocation4 + $0xb8] sm:$0xff]
    %v160 = vld [vmem:[#allocation4 + $0xc0] sm:$0xff]
    %v161 = vld [vmem:[#allocation4 + $0xc8] sm:$0xff]
    %v162 = vld [vmem:[#allocation4 + $0xd0] sm:$0xff]
    %v163 = vld [vmem:[#allocation4 + $0xd8] sm:$0xff]
    %v164 = vld [vmem:[#allocation4 + $0xe0] sm:$0xff]
    %v165 = vld [vmem:[#allocation4 + $0xe8] sm:$0xff]
    %v166 = vld [vmem:[#allocation4 + $0xf0] sm:$0xff]
    %v167 = vld [vmem:[#allocation4 + $0xf8] sm:$0xff]
    %v168 = vpack.c.bf16 %v138, %v136
    %v169 = vpack.c.bf16 %v139, %v137
    %v170 = vpack.c.bf16 %v142, %v140
    %v171 = vpack.c.bf16 %v143, %v141
    %v172 = vpack.c.bf16 %v146, %v144
    %v173 = vpack.c.bf16 %v147, %v145
    %v174 = vpack.c.bf16 %v150, %v148
    %v175 = vpack.c.bf16 %v151, %v149
    %v176 = vpack.c.bf16 %v154, %v152
    %v177 = vpack.c.bf16 %v155, %v153
    %v178 = vpack.c.bf16 %v158, %v156
    %v179 = vpack.c.bf16 %v159, %v157
    %v180 = vpack.c.bf16 %v162, %v160
    %v181 = vpack.c.bf16 %v163, %v161
    %v182 = vpack.c.bf16 %v166, %v164
    %v183 = vpack.c.bf16 %v167, %v165
    %v184 = vld [vmem:[#allocation2] sm:$0xff]
    %v185 = vld [vmem:[#allocation2 + $0x8] sm:$0xff]
    %v186 = vld [vmem:[#allocation2 + $0x10] sm:$0xff]
    %v187 = vld [vmem:[#allocation2 + $0x18] sm:$0xff]
    %v188 = vld [vmem:[#allocation2 + $0x20] sm:$0xff]
    %v189 = vld [vmem:[#allocation2 + $0x28] sm:$0xff]
    %v190 = vld [vmem:[#allocation2 + $0x30] sm:$0xff]
    %v191 = vld [vmem:[#allocation2 + $0x38] sm:$0xff]
    %v192 = vld [vmem:[#allocation2 + $0x40] sm:$0xff]
    %v193 = vld [vmem:[#allocation2 + $0x48] sm:$0xff]
    %v194 = vld [vmem:[#allocation2 + $0x50] sm:$0xff]
    %v195 = vld [vmem:[#allocation2 + $0x58] sm:$0xff]
    %v196 = vld [vmem:[#allocation2 + $0x60] sm:$0xff]
    %v197 = vld [vmem:[#allocation2 + $0x68] sm:$0xff]
    %v198 = vld [vmem:[#allocation2 + $0x70] sm:$0xff]
    %v199 = vld [vmem:[#allocation2 + $0x78] sm:$0xff]
    %v200 = vld [vmem:[#allocation2 + $0x80] sm:$0xff]
    %v201 = vld [vmem:[#allocation2 + $0x88] sm:$0xff]
    %v202 = vld [vmem:[#allocation2 + $0x90] sm:$0xff]
    %v203 = vld [vmem:[#allocation2 + $0x98] sm:$0xff]
    %v204 = vld [vmem:[#allocation2 + $0xa0] sm:$0xff]
    %v205 = vld [vmem:[#allocation2 + $0xa8] sm:$0xff]
    %v206 = vld [vmem:[#allocation2 + $0xb0] sm:$0xff]
    %v207 = vld [vmem:[#allocation2 + $0xb8] sm:$0xff]
    %v208 = vld [vmem:[#allocation2 + $0xc0] sm:$0xff]
    %v209 = vld [vmem:[#allocation2 + $0xc8] sm:$0xff]
    %v210 = vld [vmem:[#allocation2 + $0xd0] sm:$0xff]
    %v211 = vld [vmem:[#allocation2 + $0xd8] sm:$0xff]
    %v212 = vld [vmem:[#allocation2 + $0xe0] sm:$0xff]
    %v213 = vld [vmem:[#allocation2 + $0xe8] sm:$0xff]
    %v214 = vld [vmem:[#allocation2 + $0xf0] sm:$0xff]
    %v215 = vld [vmem:[#allocation2 + $0xf8] sm:$0xff]
    %v216 = vld [vmem:[#allocation2 + $0x100] sm:$0xff]
    %v217 = vld [vmem:[#allocation2 + $0x108] sm:$0xff]
    %v218 = vld [vmem:[#allocation2 + $0x110] sm:$0xff]
    %v219 = vld [vmem:[#allocation2 + $0x118] sm:$0xff]
    %v220 = vld [vmem:[#allocation2 + $0x120] sm:$0xff]
    %v221 = vld [vmem:[#allocation2 + $0x128] sm:$0xff]
    %v222 = vld [vmem:[#allocation2 + $0x130] sm:$0xff]
    %v223 = vld [vmem:[#allocation2 + $0x138] sm:$0xff]
    %v224 = vld [vmem:[#allocation2 + $0x140] sm:$0xff]
    %v225 = vld [vmem:[#allocation2 + $0x148] sm:$0xff]
    %v226 = vld [vmem:[#allocation2 + $0x150] sm:$0xff]
    %v227 = vld [vmem:[#allocation2 + $0x158] sm:$0xff]
    %v228 = vld [vmem:[#allocation2 + $0x160] sm:$0xff]
    %v229 = vld [vmem:[#allocation2 + $0x168] sm:$0xff]
    %v230 = vld [vmem:[#allocation2 + $0x170] sm:$0xff]
    %v231 = vld [vmem:[#allocation2 + $0x178] sm:$0xff]
    %v232 = vld [vmem:[#allocation2 + $0x180] sm:$0xff]
    %v233 = vld [vmem:[#allocation2 + $0x188] sm:$0xff]
    %v234 = vld [vmem:[#allocation2 + $0x190] sm:$0xff]
    %v235 = vld [vmem:[#allocation2 + $0x198] sm:$0xff]
    %v236 = vld [vmem:[#allocation2 + $0x1a0] sm:$0xff]
    %v237 = vld [vmem:[#allocation2 + $0x1a8] sm:$0xff]
    %v238 = vld [vmem:[#allocation2 + $0x1b0] sm:$0xff]
    %v239 = vld [vmem:[#allocation2 + $0x1b8] sm:$0xff]
    %v240 = vld [vmem:[#allocation2 + $0x1c0] sm:$0xff]
    %v241 = vld [vmem:[#allocation2 + $0x1c8] sm:$0xff]
    %v242 = vld [vmem:[#allocation2 + $0x1d0] sm:$0xff]
    %v243 = vld [vmem:[#allocation2 + $0x1d8] sm:$0xff]
    %v244 = vld [vmem:[#allocation2 + $0x1e0] sm:$0xff]
    %v245 = vld [vmem:[#allocation2 + $0x1e8] sm:$0xff]
    %v246 = vld [vmem:[#allocation2 + $0x1f0] sm:$0xff]
    %v247 = vld [vmem:[#allocation2 + $0x1f8] sm:$0xff]
    %v248 = vld [vmem:[#allocation6] sm:$0xff]
    %v249 = vld [vmem:[#allocation6 + $0x8] sm:$0xff]
    %v250 = vld [vmem:[#allocation6 + $0x10] sm:$0xff]
    %v251 = vld [vmem:[#allocation6 + $0x18] sm:$0xff]
    %v252 = vld [vmem:[#allocation6 + $0x20] sm:$0xff]
    %v253 = vld [vmem:[#allocation6 + $0x28] sm:$0xff]
    %v254 = vld [vmem:[#allocation6 + $0x30] sm:$0xff]
    %v255 = vld [vmem:[#allocation6 + $0x38] sm:$0xff]
    %v256 = vld [vmem:[#allocation6 + $0x40] sm:$0xff]
    %v257 = vld [vmem:[#allocation6 + $0x48] sm:$0xff]
    %v258 = vld [vmem:[#allocation6 + $0x50] sm:$0xff]
    %v259 = vld [vmem:[#allocation6 + $0x58] sm:$0xff]
    %v260 = vld [vmem:[#allocation6 + $0x60] sm:$0xff]
    %v261 = vld [vmem:[#allocation6 + $0x68] sm:$0xff]
    %v262 = vld [vmem:[#allocation6 + $0x70] sm:$0xff]
    %v263 = vld [vmem:[#allocation6 + $0x78] sm:$0xff]
    %v264 = vld [vmem:[#allocation6 + $0x80] sm:$0xff]
    %v265 = vld [vmem:[#allocation6 + $0x88] sm:$0xff]
    %v266 = vld [vmem:[#allocation6 + $0x90] sm:$0xff]
    %v267 = vld [vmem:[#allocation6 + $0x98] sm:$0xff]
    %v268 = vld [vmem:[#allocation6 + $0xa0] sm:$0xff]
    %v269 = vld [vmem:[#allocation6 + $0xa8] sm:$0xff]
    %v270 = vld [vmem:[#allocation6 + $0xb0] sm:$0xff]
    %v271 = vld [vmem:[#allocation6 + $0xb8] sm:$0xff]
    %v272 = vld [vmem:[#allocation6 + $0xc0] sm:$0xff]
    %v273 = vld [vmem:[#allocation6 + $0xc8] sm:$0xff]
    %v274 = vld [vmem:[#allocation6 + $0xd0] sm:$0xff]
    %v275 = vld [vmem:[#allocation6 + $0xd8] sm:$0xff]
    %v276 = vld [vmem:[#allocation6 + $0xe0] sm:$0xff]
    %v277 = vld [vmem:[#allocation6 + $0xe8] sm:$0xff]
    %v278 = vld [vmem:[#allocation6 + $0xf0] sm:$0xff]
    %v279 = vld [vmem:[#allocation6 + $0xf8] sm:$0xff]
    %v280 = vld [vmem:[#allocation6 + $0x100] sm:$0xff]
    %v281 = vld [vmem:[#allocation6 + $0x108] sm:$0xff]
    %v282 = vld [vmem:[#allocation6 + $0x110] sm:$0xff]
    %v283 = vld [vmem:[#allocation6 + $0x118] sm:$0xff]
    %v284 = vld [vmem:[#allocation6 + $0x120] sm:$0xff]
    %v285 = vld [vmem:[#allocation6 + $0x128] sm:$0xff]
    %v286 = vld [vmem:[#allocation6 + $0x130] sm:$0xff]
    %v287 = vld [vmem:[#allocation6 + $0x138] sm:$0xff]
    %v288 = vld [vmem:[#allocation6 + $0x140] sm:$0xff]
    %v289 = vld [vmem:[#allocation6 + $0x148] sm:$0xff]
    %v290 = vld [vmem:[#allocation6 + $0x150] sm:$0xff]
    %v291 = vld [vmem:[#allocation6 + $0x158] sm:$0xff]
    %v292 = vld [vmem:[#allocation6 + $0x160] sm:$0xff]
    %v293 = vld [vmem:[#allocation6 + $0x168] sm:$0xff]
    %v294 = vld [vmem:[#allocation6 + $0x170] sm:$0xff]
    %v295 = vld [vmem:[#allocation6 + $0x178] sm:$0xff]
    %v296 = vld [vmem:[#allocation6 + $0x180] sm:$0xff]
    %v297 = vld [vmem:[#allocation6 + $0x188] sm:$0xff]
    %v298 = vld [vmem:[#allocation6 + $0x190] sm:$0xff]
    %v299 = vld [vmem:[#allocation6 + $0x198] sm:$0xff]
    %v300 = vld [vmem:[#allocation6 + $0x1a0] sm:$0xff]
    %v301 = vld [vmem:[#allocation6 + $0x1a8] sm:$0xff]
    %v302 = vld [vmem:[#allocation6 + $0x1b0] sm:$0xff]
    %v303 = vld [vmem:[#allocation6 + $0x1b8] sm:$0xff]
    %v304 = vld [vmem:[#allocation6 + $0x1c0] sm:$0xff]
    %v305 = vld [vmem:[#allocation6 + $0x1c8] sm:$0xff]
    %v306 = vld [vmem:[#allocation6 + $0x1d0] sm:$0xff]
    %v307 = vld [vmem:[#allocation6 + $0x1d8] sm:$0xff]
    %v308 = vld [vmem:[#allocation6 + $0x1e0] sm:$0xff]
    %v309 = vld [vmem:[#allocation6 + $0x1e8] sm:$0xff]
    %v310 = vld [vmem:[#allocation6 + $0x1f0] sm:$0xff]
    %v311 = vld [vmem:[#allocation6 + $0x1f8] sm:$0xff]
    %v376 = vunpack.c.l.b16 %v248
    %v377 = vunpack.c.h.b16 %v248
    %v378 = vunpack.c.l.b16 %v249
    %v379 = vunpack.c.h.b16 %v249
    %v380 = vunpack.c.l.b16 %v250
    %v381 = vunpack.c.h.b16 %v250
    %v382 = vunpack.c.l.b16 %v251
    %v383 = vunpack.c.h.b16 %v251
    %v384 = vunpack.c.l.b16 %v252
    %v385 = vunpack.c.h.b16 %v252
    %v386 = vunpack.c.l.b16 %v253
    %v387 = vunpack.c.h.b16 %v253
    %v388 = vunpack.c.l.b16 %v254
    %v389 = vunpack.c.h.b16 %v254
    %v390 = vunpack.c.l.b16 %v255
    %v391 = vunpack.c.h.b16 %v255
    %v392 = vunpack.c.l.b16 %v256
    %v393 = vunpack.c.h.b16 %v256
    %v394 = vunpack.c.l.b16 %v257
    %v395 = vunpack.c.h.b16 %v257
    %v396 = vunpack.c.l.b16 %v258
    %v397 = vunpack.c.h.b16 %v258
    %v398 = vunpack.c.l.b16 %v259
    %v399 = vunpack.c.h.b16 %v259
    %v400 = vunpack.c.l.b16 %v260
    %v401 = vunpack.c.h.b16 %v260
    %v402 = vunpack.c.l.b16 %v261
    %v403 = vunpack.c.h.b16 %v261
    %v404 = vunpack.c.l.b16 %v262
    %v405 = vunpack.c.h.b16 %v262
    %v406 = vunpack.c.l.b16 %v263
    %v407 = vunpack.c.h.b16 %v263
    %v408 = vunpack.c.l.b16 %v264
    %v409 = vunpack.c.h.b16 %v264
    %v410 = vunpack.c.l.b16 %v265
    %v411 = vunpack.c.h.b16 %v265
    %v412 = vunpack.c.l.b16 %v266
    %v413 = vunpack.c.h.b16 %v266
    %v414 = vunpack.c.l.b16 %v267
    %v415 = vunpack.c.h.b16 %v267
    %v416 = vunpack.c.l.b16 %v268
    %v417 = vunpack.c.h.b16 %v268
    %v418 = vunpack.c.l.b16 %v269
    %v419 = vunpack.c.h.b16 %v269
    %v420 = vunpack.c.l.b16 %v270
    %v421 = vunpack.c.h.b16 %v270
    %v422 = vunpack.c.l.b16 %v271
    %v423 = vunpack.c.h.b16 %v271
    %v424 = vunpack.c.l.b16 %v272
    %v425 = vunpack.c.h.b16 %v272
    %v426 = vunpack.c.l.b16 %v273
    %v427 = vunpack.c.h.b16 %v273
    %v428 = vunpack.c.l.b16 %v274
    %v429 = vunpack.c.h.b16 %v274
    %v430 = vunpack.c.l.b16 %v275
    %v431 = vunpack.c.h.b16 %v275
    %v432 = vunpack.c.l.b16 %v276
    %v433 = vunpack.c.h.b16 %v276
    %v434 = vunpack.c.l.b16 %v277
    %v435 = vunpack.c.h.b16 %v277
    %v436 = vunpack.c.l.b16 %v278
    %v437 = vunpack.c.h.b16 %v278
    %v438 = vunpack.c.l.b16 %v279
    %v439 = vunpack.c.h.b16 %v279
    %v440 = vunpack.c.l.b16 %v280
    %v441 = vunpack.c.h.b16 %v280
    %v442 = vunpack.c.l.b16 %v281
    %v443 = vunpack.c.h.b16 %v281
    %v444 = vunpack.c.l.b16 %v282
    %v445 = vunpack.c.h.b16 %v282
    %v446 = vunpack.c.l.b16 %v283
    %v447 = vunpack.c.h.b16 %v283
    %v448 = vunpack.c.l.b16 %v284
    %v449 = vunpack.c.h.b16 %v284
    %v450 = vunpack.c.l.b16 %v285
    %v451 = vunpack.c.h.b16 %v285
    %v452 = vunpack.c.l.b16 %v286
    %v453 = vunpack.c.h.b16 %v286
    %v454 = vunpack.c.l.b16 %v287
    %v455 = vunpack.c.h.b16 %v287
    %v456 = vunpack.c.l.b16 %v288
    %v457 = vunpack.c.h.b16 %v288
    %v458 = vunpack.c.l.b16 %v289
    %v459 = vunpack.c.h.b16 %v289
    %v460 = vunpack.c.l.b16 %v290
    %v461 = vunpack.c.h.b16 %v290
    %v462 = vunpack.c.l.b16 %v291
    %v463 = vunpack.c.h.b16 %v291
    %v464 = vunpack.c.l.b16 %v292
    %v465 = vunpack.c.h.b16 %v292
    %v466 = vunpack.c.l.b16 %v293
    %v467 = vunpack.c.h.b16 %v293
    %v468 = vunpack.c.l.b16 %v294
    %v469 = vunpack.c.h.b16 %v294
    %v470 = vunpack.c.l.b16 %v295
    %v471 = vunpack.c.h.b16 %v295
    %v472 = vunpack.c.l.b16 %v296
    %v473 = vunpack.c.h.b16 %v296
    %v474 = vunpack.c.l.b16 %v297
    %v475 = vunpack.c.h.b16 %v297
    %v476 = vunpack.c.l.b16 %v298
    %v477 = vunpack.c.h.b16 %v298
    %v478 = vunpack.c.l.b16 %v299
    %v479 = vunpack.c.h.b16 %v299
    %v480 = vunpack.c.l.b16 %v300
    %v481 = vunpack.c.h.b16 %v300
    %v482 = vunpack.c.l.b16 %v301
    %v483 = vunpack.c.h.b16 %v301
    %v484 = vunpack.c.l.b16 %v302
    %v485 = vunpack.c.h.b16 %v302
    %v486 = vunpack.c.l.b16 %v303
    %v487 = vunpack.c.h.b16 %v303
    %v488 = vunpack.c.l.b16 %v304
    %v489 = vunpack.c.h.b16 %v304
    %v490 = vunpack.c.l.b16 %v305
    %v491 = vunpack.c.h.b16 %v305
    %v492 = vunpack.c.l.b16 %v306
    %v493 = vunpack.c.h.b16 %v306
    %v494 = vunpack.c.l.b16 %v307
    %v495 = vunpack.c.h.b16 %v307
    %v496 = vunpack.c.l.b16 %v308
    %v497 = vunpack.c.h.b16 %v308
    %v498 = vunpack.c.l.b16 %v309
    %v499 = vunpack.c.h.b16 %v309
    %v500 = vunpack.c.l.b16 %v310
    %v501 = vunpack.c.h.b16 %v310
    %v502 = vunpack.c.l.b16 %v311
    %v503 = vunpack.c.h.b16 %v311
    %v504 = vpack.c.b16 %v380, %v376
    %v505 = vpack.c.b16 %v381, %v377
    %v506 = vpack.c.b16 %v382, %v378
    %v507 = vpack.c.b16 %v383, %v379
    %v508 = vpack.c.b16 %v388, %v384
    %v509 = vpack.c.b16 %v389, %v385
    %v510 = vpack.c.b16 %v390, %v386
    %v511 = vpack.c.b16 %v391, %v387
    %v512 = vpack.c.b16 %v396, %v392
    %v513 = vpack.c.b16 %v397, %v393
    %v514 = vpack.c.b16 %v398, %v394
    %v515 = vpack.c.b16 %v399, %v395
    %v516 = vpack.c.b16 %v404, %v400
    %v517 = vpack.c.b16 %v405, %v401
    %v518 = vpack.c.b16 %v406, %v402
    %v519 = vpack.c.b16 %v407, %v403
    %v520 = vpack.c.b16 %v412, %v408
    %v521 = vpack.c.b16 %v413, %v409
    %v522 = vpack.c.b16 %v414, %v410
    %v523 = vpack.c.b16 %v415, %v411
    %v524 = vpack.c.b16 %v420, %v416
    %v525 = vpack.c.b16 %v421, %v417
    %v526 = vpack.c.b16 %v422, %v418
    %v527 = vpack.c.b16 %v423, %v419
    %v528 = vpack.c.b16 %v428, %v424
    %v529 = vpack.c.b16 %v429, %v425
    %v530 = vpack.c.b16 %v430, %v426
    %v531 = vpack.c.b16 %v431, %v427
    %v532 = vpack.c.b16 %v436, %v432
    %v533 = vpack.c.b16 %v437, %v433
    %v534 = vpack.c.b16 %v438, %v434
    %v535 = vpack.c.b16 %v439, %v435
    %v536 = vpack.c.b16 %v444, %v440
    %v537 = vpack.c.b16 %v445, %v441
    %v538 = vpack.c.b16 %v446, %v442
    %v539 = vpack.c.b16 %v447, %v443
    %v540 = vpack.c.b16 %v452, %v448
    %v541 = vpack.c.b16 %v453, %v449
    %v542 = vpack.c.b16 %v454, %v450
    %v543 = vpack.c.b16 %v455, %v451
    %v544 = vpack.c.b16 %v460, %v456
    %v545 = vpack.c.b16 %v461, %v457
    %v546 = vpack.c.b16 %v462, %v458
    %v547 = vpack.c.b16 %v463, %v459
    %v548 = vpack.c.b16 %v468, %v464
    %v549 = vpack.c.b16 %v469, %v465
    %v550 = vpack.c.b16 %v470, %v466
    %v551 = vpack.c.b16 %v471, %v467
    %v552 = vpack.c.b16 %v476, %v472
    %v553 = vpack.c.b16 %v477, %v473
    %v554 = vpack.c.b16 %v478, %v474
    %v555 = vpack.c.b16 %v479, %v475
    %v556 = vpack.c.b16 %v484, %v480
    %v557 = vpack.c.b16 %v485, %v481
    %v558 = vpack.c.b16 %v486, %v482
    %v559 = vpack.c.b16 %v487, %v483
    %v560 = vpack.c.b16 %v492, %v488
    %v561 = vpack.c.b16 %v493, %v489
    %v562 = vpack.c.b16 %v494, %v490
    %v563 = vpack.c.b16 %v495, %v491
    %v564 = vpack.c.b16 %v500, %v496
    %v565 = vpack.c.b16 %v501, %v497
    %v566 = vpack.c.b16 %v502, %v498
    %v567 = vpack.c.b16 %v503, %v499
    %632 = vmatprep.subr.bf16.mxu0 %v505
    %633 = vmatpush1.bf16.msra.mxu0 %v504
    %634 = vmatprep.subr.bf16.mxu0 %v509
    %635 = vmatpush1.bf16.msra.mxu0 %v508
    %636 = vmatprep.subr.bf16.mxu0 %v513
    %637 = vmatpush1.bf16.msra.mxu0 %v512
    %638 = vmatprep.subr.bf16.mxu0 %v517
    %639 = vmatpush1.bf16.msra.mxu0 %v516
    %640 = vmatprep.subr.bf16.mxu0 %v521
    %641 = vmatpush1.bf16.msra.mxu0 %v520
    %642 = vmatprep.subr.bf16.mxu0 %v525
    %643 = vmatpush1.bf16.msra.mxu0 %v524
    %644 = vmatprep.subr.bf16.mxu0 %v529
    %645 = vmatpush1.bf16.msra.mxu0 %v528
    %646 = vmatprep.subr.bf16.mxu0 %v533
    %647 = vmatpush1.bf16.msra.mxu0 %v532
    %648 = vmatprep.subr.bf16.mxu0 %v537
    %649 = vmatpush1.bf16.msra.mxu0 %v536
    %650 = vmatprep.subr.bf16.mxu0 %v541
    %651 = vmatpush1.bf16.msra.mxu0 %v540
    %652 = vmatprep.subr.bf16.mxu0 %v545
    %653 = vmatpush1.bf16.msra.mxu0 %v544
    %654 = vmatprep.subr.bf16.mxu0 %v549
    %655 = vmatpush1.bf16.msra.mxu0 %v548
    %656 = vmatprep.subr.bf16.mxu0 %v553
    %657 = vmatpush1.bf16.msra.mxu0 %v552
    %658 = vmatprep.subr.bf16.mxu0 %v557
    %659 = vmatpush1.bf16.msra.mxu0 %v556
    %660 = vmatprep.subr.bf16.mxu0 %v561
    %661 = vmatpush1.bf16.msra.mxu0 %v560
    %662 = vmatprep.subr.bf16.mxu0 %v565
    %663 = vmatpush1.bf16.msra.mxu0 %v564
    %664 = vmatprep.mubr.bf16.mxu0 %v169
    %665 = vmatmul.mubr.bf16.gmra.mrb[0].mxu0 %v168
    %v666 = vpop.f32.mrb[0].mxu0
    %v667 = vadd.f32 0.0, %v666
    %v668 = vpop.f32.mrb[0].mxu0
    %v669 = vadd.f32 0.0, %v668
    %v670 = vpop.f32.mrb[0].mxu0
    %v671 = vadd.f32 0.0, %v670
    %v672 = vpop.f32.mrb[0].mxu0
    %v673 = vadd.f32 0.0, %v672
    %674 = vmatprep.mubr.bf16.mxu0 %v171
    %675 = vmatmul.mubr.bf16.gmra.mrb[0].mxu0 %v170
    %v676 = vpop.f32.mrb[0].mxu0
    %v677 = vadd.f32 0.0, %v676
    %v678 = vpop.f32.mrb[0].mxu0
    %v679 = vadd.f32 0.0, %v678
    %v680 = vpop.f32.mrb[0].mxu0
    %v681 = vadd.f32 0.0, %v680
    %v682 = vpop.f32.mrb[0].mxu0
    %v683 = vadd.f32 0.0, %v682
    %684 = vmatprep.mubr.bf16.mxu0 %v173
    %685 = vmatmul.mubr.bf16.gmra.mrb[0].mxu0 %v172
    %v686 = vpop.f32.mrb[0].mxu0
    %v687 = vadd.f32 0.0, %v686
    %v688 = vpop.f32.mrb[0].mxu0
    %v689 = vadd.f32 0.0, %v688
    %v690 = vpop.f32.mrb[0].mxu0
    %v691 = vadd.f32 0.0, %v690
    %v692 = vpop.f32.mrb[0].mxu0
    %v693 = vadd.f32 0.0, %v692
    %694 = vmatprep.mubr.bf16.mxu0 %v175
    %695 = vmatmul.mubr.bf16.gmra.mrb[0].mxu0 %v174
    %v696 = vpop.f32.mrb[0].mxu0
    %v697 = vadd.f32 0.0, %v696
    %v698 = vpop.f32.mrb[0].mxu0
    %v699 = vadd.f32 0.0, %v698
    %v700 = vpop.f32.mrb[0].mxu0
    %v701 = vadd.f32 0.0, %v700
    %v702 = vpop.f32.mrb[0].mxu0
    %v703 = vadd.f32 0.0, %v702
    %704 = vmatprep.mubr.bf16.mxu0 %v177
    %705 = vmatmul.mubr.bf16.gmra.mrb[0].mxu0 %v176
    %v706 = vpop.f32.mrb[0].mxu0
    %v707 = vadd.f32 0.0, %v706
    %v708 = vpop.f32.mrb[0].mxu0
    %v709 = vadd.f32 0.0, %v708
    %v710 = vpop.f32.mrb[0].mxu0
    %v711 = vadd.f32 0.0, %v710
    %v712 = vpop.f32.mrb[0].mxu0
    %v713 = vadd.f32 0.0, %v712
    %714 = vmatprep.mubr.bf16.mxu0 %v179
    %715 = vmatmul.mubr.bf16.gmra.mrb[0].mxu0 %v178
    %v716 = vpop.f32.mrb[0].mxu0
    %v717 = vadd.f32 0.0, %v716
    %v718 = vpop.f32.mrb[0].mxu0
    %v719 = vadd.f32 0.0, %v718
    %v720 = vpop.f32.mrb[0].mxu0
    %v721 = vadd.f32 0.0, %v720
    %v722 = vpop.f32.mrb[0].mxu0
    %v723 = vadd.f32 0.0, %v722
    %724 = vmatprep.mubr.bf16.mxu0 %v181
    %725 = vmatmul.mubr.bf16.gmra.mrb[0].mxu0 %v180
    %v726 = vpop.f32.mrb[0].mxu0
    %v727 = vadd.f32 0.0, %v726
    %v728 = vpop.f32.mrb[0].mxu0
    %v729 = vadd.f32 0.0, %v728
    %v730 = vpop.f32.mrb[0].mxu0
    %v731 = vadd.f32 0.0, %v730
    %v732 = vpop.f32.mrb[0].mxu0
    %v733 = vadd.f32 0.0, %v732
    %734 = vmatprep.mubr.bf16.mxu0 %v183
    %735 = vmatmul.mubr.bf16.gmra.mrb[0].mxu0 %v182
    %v736 = vpop.f32.mrb[0].mxu0
    %v737 = vadd.f32 0.0, %v736
    %v738 = vpop.f32.mrb[0].mxu0
    %v739 = vadd.f32 0.0, %v738
    %v740 = vpop.f32.mrb[0].mxu0
    %v741 = vadd.f32 0.0, %v740
    %v742 = vpop.f32.mrb[0].mxu0
    %v743 = vadd.f32 0.0, %v742
    %744 = vdwg.mxu0
    %745 = vmatprep.subr.bf16.mxu0 %v507
    %746 = vmatpush1.bf16.msra.mxu0 %v506
    %747 = vmatprep.subr.bf16.mxu0 %v511
    %748 = vmatpush1.bf16.msra.mxu0 %v510
    %749 = vmatprep.subr.bf16.mxu0 %v515
    %750 = vmatpush1.bf16.msra.mxu0 %v514
    %751 = vmatprep.subr.bf16.mxu0 %v519
    %752 = vmatpush1.bf16.msra.mxu0 %v518
    %753 = vmatprep.subr.bf16.mxu0 %v523
    %754 = vmatpush1.bf16.msra.mxu0 %v522
    %755 = vmatprep.subr.bf16.mxu0 %v527
    %756 = vmatpush1.bf16.msra.mxu0 %v526
    %757 = vmatprep.subr.bf16.mxu0 %v531
    %758 = vmatpush1.bf16.msra.mxu0 %v530
    %759 = vmatprep.subr.bf16.mxu0 %v535
    %760 = vmatpush1.bf16.msra.mxu0 %v534
    %761 = vmatprep.subr.bf16.mxu0 %v539
    %762 = vmatpush1.bf16.msra.mxu0 %v538
    %763 = vmatprep.subr.bf16.mxu0 %v543
    %764 = vmatpush1.bf16.msra.mxu0 %v542
    %765 = vmatprep.subr.bf16.mxu0 %v547
    %766 = vmatpush1.bf16.msra.mxu0 %v546
    %767 = vmatprep.subr.bf16.mxu0 %v551
    %768 = vmatpush1.bf16.msra.mxu0 %v550
    %769 = vmatprep.subr.bf16.mxu0 %v555
    %770 = vmatpush1.bf16.msra.mxu0 %v554
    %771 = vmatprep.subr.bf16.mxu0 %v559
    %772 = vmatpush1.bf16.msra.mxu0 %v558
    %773 = vmatprep.subr.bf16.mxu0 %v563
    %774 = vmatpush1.bf16.msra.mxu0 %v562
    %775 = vmatprep.subr.bf16.mxu0 %v567
    %776 = vmatpush1.bf16.msra.mxu0 %v566
    %777 = vmatprep.mubr.bf16.mxu0 %v169
    %778 = vmatmul.mubr.bf16.gmra.mrb[0].mxu0 %v168
    %v779 = vpop.f32.mrb[0].mxu0
    %v780 = vadd.f32 0.0, %v779
    %v781 = vpop.f32.mrb[0].mxu0
    %v782 = vadd.f32 0.0, %v781
    %v783 = vpop.f32.mrb[0].mxu0
    %v784 = vadd.f32 0.0, %v783
    %v785 = vpop.f32.mrb[0].mxu0
    %v786 = vadd.f32 0.0, %v785
    %787 = vmatprep.mubr.bf16.mxu0 %v171
    %788 = vmatmul.mubr.bf16.gmra.mrb[0].mxu0 %v170
    %v789 = vpop.f32.mrb[0].mxu0
    %v790 = vadd.f32 0.0, %v789
    %v791 = vpop.f32.mrb[0].mxu0
    %v792 = vadd.f32 0.0, %v791
    %v793 = vpop.f32.mrb[0].mxu0
    %v794 = vadd.f32 0.0, %v793
    %v795 = vpop.f32.mrb[0].mxu0
    %v796 = vadd.f32 0.0, %v795
    %797 = vmatprep.mubr.bf16.mxu0 %v173
    %798 = vmatmul.mubr.bf16.gmra.mrb[0].mxu0 %v172
    %v799 = vpop.f32.mrb[0].mxu0
    %v800 = vadd.f32 0.0, %v799
    %v801 = vpop.f32.mrb[0].mxu0
    %v802 = vadd.f32 0.0, %v801
    %v803 = vpop.f32.mrb[0].mxu0
    %v804 = vadd.f32 0.0, %v803
    %v805 = vpop.f32.mrb[0].mxu0
    %v806 = vadd.f32 0.0, %v805
    %807 = vmatprep.mubr.bf16.mxu0 %v175
    %808 = vmatmul.mubr.bf16.gmra.mrb[0].mxu0 %v174
    %v809 = vpop.f32.mrb[0].mxu0
    %v810 = vadd.f32 0.0, %v809
    %v811 = vpop.f32.mrb[0].mxu0
    %v812 = vadd.f32 0.0, %v811
    %v813 = vpop.f32.mrb[0].mxu0
    %v814 = vadd.f32 0.0, %v813
    %v815 = vpop.f32.mrb[0].mxu0
    %v816 = vadd.f32 0.0, %v815
    %817 = vmatprep.mubr.bf16.mxu0 %v177
    %818 = vmatmul.mubr.bf16.gmra.mrb[0].mxu0 %v176
    %v819 = vpop.f32.mrb[0].mxu0
    %v820 = vadd.f32 0.0, %v819
    %v821 = vpop.f32.mrb[0].mxu0
    %v822 = vadd.f32 0.0, %v821
    %v823 = vpop.f32.mrb[0].mxu0
    %v824 = vadd.f32 0.0, %v823
    %v825 = vpop.f32.mrb[0].mxu0
    %v826 = vadd.f32 0.0, %v825
    %827 = vmatprep.mubr.bf16.mxu0 %v179
    %828 = vmatmul.mubr.bf16.gmra.mrb[0].mxu0 %v178
    %v829 = vpop.f32.mrb[0].mxu0
    %v830 = vadd.f32 0.0, %v829
    %v831 = vpop.f32.mrb[0].mxu0
    %v832 = vadd.f32 0.0, %v831
    %v833 = vpop.f32.mrb[0].mxu0
    %v834 = vadd.f32 0.0, %v833
    %v835 = vpop.f32.mrb[0].mxu0
    %v836 = vadd.f32 0.0, %v835
    %837 = vmatprep.mubr.bf16.mxu0 %v181
    %838 = vmatmul.mubr.bf16.gmra.mrb[0].mxu0 %v180
    %v839 = vpop.f32.mrb[0].mxu0
    %v840 = vadd.f32 0.0, %v839
    %v841 = vpop.f32.mrb[0].mxu0
    %v842 = vadd.f32 0.0, %v841
    %v843 = vpop.f32.mrb[0].mxu0
    %v844 = vadd.f32 0.0, %v843
    %v845 = vpop.f32.mrb[0].mxu0
    %v846 = vadd.f32 0.0, %v845
    %847 = vmatprep.mubr.bf16.mxu0 %v183
    %848 = vmatmul.mubr.bf16.gmra.mrb[0].mxu0 %v182
    %v849 = vpop.f32.mrb[0].mxu0
    %v850 = vadd.f32 0.0, %v849
    %v851 = vpop.f32.mrb[0].mxu0
    %v852 = vadd.f32 0.0, %v851
    %v853 = vpop.f32.mrb[0].mxu0
    %v854 = vadd.f32 0.0, %v853
    %v855 = vpop.f32.mrb[0].mxu0
    %v856 = vadd.f32 0.0, %v855
    %857 = vdwg.mxu0
    %v858 = vadd.f32 %v184, %v667
    %v859 = vadd.f32 %v185, %v669
    %v860 = vadd.f32 %v186, %v780
    %v861 = vadd.f32 %v187, %v782
    %v862 = vadd.f32 %v188, %v671
    %v863 = vadd.f32 %v189, %v673
    %v864 = vadd.f32 %v190, %v784
    %v865 = vadd.f32 %v191, %v786
    %v866 = vadd.f32 %v192, %v677
    %v867 = vadd.f32 %v193, %v679
    %v868 = vadd.f32 %v194, %v790
    %v869 = vadd.f32 %v195, %v792
    %v870 = vadd.f32 %v196, %v681
    %v871 = vadd.f32 %v197, %v683
    %v872 = vadd.f32 %v198, %v794
    %v873 = vadd.f32 %v199, %v796
    %v874 = vadd.f32 %v200, %v687
    %v875 = vadd.f32 %v201, %v689
    %v876 = vadd.f32 %v202, %v800
    %v877 = vadd.f32 %v203, %v802
    %v878 = vadd.f32 %v204, %v691
    %v879 = vadd.f32 %v205, %v693
    %v880 = vadd.f32 %v206, %v804
    %v881 = vadd.f32 %v207, %v806
    %v882 = vadd.f32 %v208, %v697
    %v883 = vadd.f32 %v209, %v699
    %v884 = vadd.f32 %v210, %v810
    %v885 = vadd.f32 %v211, %v812
    %v886 = vadd.f32 %v212, %v701
    %v887 = vadd.f32 %v213, %v703
    %v888 = vadd.f32 %v214, %v814
    %v889 = vadd.f32 %v215, %v816
    %v890 = vadd.f32 %v216, %v707
    %v891 = vadd.f32 %v217, %v709
    %v892 = vadd.f32 %v218, %v820
    %v893 = vadd.f32 %v219, %v822
    %v894 = vadd.f32 %v220, %v711
    %v895 = vadd.f32 %v221, %v713
    %v896 = vadd.f32 %v222, %v824
    %v897 = vadd.f32 %v223, %v826
    %v898 = vadd.f32 %v224, %v717
    %v899 = vadd.f32 %v225, %v719
    %v900 = vadd.f32 %v226, %v830
    %v901 = vadd.f32 %v227, %v832
    %v902 = vadd.f32 %v228, %v721
    %v903 = vadd.f32 %v229, %v723
    %v904 = vadd.f32 %v230, %v834
    %v905 = vadd.f32 %v231, %v836
    %v906 = vadd.f32 %v232, %v727
    %v907 = vadd.f32 %v233, %v729
    %v908 = vadd.f32 %v234, %v840
    %v909 = vadd.f32 %v235, %v842
    %v910 = vadd.f32 %v236, %v731
    %v911 = vadd.f32 %v237, %v733
    %v912 = vadd.f32 %v238, %v844
    %v913 = vadd.f32 %v239, %v846
    %v914 = vadd.f32 %v240, %v737
    %v915 = vadd.f32 %v241, %v739
    %v916 = vadd.f32 %v242, %v850
    %v917 = vadd.f32 %v243, %v852
    %v918 = vadd.f32 %v244, %v741
    %v919 = vadd.f32 %v245, %v743
    %v920 = vadd.f32 %v246, %v854
    %v921 = vadd.f32 %v247, %v856
    %922 = vst [vmem:[#allocation2] sm:$0xff] %v858
    %923 = vst [vmem:[#allocation2 + $0x8] sm:$0xff] %v859
    %924 = vst [vmem:[#allocation2 + $0x10] sm:$0xff] %v860
    %925 = vst [vmem:[#allocation2 + $0x18] sm:$0xff] %v861
    %926 = vst [vmem:[#allocation2 + $0x20] sm:$0xff] %v862
    %927 = vst [vmem:[#allocation2 + $0x28] sm:$0xff] %v863
    %928 = vst [vmem:[#allocation2 + $0x30] sm:$0xff] %v864
    %929 = vst [vmem:[#allocation2 + $0x38] sm:$0xff] %v865
    %930 = vst [vmem:[#allocation2 + $0x40] sm:$0xff] %v866
    %931 = vst [vmem:[#allocation2 + $0x48] sm:$0xff] %v867
    %932 = vst [vmem:[#allocation2 + $0x50] sm:$0xff] %v868
    %933 = vst [vmem:[#allocation2 + $0x58] sm:$0xff] %v869
    %934 = vst [vmem:[#allocation2 + $0x60] sm:$0xff] %v870
    %935 = vst [vmem:[#allocation2 + $0x68] sm:$0xff] %v871
    %936 = vst [vmem:[#allocation2 + $0x70] sm:$0xff] %v872
    %937 = vst [vmem:[#allocation2 + $0x78] sm:$0xff] %v873
    %938 = vst [vmem:[#allocation2 + $0x80] sm:$0xff] %v874
    %939 = vst [vmem:[#allocation2 + $0x88] sm:$0xff] %v875
    %940 = vst [vmem:[#allocation2 + $0x90] sm:$0xff] %v876
    %941 = vst [vmem:[#allocation2 + $0x98] sm:$0xff] %v877
    %942 = vst [vmem:[#allocation2 + $0xa0] sm:$0xff] %v878
    %943 = vst [vmem:[#allocation2 + $0xa8] sm:$0xff] %v879
    %944 = vst [vmem:[#allocation2 + $0xb0] sm:$0xff] %v880
    %945 = vst [vmem:[#allocation2 + $0xb8] sm:$0xff] %v881
    %946 = vst [vmem:[#allocation2 + $0xc0] sm:$0xff] %v882
    %947 = vst [vmem:[#allocation2 + $0xc8] sm:$0xff] %v883
    %948 = vst [vmem:[#allocation2 + $0xd0] sm:$0xff] %v884
    %949 = vst [vmem:[#allocation2 + $0xd8] sm:$0xff] %v885
    %950 = vst [vmem:[#allocation2 + $0xe0] sm:$0xff] %v886
    %951 = vst [vmem:[#allocation2 + $0xe8] sm:$0xff] %v887
    %952 = vst [vmem:[#allocation2 + $0xf0] sm:$0xff] %v888
    %953 = vst [vmem:[#allocation2 + $0xf8] sm:$0xff] %v889
    %954 = vst [vmem:[#allocation2 + $0x100] sm:$0xff] %v890
    %955 = vst [vmem:[#allocation2 + $0x108] sm:$0xff] %v891
    %956 = vst [vmem:[#allocation2 + $0x110] sm:$0xff] %v892
    %957 = vst [vmem:[#allocation2 + $0x118] sm:$0xff] %v893
    %958 = vst [vmem:[#allocation2 + $0x120] sm:$0xff] %v894
    %959 = vst [vmem:[#allocation2 + $0x128] sm:$0xff] %v895
    %960 = vst [vmem:[#allocation2 + $0x130] sm:$0xff] %v896
    %961 = vst [vmem:[#allocation2 + $0x138] sm:$0xff] %v897
    %962 = vst [vmem:[#allocation2 + $0x140] sm:$0xff] %v898
    %963 = vst [vmem:[#allocation2 + $0x148] sm:$0xff] %v899
    %964 = vst [vmem:[#allocation2 + $0x150] sm:$0xff] %v900
    %965 = vst [vmem:[#allocation2 + $0x158] sm:$0xff] %v901
    %966 = vst [vmem:[#allocation2 + $0x160] sm:$0xff] %v902
    %967 = vst [vmem:[#allocation2 + $0x168] sm:$0xff] %v903
    %968 = vst [vmem:[#allocation2 + $0x170] sm:$0xff] %v904
    %969 = vst [vmem:[#allocation2 + $0x178] sm:$0xff] %v905
    %970 = vst [vmem:[#allocation2 + $0x180] sm:$0xff] %v906
    %971 = vst [vmem:[#allocation2 + $0x188] sm:$0xff] %v907
    %972 = vst [vmem:[#allocation2 + $0x190] sm:$0xff] %v908
    %973 = vst [vmem:[#allocation2 + $0x198] sm:$0xff] %v909
    %974 = vst [vmem:[#allocation2 + $0x1a0] sm:$0xff] %v910
    %975 = vst [vmem:[#allocation2 + $0x1a8] sm:$0xff] %v911
    %976 = vst [vmem:[#allocation2 + $0x1b0] sm:$0xff] %v912
    %977 = vst [vmem:[#allocation2 + $0x1b8] sm:$0xff] %v913
    %978 = vst [vmem:[#allocation2 + $0x1c0] sm:$0xff] %v914
    %979 = vst [vmem:[#allocation2 + $0x1c8] sm:$0xff] %v915
    %980 = vst [vmem:[#allocation2 + $0x1d0] sm:$0xff] %v916
    %981 = vst [vmem:[#allocation2 + $0x1d8] sm:$0xff] %v917
    %982 = vst [vmem:[#allocation2 + $0x1e0] sm:$0xff] %v918
    %983 = vst [vmem:[#allocation2 + $0x1e8] sm:$0xff] %v919
    %984 = vst [vmem:[#allocation2 + $0x1f0] sm:$0xff] %v920
    %985 = vst [vmem:[#allocation2 + $0x1f8] sm:$0xff] %v921
    // Predicated region
    $region46: #{tpu_custom_call.1} parent=1 // pred_check
      %p986 = pneg %p68
    $region47: #{tpu_custom_call.1} parent=1 // pred_check_branch
      %988 = sbr.rel (%p986) target = $region49
    $region48: #{tpu_custom_call.1} parent=1 // pred_region
      %v989 = vld [vmem:[#allocation2] sm:$0xff]
      %v990 = vld [vmem:[#allocation2 + $0x8] sm:$0xff]
      %v991 = vld [vmem:[#allocation2 + $0x10] sm:$0xff]
      %v992 = vld [vmem:[#allocation2 + $0x18] sm:$0xff]
      %v993 = vld [vmem:[#allocation2 + $0x20] sm:$0xff]
      %v994 = vld [vmem:[#allocation2 + $0x28] sm:$0xff]
      %v995 = vld [vmem:[#allocation2 + $0x30] sm:$0xff]
      %v996 = vld [vmem:[#allocation2 + $0x38] sm:$0xff]
      %v997 = vld [vmem:[#allocation2 + $0x40] sm:$0xff]
      %v998 = vld [vmem:[#allocation2 + $0x48] sm:$0xff]
      %v999 = vld [vmem:[#allocation2 + $0x50] sm:$0xff]
      %v1000 = vld [vmem:[#allocation2 + $0x58] sm:$0xff]
      %v1001 = vld [vmem:[#allocation2 + $0x60] sm:$0xff]
      %v1002 = vld [vmem:[#allocation2 + $0x68] sm:$0xff]
      %v1003 = vld [vmem:[#allocation2 + $0x70] sm:$0xff]
      %v1004 = vld [vmem:[#allocation2 + $0x78] sm:$0xff]
      %v1005 = vld [vmem:[#allocation2 + $0x80] sm:$0xff]
      %v1006 = vld [vmem:[#allocation2 + $0x88] sm:$0xff]
      %v1007 = vld [vmem:[#allocation2 + $0x90] sm:$0xff]
      %v1008 = vld [vmem:[#allocation2 + $0x98] sm:$0xff]
      %v1009 = vld [vmem:[#allocation2 + $0xa0] sm:$0xff]
      %v1010 = vld [vmem:[#allocation2 + $0xa8] sm:$0xff]
      %v1011 = vld [vmem:[#allocation2 + $0xb0] sm:$0xff]
      %v1012 = vld [vmem:[#allocation2 + $0xb8] sm:$0xff]
      %v1013 = vld [vmem:[#allocation2 + $0xc0] sm:$0xff]
      %v1014 = vld [vmem:[#allocation2 + $0xc8] sm:$0xff]
      %v1015 = vld [vmem:[#allocation2 + $0xd0] sm:$0xff]
      %v1016 = vld [vmem:[#allocation2 + $0xd8] sm:$0xff]
      %v1017 = vld [vmem:[#allocation2 + $0xe0] sm:$0xff]
      %v1018 = vld [vmem:[#allocation2 + $0xe8] sm:$0xff]
      %v1019 = vld [vmem:[#allocation2 + $0xf0] sm:$0xff]
      %v1020 = vld [vmem:[#allocation2 + $0xf8] sm:$0xff]
      %v1021 = vld [vmem:[#allocation2 + $0x100] sm:$0xff]
      %v1022 = vld [vmem:[#allocation2 + $0x108] sm:$0xff]
      %v1023 = vld [vmem:[#allocation2 + $0x110] sm:$0xff]
      %v1024 = vld [vmem:[#allocation2 + $0x118] sm:$0xff]
      %v1025 = vld [vmem:[#allocation2 + $0x120] sm:$0xff]
      %v1026 = vld [vmem:[#allocation2 + $0x128] sm:$0xff]
      %v1027 = vld [vmem:[#allocation2 + $0x130] sm:$0xff]
      %v1028 = vld [vmem:[#allocation2 + $0x138] sm:$0xff]
      %v1029 = vld [vmem:[#allocation2 + $0x140] sm:$0xff]
      %v1030 = vld [vmem:[#allocation2 + $0x148] sm:$0xff]
      %v1031 = vld [vmem:[#allocation2 + $0x150] sm:$0xff]
      %v1032 = vld [vmem:[#allocation2 + $0x158] sm:$0xff]
      %v1033 = vld [vmem:[#allocation2 + $0x160] sm:$0xff]
      %v1034 = vld [vmem:[#allocation2 + $0x168] sm:$0xff]
      %v1035 = vld [vmem:[#allocation2 + $0x170] sm:$0xff]
      %v1036 = vld [vmem:[#allocation2 + $0x178] sm:$0xff]
      %v1037 = vld [vmem:[#allocation2 + $0x180] sm:$0xff]
      %v1038 = vld [vmem:[#allocation2 + $0x188] sm:$0xff]
      %v1039 = vld [vmem:[#allocation2 + $0x190] sm:$0xff]
      %v1040 = vld [vmem:[#allocation2 + $0x198] sm:$0xff]
      %v1041 = vld [vmem:[#allocation2 + $0x1a0] sm:$0xff]
      %v1042 = vld [vmem:[#allocation2 + $0x1a8] sm:$0xff]
      %v1043 = vld [vmem:[#allocation2 + $0x1b0] sm:$0xff]
      %v1044 = vld [vmem:[#allocation2 + $0x1b8] sm:$0xff]
      %v1045 = vld [vmem:[#allocation2 + $0x1c0] sm:$0xff]
      %v1046 = vld [vmem:[#allocation2 + $0x1c8] sm:$0xff]
      %v1047 = vld [vmem:[#allocation2 + $0x1d0] sm:$0xff]
      %v1048 = vld [vmem:[#allocation2 + $0x1d8] sm:$0xff]
      %v1049 = vld [vmem:[#allocation2 + $0x1e0] sm:$0xff]
      %v1050 = vld [vmem:[#allocation2 + $0x1e8] sm:$0xff]
      %v1051 = vld [vmem:[#allocation2 + $0x1f0] sm:$0xff]
      %v1052 = vld [vmem:[#allocation2 + $0x1f8] sm:$0xff]
      %v1053 = vld [vmem:[%s2] sm:$0xf]
      %v1055 = vlaneseq
      %v1056 = vshrl.u32 %v1055, 7
      %v1057 = vsub.s32 0, %v1056
      %v1058 = vrot.slane %v1053, %v1057
      %v1059 = vlaneseq
      %v1060 = vshrl.u32 %v1059, 7
      %v1061 = vsub.s32 1, %v1060
      %v1062 = vrot.slane %v1053, %v1061
      %v1063 = vlaneseq
      %v1064 = vshrl.u32 %v1063, 7
      %v1065 = vsub.s32 2, %v1064
      %v1066 = vrot.slane %v1053, %v1065
      %v1067 = vlaneseq
      %v1068 = vshrl.u32 %v1067, 7
      %v1069 = vsub.s32 3, %v1068
      %v1070 = vrot.slane %v1053, %v1069
      %v1075 = vadd.f32 %v989, %v1058
      %v1076 = vadd.f32 %v990, %v1062
      %v1077 = vadd.f32 %v991, %v1066
      %v1078 = vadd.f32 %v992, %v1070
      %v1079 = vadd.f32 %v993, %v1058
      %v1080 = vadd.f32 %v994, %v1062
      %v1081 = vadd.f32 %v995, %v1066
      %v1082 = vadd.f32 %v996, %v1070
      %v1083 = vadd.f32 %v997, %v1058
      %v1084 = vadd.f32 %v998, %v1062
      %v1085 = vadd.f32 %v999, %v1066
      %v1086 = vadd.f32 %v1000, %v1070
      %v1087 = vadd.f32 %v1001, %v1058
      %v1088 = vadd.f32 %v1002, %v1062
      %v1089 = vadd.f32 %v1003, %v1066
      %v1090 = vadd.f32 %v1004, %v1070
      %v1091 = vadd.f32 %v1005, %v1058
      %v1092 = vadd.f32 %v1006, %v1062
      %v1093 = vadd.f32 %v1007, %v1066
      %v1094 = vadd.f32 %v1008, %v1070
      %v1095 = vadd.f32 %v1009, %v1058
      %v1096 = vadd.f32 %v1010, %v1062
      %v1097 = vadd.f32 %v1011, %v1066
      %v1098 = vadd.f32 %v1012, %v1070
      %v1099 = vadd.f32 %v1013, %v1058
      %v1100 = vadd.f32 %v1014, %v1062
      %v1101 = vadd.f32 %v1015, %v1066
      %v1102 = vadd.f32 %v1016, %v1070
      %v1103 = vadd.f32 %v1017, %v1058
      %v1104 = vadd.f32 %v1018, %v1062
      %v1105 = vadd.f32 %v1019, %v1066
      %v1106 = vadd.f32 %v1020, %v1070
      %v1107 = vadd.f32 %v1021, %v1058
      %v1108 = vadd.f32 %v1022, %v1062
      %v1109 = vadd.f32 %v1023, %v1066
      %v1110 = vadd.f32 %v1024, %v1070
      %v1111 = vadd.f32 %v1025, %v1058
      %v1112 = vadd.f32 %v1026, %v1062
      %v1113 = vadd.f32 %v1027, %v1066
      %v1114 = vadd.f32 %v1028, %v1070
      %v1115 = vadd.f32 %v1029, %v1058
      %v1116 = vadd.f32 %v1030, %v1062
      %v1117 = vadd.f32 %v1031, %v1066
      %v1118 = vadd.f32 %v1032, %v1070
      %v1119 = vadd.f32 %v1033, %v1058
      %v1120 = vadd.f32 %v1034, %v1062
      %v1121 = vadd.f32 %v1035, %v1066
      %v1122 = vadd.f32 %v1036, %v1070
      %v1123 = vadd.f32 %v1037, %v1058
      %v1124 = vadd.f32 %v1038, %v1062
      %v1125 = vadd.f32 %v1039, %v1066
      %v1126 = vadd.f32 %v1040, %v1070
      %v1127 = vadd.f32 %v1041, %v1058
      %v1128 = vadd.f32 %v1042, %v1062
      %v1129 = vadd.f32 %v1043, %v1066
      %v1130 = vadd.f32 %v1044, %v1070
      %v1131 = vadd.f32 %v1045, %v1058
      %v1132 = vadd.f32 %v1046, %v1062
      %v1133 = vadd.f32 %v1047, %v1066
      %v1134 = vadd.f32 %v1048, %v1070
      %v1135 = vadd.f32 %v1049, %v1058
      %v1136 = vadd.f32 %v1050, %v1062
      %v1137 = vadd.f32 %v1051, %v1066
      %v1138 = vadd.f32 %v1052, %v1070
      %vm1139 = vcmp.gt.f32.partialorder %v1075, 0.0
      %vm1140 = vcmp.gt.f32.partialorder %v1076, 0.0
      %vm1141 = vcmp.gt.f32.partialorder %v1077, 0.0
      %vm1142 = vcmp.gt.f32.partialorder %v1078, 0.0
      %vm1143 = vcmp.gt.f32.partialorder %v1079, 0.0
      %vm1144 = vcmp.gt.f32.partialorder %v1080, 0.0
      %vm1145 = vcmp.gt.f32.partialorder %v1081, 0.0
      %vm1146 = vcmp.gt.f32.partialorder %v1082, 0.0
      %vm1147 = vcmp.gt.f32.partialorder %v1083, 0.0
      %vm1148 = vcmp.gt.f32.partialorder %v1084, 0.0
      %vm1149 = vcmp.gt.f32.partialorder %v1085, 0.0
      %vm1150 = vcmp.gt.f32.partialorder %v1086, 0.0
      %vm1151 = vcmp.gt.f32.partialorder %v1087, 0.0
      %vm1152 = vcmp.gt.f32.partialorder %v1088, 0.0
      %vm1153 = vcmp.gt.f32.partialorder %v1089, 0.0
      %vm1154 = vcmp.gt.f32.partialorder %v1090, 0.0
      %vm1155 = vcmp.gt.f32.partialorder %v1091, 0.0
      %vm1156 = vcmp.gt.f32.partialorder %v1092, 0.0
      %vm1157 = vcmp.gt.f32.partialorder %v1093, 0.0
      %vm1158 = vcmp.gt.f32.partialorder %v1094, 0.0
      %vm1159 = vcmp.gt.f32.partialorder %v1095, 0.0
      %vm1160 = vcmp.gt.f32.partialorder %v1096, 0.0
      %vm1161 = vcmp.gt.f32.partialorder %v1097, 0.0
      %vm1162 = vcmp.gt.f32.partialorder %v1098, 0.0
      %vm1163 = vcmp.gt.f32.partialorder %v1099, 0.0
      %vm1164 = vcmp.gt.f32.partialorder %v1100, 0.0
      %vm1165 = vcmp.gt.f32.partialorder %v1101, 0.0
      %vm1166 = vcmp.gt.f32.partialorder %v1102, 0.0
      %vm1167 = vcmp.gt.f32.partialorder %v1103, 0.0
      %vm1168 = vcmp.gt.f32.partialorder %v1104, 0.0
      %vm1169 = vcmp.gt.f32.partialorder %v1105, 0.0
      %vm1170 = vcmp.gt.f32.partialorder %v1106, 0.0
      %vm1171 = vcmp.gt.f32.partialorder %v1107, 0.0
      %vm1172 = vcmp.gt.f32.partialorder %v1108, 0.0
      %vm1173 = vcmp.gt.f32.partialorder %v1109, 0.0
      %vm1174 = vcmp.gt.f32.partialorder %v1110, 0.0
      %vm1175 = vcmp.gt.f32.partialorder %v1111, 0.0
      %vm1176 = vcmp.gt.f32.partialorder %v1112, 0.0
      %vm1177 = vcmp.gt.f32.partialorder %v1113, 0.0
      %vm1178 = vcmp.gt.f32.partialorder %v1114, 0.0
      %vm1179 = vcmp.gt.f32.partialorder %v1115, 0.0
      %vm1180 = vcmp.gt.f32.partialorder %v1116, 0.0
      %vm1181 = vcmp.gt.f32.partialorder %v1117, 0.0
      %vm1182 = vcmp.gt.f32.partialorder %v1118, 0.0
      %vm1183 = vcmp.gt.f32.partialorder %v1119, 0.0
      %vm1184 = vcmp.gt.f32.partialorder %v1120, 0.0
      %vm1185 = vcmp.gt.f32.partialorder %v1121, 0.0
      %vm1186 = vcmp.gt.f32.partialorder %v1122, 0.0
      %vm1187 = vcmp.gt.f32.partialorder %v1123, 0.0
      %vm1188 = vcmp.gt.f32.partialorder %v1124, 0.0
      %vm1189 = vcmp.gt.f32.partialorder %v1125, 0.0
      %vm1190 = vcmp.gt.f32.partialorder %v1126, 0.0
      %vm1191 = vcmp.gt.f32.partialorder %v1127, 0.0
      %vm1192 = vcmp.gt.f32.partialorder %v1128, 0.0
      %vm1193 = vcmp.gt.f32.partialorder %v1129, 0.0
      %vm1194 = vcmp.gt.f32.partialorder %v1130, 0.0
      %vm1195 = vcmp.gt.f32.partialorder %v1131, 0.0
      %vm1196 = vcmp.gt.f32.partialorder %v1132, 0.0
      %vm1197 = vcmp.gt.f32.partialorder %v1133, 0.0
      %vm1198 = vcmp.gt.f32.partialorder %v1134, 0.0
      %vm1199 = vcmp.gt.f32.partialorder %v1135, 0.0
      %vm1200 = vcmp.gt.f32.partialorder %v1136, 0.0
      %vm1201 = vcmp.gt.f32.partialorder %v1137, 0.0
      %vm1202 = vcmp.gt.f32.partialorder %v1138, 0.0
      %v1203 = vmul.f32 %v1075, 0.2
      %v1204 = vmul.f32 %v1076, 0.2
      %v1205 = vmul.f32 %v1077, 0.2
      %v1206 = vmul.f32 %v1078, 0.2
      %v1207 = vmul.f32 %v1079, 0.2
      %v1208 = vmul.f32 %v1080, 0.2
      %v1209 = vmul.f32 %v1081, 0.2
      %v1210 = vmul.f32 %v1082, 0.2
      %v1211 = vmul.f32 %v1083, 0.2
      %v1212 = vmul.f32 %v1084, 0.2
      %v1213 = vmul.f32 %v1085, 0.2
      %v1214 = vmul.f32 %v1086, 0.2
      %v1215 = vmul.f32 %v1087, 0.2
      %v1216 = vmul.f32 %v1088, 0.2
      %v1217 = vmul.f32 %v1089, 0.2
      %v1218 = vmul.f32 %v1090, 0.2
      %v1219 = vmul.f32 %v1091, 0.2
      %v1220 = vmul.f32 %v1092, 0.2
      %v1221 = vmul.f32 %v1093, 0.2
      %v1222 = vmul.f32 %v1094, 0.2
      %v1223 = vmul.f32 %v1095, 0.2
      %v1224 = vmul.f32 %v1096, 0.2
      %v1225 = vmul.f32 %v1097, 0.2
      %v1226 = vmul.f32 %v1098, 0.2
      %v1227 = vmul.f32 %v1099, 0.2
      %v1228 = vmul.f32 %v1100, 0.2
      %v1229 = vmul.f32 %v1101, 0.2
      %v1230 = vmul.f32 %v1102, 0.2
      %v1231 = vmul.f32 %v1103, 0.2
      %v1232 = vmul.f32 %v1104, 0.2
      %v1233 = vmul.f32 %v1105, 0.2
      %v1234 = vmul.f32 %v1106, 0.2
      %v1235 = vmul.f32 %v1107, 0.2
      %v1236 = vmul.f32 %v1108, 0.2
      %v1237 = vmul.f32 %v1109, 0.2
      %v1238 = vmul.f32 %v1110, 0.2
      %v1239 = vmul.f32 %v1111, 0.2
      %v1240 = vmul.f32 %v1112, 0.2
      %v1241 = vmul.f32 %v1113, 0.2
      %v1242 = vmul.f32 %v1114, 0.2
      %v1243 = vmul.f32 %v1115, 0.2
      %v1244 = vmul.f32 %v1116, 0.2
      %v1245 = vmul.f32 %v1117, 0.2
      %v1246 = vmul.f32 %v1118, 0.2
      %v1247 = vmul.f32 %v1119, 0.2
      %v1248 = vmul.f32 %v1120, 0.2
      %v1249 = vmul.f32 %v1121, 0.2
      %v1250 = vmul.f32 %v1122, 0.2
      %v1251 = vmul.f32 %v1123, 0.2
      %v1252 = vmul.f32 %v1124, 0.2
      %v1253 = vmul.f32 %v1125, 0.2
      %v1254 = vmul.f32 %v1126, 0.2
      %v1255 = vmul.f32 %v1127, 0.2
      %v1256 = vmul.f32 %v1128, 0.2
      %v1257 = vmul.f32 %v1129, 0.2
      %v1258 = vmul.f32 %v1130, 0.2
      %v1259 = vmul.f32 %v1131, 0.2
      %v1260 = vmul.f32 %v1132, 0.2
      %v1261 = vmul.f32 %v1133, 0.2
      %v1262 = vmul.f32 %v1134, 0.2
      %v1263 = vmul.f32 %v1135, 0.2
      %v1264 = vmul.f32 %v1136, 0.2
      %v1265 = vmul.f32 %v1137, 0.2
      %v1266 = vmul.f32 %v1138, 0.2
      %v1267 = vsel %vm1139, %v1075, %v1203
      %v1268 = vsel %vm1140, %v1076, %v1204
      %v1269 = vsel %vm1141, %v1077, %v1205
      %v1270 = vsel %vm1142, %v1078, %v1206
      %v1271 = vsel %vm1143, %v1079, %v1207
      %v1272 = vsel %vm1144, %v1080, %v1208
      %v1273 = vsel %vm1145, %v1081, %v1209
      %v1274 = vsel %vm1146, %v1082, %v1210
      %v1275 = vsel %vm1147, %v1083, %v1211
      %v1276 = vsel %vm1148, %v1084, %v1212
      %v1277 = vsel %vm1149, %v1085, %v1213
      %v1278 = vsel %vm1150, %v1086, %v1214
      %v1279 = vsel %vm1151, %v1087, %v1215
      %v1280 = vsel %vm1152, %v1088, %v1216
      %v1281 = vsel %vm1153, %v1089, %v1217
      %v1282 = vsel %vm1154, %v1090, %v1218
      %v1283 = vsel %vm1155, %v1091, %v1219
      %v1284 = vsel %vm1156, %v1092, %v1220
      %v1285 = vsel %vm1157, %v1093, %v1221
      %v1286 = vsel %vm1158, %v1094, %v1222
      %v1287 = vsel %vm1159, %v1095, %v1223
      %v1288 = vsel %vm1160, %v1096, %v1224
      %v1289 = vsel %vm1161, %v1097, %v1225
      %v1290 = vsel %vm1162, %v1098, %v1226
      %v1291 = vsel %vm1163, %v1099, %v1227
      %v1292 = vsel %vm1164, %v1100, %v1228
      %v1293 = vsel %vm1165, %v1101, %v1229
      %v1294 = vsel %vm1166, %v1102, %v1230
      %v1295 = vsel %vm1167, %v1103, %v1231
      %v1296 = vsel %vm1168, %v1104, %v1232
      %v1297 = vsel %vm1169, %v1105, %v1233
      %v1298 = vsel %vm1170, %v1106, %v1234
      %v1299 = vsel %vm1171, %v1107, %v1235
      %v1300 = vsel %vm1172, %v1108, %v1236
      %v1301 = vsel %vm1173, %v1109, %v1237
      %v1302 = vsel %vm1174, %v1110, %v1238
      %v1303 = vsel %vm1175, %v1111, %v1239
      %v1304 = vsel %vm1176, %v1112, %v1240
      %v1305 = vsel %vm1177, %v1113, %v1241
      %v1306 = vsel %vm1178, %v1114, %v1242
      %v1307 = vsel %vm1179, %v1115, %v1243
      %v1308 = vsel %vm1180, %v1116, %v1244
      %v1309 = vsel %vm1181, %v1117, %v1245
      %v1310 = vsel %vm1182, %v1118, %v1246
      %v1311 = vsel %vm1183, %v1119, %v1247
      %v1312 = vsel %vm1184, %v1120, %v1248
      %v1313 = vsel %vm1185, %v1121, %v1249
      %v1314 = vsel %vm1186, %v1122, %v1250
      %v1315 = vsel %vm1187, %v1123, %v1251
      %v1316 = vsel %vm1188, %v1124, %v1252
      %v1317 = vsel %vm1189, %v1125, %v1253
      %v1318 = vsel %vm1190, %v1126, %v1254
      %v1319 = vsel %vm1191, %v1127, %v1255
      %v1320 = vsel %vm1192, %v1128, %v1256
      %v1321 = vsel %vm1193, %v1129, %v1257
      %v1322 = vsel %vm1194, %v1130, %v1258
      %v1323 = vsel %vm1195, %v1131, %v1259
      %v1324 = vsel %vm1196, %v1132, %v1260
      %v1325 = vsel %vm1197, %v1133, %v1261
      %v1326 = vsel %vm1198, %v1134, %v1262
      %v1327 = vsel %vm1199, %v1135, %v1263
      %v1328 = vsel %vm1200, %v1136, %v1264
      %v1329 = vsel %vm1201, %v1137, %v1265
      %v1330 = vsel %vm1202, %v1138, %v1266
      %v1331 = vpack.c.bf16 %v1271, %v1267
      %v1332 = vpack.c.bf16 %v1272, %v1268
      %v1333 = vpack.c.bf16 %v1273, %v1269
      %v1334 = vpack.c.bf16 %v1274, %v1270
      %v1335 = vpack.c.bf16 %v1279, %v1275
      %v1336 = vpack.c.bf16 %v1280, %v1276
      %v1337 = vpack.c.bf16 %v1281, %v1277
      %v1338 = vpack.c.bf16 %v1282, %v1278
      %v1339 = vpack.c.bf16 %v1287, %v1283
      %v1340 = vpack.c.bf16 %v1288, %v1284
      %v1341 = vpack.c.bf16 %v1289, %v1285
      %v1342 = vpack.c.bf16 %v1290, %v1286
      %v1343 = vpack.c.bf16 %v1295, %v1291
      %v1344 = vpack.c.bf16 %v1296, %v1292
      %v1345 = vpack.c.bf16 %v1297, %v1293
      %v1346 = vpack.c.bf16 %v1298, %v1294
      %v1347 = vpack.c.bf16 %v1303, %v1299
      %v1348 = vpack.c.bf16 %v1304, %v1300
      %v1349 = vpack.c.bf16 %v1305, %v1301
      %v1350 = vpack.c.bf16 %v1306, %v1302
      %v1351 = vpack.c.bf16 %v1311, %v1307
      %v1352 = vpack.c.bf16 %v1312, %v1308
      %v1353 = vpack.c.bf16 %v1313, %v1309
      %v1354 = vpack.c.bf16 %v1314, %v1310
      %v1355 = vpack.c.bf16 %v1319, %v1315
      %v1356 = vpack.c.bf16 %v1320, %v1316
      %v1357 = vpack.c.bf16 %v1321, %v1317
      %v1358 = vpack.c.bf16 %v1322, %v1318
      %v1359 = vpack.c.bf16 %v1327, %v1323
      %v1360 = vpack.c.bf16 %v1328, %v1324
      %v1361 = vpack.c.bf16 %v1329, %v1325
      %v1362 = vpack.c.bf16 %v1330, %v1326
      %v1363 = vld [vmem:[#allocation8] sm:$0xff]
      %v1364 = vld [vmem:[#allocation8 + $0x8] sm:$0xff]
      %v1365 = vld [vmem:[#allocation8 + $0x10] sm:$0xff]
      %v1366 = vld [vmem:[#allocation8 + $0x18] sm:$0xff]
      %v1367 = vld [vmem:[#allocation8 + $0x20] sm:$0xff]
      %v1368 = vld [vmem:[#allocation8 + $0x28] sm:$0xff]
      %v1369 = vld [vmem:[#allocation8 + $0x30] sm:$0xff]
      %v1370 = vld [vmem:[#allocation8 + $0x38] sm:$0xff]
      %v1371 = vld [vmem:[#allocation8 + $0x40] sm:$0xff]
      %v1372 = vld [vmem:[#allocation8 + $0x48] sm:$0xff]
      %v1373 = vld [vmem:[#allocation8 + $0x50] sm:$0xff]
      %v1374 = vld [vmem:[#allocation8 + $0x58] sm:$0xff]
      %v1375 = vld [vmem:[#allocation8 + $0x60] sm:$0xff]
      %v1376 = vld [vmem:[#allocation8 + $0x68] sm:$0xff]
      %v1377 = vld [vmem:[#allocation8 + $0x70] sm:$0xff]
      %v1378 = vld [vmem:[#allocation8 + $0x78] sm:$0xff]
      %v1379 = vld [vmem:[#allocation8 + $0x80] sm:$0xff]
      %v1380 = vld [vmem:[#allocation8 + $0x88] sm:$0xff]
      %v1381 = vld [vmem:[#allocation8 + $0x90] sm:$0xff]
      %v1382 = vld [vmem:[#allocation8 + $0x98] sm:$0xff]
      %v1383 = vld [vmem:[#allocation8 + $0xa0] sm:$0xff]
      %v1384 = vld [vmem:[#allocation8 + $0xa8] sm:$0xff]
      %v1385 = vld [vmem:[#allocation8 + $0xb0] sm:$0xff]
      %v1386 = vld [vmem:[#allocation8 + $0xb8] sm:$0xff]
      %v1387 = vld [vmem:[#allocation8 + $0xc0] sm:$0xff]
      %v1388 = vld [vmem:[#allocation8 + $0xc8] sm:$0xff]
      %v1389 = vld [vmem:[#allocation8 + $0xd0] sm:$0xff]
      %v1390 = vld [vmem:[#allocation8 + $0xd8] sm:$0xff]
      %v1391 = vld [vmem:[#allocation8 + $0xe0] sm:$0xff]
      %v1392 = vld [vmem:[#allocation8 + $0xe8] sm:$0xff]
      %v1393 = vld [vmem:[#allocation8 + $0xf0] sm:$0xff]
      %v1394 = vld [vmem:[#allocation8 + $0xf8] sm:$0xff]
      %v1395 = vld [vmem:[#allocation8 + $0x100] sm:$0xff]
      %v1396 = vld [vmem:[#allocation8 + $0x108] sm:$0xff]
      %v1397 = vld [vmem:[#allocation8 + $0x110] sm:$0xff]
      %v1398 = vld [vmem:[#allocation8 + $0x118] sm:$0xff]
      %v1399 = vld [vmem:[#allocation8 + $0x120] sm:$0xff]
      %v1400 = vld [vmem:[#allocation8 + $0x128] sm:$0xff]
      %v1401 = vld [vmem:[#allocation8 + $0x130] sm:$0xff]
      %v1402 = vld [vmem:[#allocation8 + $0x138] sm:$0xff]
      %v1403 = vld [vmem:[#allocation8 + $0x140] sm:$0xff]
      %v1404 = vld [vmem:[#allocation8 + $0x148] sm:$0xff]
      %v1405 = vld [vmem:[#allocation8 + $0x150] sm:$0xff]
      %v1406 = vld [vmem:[#allocation8 + $0x158] sm:$0xff]
      %v1407 = vld [vmem:[#allocation8 + $0x160] sm:$0xff]
      %v1408 = vld [vmem:[#allocation8 + $0x168] sm:$0xff]
      %v1409 = vld [vmem:[#allocation8 + $0x170] sm:$0xff]
      %v1410 = vld [vmem:[#allocation8 + $0x178] sm:$0xff]
      %v1411 = vld [vmem:[#allocation8 + $0x180] sm:$0xff]
      %v1412 = vld [vmem:[#allocation8 + $0x188] sm:$0xff]
      %v1413 = vld [vmem:[#allocation8 + $0x190] sm:$0xff]
      %v1414 = vld [vmem:[#allocation8 + $0x198] sm:$0xff]
      %v1415 = vld [vmem:[#allocation8 + $0x1a0] sm:$0xff]
      %v1416 = vld [vmem:[#allocation8 + $0x1a8] sm:$0xff]
      %v1417 = vld [vmem:[#allocation8 + $0x1b0] sm:$0xff]
      %v1418 = vld [vmem:[#allocation8 + $0x1b8] sm:$0xff]
      %v1419 = vld [vmem:[#allocation8 + $0x1c0] sm:$0xff]
      %v1420 = vld [vmem:[#allocation8 + $0x1c8] sm:$0xff]
      %v1421 = vld [vmem:[#allocation8 + $0x1d0] sm:$0xff]
      %v1422 = vld [vmem:[#allocation8 + $0x1d8] sm:$0xff]
      %v1423 = vld [vmem:[#allocation8 + $0x1e0] sm:$0xff]
      %v1424 = vld [vmem:[#allocation8 + $0x1e8] sm:$0xff]
      %v1425 = vld [vmem:[#allocation8 + $0x1f0] sm:$0xff]
      %v1426 = vld [vmem:[#allocation8 + $0x1f8] sm:$0xff]
      %v1427 = vld [vmem:[%s4] sm:$0x3]
      %v1429 = vlaneseq
      %v1430 = vshrl.u32 %v1429, 7
      %v1431 = vsub.s32 0, %v1430
      %v1432 = vrot.slane %v1427, %v1431
      %v1433 = vlaneseq
      %v1434 = vshrl.u32 %v1433, 7
      %v1435 = vsub.s32 1, %v1434
      %v1436 = vrot.slane %v1427, %v1435
      %v1503 = vunpack.c.l.b16 %v1363
      %v1504 = vunpack.c.h.b16 %v1363
      %v1505 = vunpack.c.l.b16 %v1364
      %v1506 = vunpack.c.h.b16 %v1364
      %v1507 = vunpack.c.l.b16 %v1365
      %v1508 = vunpack.c.h.b16 %v1365
      %v1509 = vunpack.c.l.b16 %v1366
      %v1510 = vunpack.c.h.b16 %v1366
      %v1511 = vunpack.c.l.b16 %v1367
      %v1512 = vunpack.c.h.b16 %v1367
      %v1513 = vunpack.c.l.b16 %v1368
      %v1514 = vunpack.c.h.b16 %v1368
      %v1515 = vunpack.c.l.b16 %v1369
      %v1516 = vunpack.c.h.b16 %v1369
      %v1517 = vunpack.c.l.b16 %v1370
      %v1518 = vunpack.c.h.b16 %v1370
      %v1519 = vunpack.c.l.b16 %v1371
      %v1520 = vunpack.c.h.b16 %v1371
      %v1521 = vunpack.c.l.b16 %v1372
      %v1522 = vunpack.c.h.b16 %v1372
      %v1523 = vunpack.c.l.b16 %v1373
      %v1524 = vunpack.c.h.b16 %v1373
      %v1525 = vunpack.c.l.b16 %v1374
      %v1526 = vunpack.c.h.b16 %v1374
      %v1527 = vunpack.c.l.b16 %v1375
      %v1528 = vunpack.c.h.b16 %v1375
      %v1529 = vunpack.c.l.b16 %v1376
      %v1530 = vunpack.c.h.b16 %v1376
      %v1531 = vunpack.c.l.b16 %v1377
      %v1532 = vunpack.c.h.b16 %v1377
      %v1533 = vunpack.c.l.b16 %v1378
      %v1534 = vunpack.c.h.b16 %v1378
      %v1535 = vunpack.c.l.b16 %v1379
      %v1536 = vunpack.c.h.b16 %v1379
      %v1537 = vunpack.c.l.b16 %v1380
      %v1538 = vunpack.c.h.b16 %v1380
      %v1539 = vunpack.c.l.b16 %v1381
      %v1540 = vunpack.c.h.b16 %v1381
      %v1541 = vunpack.c.l.b16 %v1382
      %v1542 = vunpack.c.h.b16 %v1382
      %v1543 = vunpack.c.l.b16 %v1383
      %v1544 = vunpack.c.h.b16 %v1383
      %v1545 = vunpack.c.l.b16 %v1384
      %v1546 = vunpack.c.h.b16 %v1384
      %v1547 = vunpack.c.l.b16 %v1385
      %v1548 = vunpack.c.h.b16 %v1385
      %v1549 = vunpack.c.l.b16 %v1386
      %v1550 = vunpack.c.h.b16 %v1386
      %v1551 = vunpack.c.l.b16 %v1387
      %v1552 = vunpack.c.h.b16 %v1387
      %v1553 = vunpack.c.l.b16 %v1388
      %v1554 = vunpack.c.h.b16 %v1388
      %v1555 = vunpack.c.l.b16 %v1389
      %v1556 = vunpack.c.h.b16 %v1389
      %v1557 = vunpack.c.l.b16 %v1390
      %v1558 = vunpack.c.h.b16 %v1390
      %v1559 = vunpack.c.l.b16 %v1391
      %v1560 = vunpack.c.h.b16 %v1391
      %v1561 = vunpack.c.l.b16 %v1392
      %v1562 = vunpack.c.h.b16 %v1392
      %v1563 = vunpack.c.l.b16 %v1393
      %v1564 = vunpack.c.h.b16 %v1393
      %v1565 = vunpack.c.l.b16 %v1394
      %v1566 = vunpack.c.h.b16 %v1394
      %v1567 = vunpack.c.l.b16 %v1395
      %v1568 = vunpack.c.h.b16 %v1395
      %v1569 = vunpack.c.l.b16 %v1396
      %v1570 = vunpack.c.h.b16 %v1396
      %v1571 = vunpack.c.l.b16 %v1397
      %v1572 = vunpack.c.h.b16 %v1397
      %v1573 = vunpack.c.l.b16 %v1398
      %v1574 = vunpack.c.h.b16 %v1398
      %v1575 = vunpack.c.l.b16 %v1399
      %v1576 = vunpack.c.h.b16 %v1399
      %v1577 = vunpack.c.l.b16 %v1400
      %v1578 = vunpack.c.h.b16 %v1400
      %v1579 = vunpack.c.l.b16 %v1401
      %v1580 = vunpack.c.h.b16 %v1401
      %v1581 = vunpack.c.l.b16 %v1402
      %v1582 = vunpack.c.h.b16 %v1402
      %v1583 = vunpack.c.l.b16 %v1403
      %v1584 = vunpack.c.h.b16 %v1403
      %v1585 = vunpack.c.l.b16 %v1404
      %v1586 = vunpack.c.h.b16 %v1404
      %v1587 = vunpack.c.l.b16 %v1405
      %v1588 = vunpack.c.h.b16 %v1405
      %v1589 = vunpack.c.l.b16 %v1406
      %v1590 = vunpack.c.h.b16 %v1406
      %v1591 = vunpack.c.l.b16 %v1407
      %v1592 = vunpack.c.h.b16 %v1407
      %v1593 = vunpack.c.l.b16 %v1408
      %v1594 = vunpack.c.h.b16 %v1408
      %v1595 = vunpack.c.l.b16 %v1409
      %v1596 = vunpack.c.h.b16 %v1409
      %v1597 = vunpack.c.l.b16 %v1410
      %v1598 = vunpack.c.h.b16 %v1410
      %v1599 = vunpack.c.l.b16 %v1411
      %v1600 = vunpack.c.h.b16 %v1411
      %v1601 = vunpack.c.l.b16 %v1412
      %v1602 = vunpack.c.h.b16 %v1412
      %v1603 = vunpack.c.l.b16 %v1413
      %v1604 = vunpack.c.h.b16 %v1413
      %v1605 = vunpack.c.l.b16 %v1414
      %v1606 = vunpack.c.h.b16 %v1414
      %v1607 = vunpack.c.l.b16 %v1415
      %v1608 = vunpack.c.h.b16 %v1415
      %v1609 = vunpack.c.l.b16 %v1416
      %v1610 = vunpack.c.h.b16 %v1416
      %v1611 = vunpack.c.l.b16 %v1417
      %v1612 = vunpack.c.h.b16 %v1417
      %v1613 = vunpack.c.l.b16 %v1418
      %v1614 = vunpack.c.h.b16 %v1418
      %v1615 = vunpack.c.l.b16 %v1419
      %v1616 = vunpack.c.h.b16 %v1419
      %v1617 = vunpack.c.l.b16 %v1420
      %v1618 = vunpack.c.h.b16 %v1420
      %v1619 = vunpack.c.l.b16 %v1421
      %v1620 = vunpack.c.h.b16 %v1421
      %v1621 = vunpack.c.l.b16 %v1422
      %v1622 = vunpack.c.h.b16 %v1422
      %v1623 = vunpack.c.l.b16 %v1423
      %v1624 = vunpack.c.h.b16 %v1423
      %v1625 = vunpack.c.l.b16 %v1424
      %v1626 = vunpack.c.h.b16 %v1424
      %v1627 = vunpack.c.l.b16 %v1425
      %v1628 = vunpack.c.h.b16 %v1425
      %v1629 = vunpack.c.l.b16 %v1426
      %v1630 = vunpack.c.h.b16 %v1426
      %v1631 = vpack.c.b16 %v1505, %v1503
      %v1632 = vpack.c.b16 %v1506, %v1504
      %v1633 = vpack.c.b16 %v1509, %v1507
      %v1634 = vpack.c.b16 %v1510, %v1508
      %v1635 = vpack.c.b16 %v1513, %v1511
      %v1636 = vpack.c.b16 %v1514, %v1512
      %v1637 = vpack.c.b16 %v1517, %v1515
      %v1638 = vpack.c.b16 %v1518, %v1516
      %v1639 = vpack.c.b16 %v1521, %v1519
      %v1640 = vpack.c.b16 %v1522, %v1520
      %v1641 = vpack.c.b16 %v1525, %v1523
      %v1642 = vpack.c.b16 %v1526, %v1524
      %v1643 = vpack.c.b16 %v1529, %v1527
      %v1644 = vpack.c.b16 %v1530, %v1528
      %v1645 = vpack.c.b16 %v1533, %v1531
      %v1646 = vpack.c.b16 %v1534, %v1532
      %v1647 = vpack.c.b16 %v1537, %v1535
      %v1648 = vpack.c.b16 %v1538, %v1536
      %v1649 = vpack.c.b16 %v1541, %v1539
      %v1650 = vpack.c.b16 %v1542, %v1540
      %v1651 = vpack.c.b16 %v1545, %v1543
      %v1652 = vpack.c.b16 %v1546, %v1544
      %v1653 = vpack.c.b16 %v1549, %v1547
      %v1654 = vpack.c.b16 %v1550, %v1548
      %v1655 = vpack.c.b16 %v1553, %v1551
      %v1656 = vpack.c.b16 %v1554, %v1552
      %v1657 = vpack.c.b16 %v1557, %v1555
      %v1658 = vpack.c.b16 %v1558, %v1556
      %v1659 = vpack.c.b16 %v1561, %v1559
      %v1660 = vpack.c.b16 %v1562, %v1560
      %v1661 = vpack.c.b16 %v1565, %v1563
      %v1662 = vpack.c.b16 %v1566, %v1564
      %v1663 = vpack.c.b16 %v1569, %v1567
      %v1664 = vpack.c.b16 %v1570, %v1568
      %v1665 = vpack.c.b16 %v1573, %v1571
      %v1666 = vpack.c.b16 %v1574, %v1572
      %v1667 = vpack.c.b16 %v1577, %v1575
      %v1668 = vpack.c.b16 %v1578, %v1576
      %v1669 = vpack.c.b16 %v1581, %v1579
      %v1670 = vpack.c.b16 %v1582, %v1580
      %v1671 = vpack.c.b16 %v1585, %v1583
      %v1672 = vpack.c.b16 %v1586, %v1584
      %v1673 = vpack.c.b16 %v1589, %v1587
      %v1674 = vpack.c.b16 %v1590, %v1588
      %v1675 = vpack.c.b16 %v1593, %v1591
      %v1676 = vpack.c.b16 %v1594, %v1592
      %v1677 = vpack.c.b16 %v1597, %v1595
      %v1678 = vpack.c.b16 %v1598, %v1596
      %v1679 = vpack.c.b16 %v1601, %v1599
      %v1680 = vpack.c.b16 %v1602, %v1600
      %v1681 = vpack.c.b16 %v1605, %v1603
      %v1682 = vpack.c.b16 %v1606, %v1604
      %v1683 = vpack.c.b16 %v1609, %v1607
      %v1684 = vpack.c.b16 %v1610, %v1608
      %v1685 = vpack.c.b16 %v1613, %v1611
      %v1686 = vpack.c.b16 %v1614, %v1612
      %v1687 = vpack.c.b16 %v1617, %v1615
      %v1688 = vpack.c.b16 %v1618, %v1616
      %v1689 = vpack.c.b16 %v1621, %v1619
      %v1690 = vpack.c.b16 %v1622, %v1620
      %v1691 = vpack.c.b16 %v1625, %v1623
      %v1692 = vpack.c.b16 %v1626, %v1624
      %v1693 = vpack.c.b16 %v1629, %v1627
      %v1694 = vpack.c.b16 %v1630, %v1628
      %1759 = vmatprep.subr.bf16.mxu0 %v1632
      %1760 = vmatpush1.bf16.msra.mxu0 %v1631
      %1761 = vmatprep.subr.bf16.mxu0 %v1634
      %1762 = vmatpush1.bf16.msra.mxu0 %v1633
      %1763 = vmatprep.subr.bf16.mxu0 %v1636
      %1764 = vmatpush1.bf16.msra.mxu0 %v1635
      %1765 = vmatprep.subr.bf16.mxu0 %v1638
      %1766 = vmatpush1.bf16.msra.mxu0 %v1637
      %1767 = vmatprep.subr.bf16.mxu0 %v1640
      %1768 = vmatpush1.bf16.msra.mxu0 %v1639
      %1769 = vmatprep.subr.bf16.mxu0 %v1642
      %1770 = vmatpush1.bf16.msra.mxu0 %v1641
      %1771 = vmatprep.subr.bf16.mxu0 %v1644
      %1772 = vmatpush1.bf16.msra.mxu0 %v1643
      %1773 = vmatprep.subr.bf16.mxu0 %v1646
      %1774 = vmatpush1.bf16.msra.mxu0 %v1645
      %1775 = vmatprep.subr.bf16.mxu0 %v1648
      %1776 = vmatpush1.bf16.msra.mxu0 %v1647
      %1777 = vmatprep.subr.bf16.mxu0 %v1650
      %1778 = vmatpush1.bf16.msra.mxu0 %v1649
      %1779 = vmatprep.subr.bf16.mxu0 %v1652
      %1780 = vmatpush1.bf16.msra.mxu0 %v1651
      %1781 = vmatprep.subr.bf16.mxu0 %v1654
      %1782 = vmatpush1.bf16.msra.mxu0 %v1653
      %1783 = vmatprep.subr.bf16.mxu0 %v1656
      %1784 = vmatpush1.bf16.msra.mxu0 %v1655
      %1785 = vmatprep.subr.bf16.mxu0 %v1658
      %1786 = vmatpush1.bf16.msra.mxu0 %v1657
      %1787 = vmatprep.subr.bf16.mxu0 %v1660
      %1788 = vmatpush1.bf16.msra.mxu0 %v1659
      %1789 = vmatprep.subr.bf16.mxu0 %v1662
      %1790 = vmatpush1.bf16.msra.mxu0 %v1661
      %1791 = vmatprep.mubr.bf16.mxu0 %v1332
      %1792 = vmatmul.mubr.bf16.gmra.mrb[0].mxu0 %v1331
      %v1793 = vpop.f32.mrb[0].mxu0
      %v1794 = vadd.f32 %v1432, %v1793
      %v1795 = vpop.f32.mrb[0].mxu0
      %v1796 = vadd.f32 %v1436, %v1795
      %v1797 = vpop.f32.mrb[0].mxu0
      %v1798 = vadd.f32 %v1432, %v1797
      %v1799 = vpop.f32.mrb[0].mxu0
      %v1800 = vadd.f32 %v1436, %v1799
      %1801 = vmatprep.mubr.bf16.mxu0 %v1336
      %1802 = vmatmul.mubr.bf16.gmra.mrb[0].mxu0 %v1335
      %v1803 = vpop.f32.mrb[0].mxu0
      %v1804 = vadd.f32 %v1432, %v1803
      %v1805 = vpop.f32.mrb[0].mxu0
      %v1806 = vadd.f32 %v1436, %v1805
      %v1807 = vpop.f32.mrb[0].mxu0
      %v1808 = vadd.f32 %v1432, %v1807
      %v1809 = vpop.f32.mrb[0].mxu0
      %v1810 = vadd.f32 %v1436, %v1809
      %1811 = vmatprep.mubr.bf16.mxu0 %v1340
      %1812 = vmatmul.mubr.bf16.gmra.mrb[0].mxu0 %v1339
      %v1813 = vpop.f32.mrb[0].mxu0
      %v1814 = vadd.f32 %v1432, %v1813
      %v1815 = vpop.f32.mrb[0].mxu0
      %v1816 = vadd.f32 %v1436, %v1815
      %v1817 = vpop.f32.mrb[0].mxu0
      %v1818 = vadd.f32 %v1432, %v1817
      %v1819 = vpop.f32.mrb[0].mxu0
      %v1820 = vadd.f32 %v1436, %v1819
      %1821 = vmatprep.mubr.bf16.mxu0 %v1344
      %1822 = vmatmul.mubr.bf16.gmra.mrb[0].mxu0 %v1343
      %v1823 = vpop.f32.mrb[0].mxu0
      %v1824 = vadd.f32 %v1432, %v1823
      %v1825 = vpop.f32.mrb[0].mxu0
      %v1826 = vadd.f32 %v1436, %v1825
      %v1827 = vpop.f32.mrb[0].mxu0
      %v1828 = vadd.f32 %v1432, %v1827
      %v1829 = vpop.f32.mrb[0].mxu0
      %v1830 = vadd.f32 %v1436, %v1829
      %1831 = vmatprep.mubr.bf16.mxu0 %v1348
      %1832 = vmatmul.mubr.bf16.gmra.mrb[0].mxu0 %v1347
      %v1833 = vpop.f32.mrb[0].mxu0
      %v1834 = vadd.f32 %v1432, %v1833
      %v1835 = vpop.f32.mrb[0].mxu0
      %v1836 = vadd.f32 %v1436, %v1835
      %v1837 = vpop.f32.mrb[0].mxu0
      %v1838 = vadd.f32 %v1432, %v1837
      %v1839 = vpop.f32.mrb[0].mxu0
      %v1840 = vadd.f32 %v1436, %v1839
      %1841 = vmatprep.mubr.bf16.mxu0 %v1352
      %1842 = vmatmul.mubr.bf16.gmra.mrb[0].mxu0 %v1351
      %v1843 = vpop.f32.mrb[0].mxu0
      %v1844 = vadd.f32 %v1432, %v1843
      %v1845 = vpop.f32.mrb[0].mxu0
      %v1846 = vadd.f32 %v1436, %v1845
      %v1847 = vpop.f32.mrb[0].mxu0
      %v1848 = vadd.f32 %v1432, %v1847
      %v1849 = vpop.f32.mrb[0].mxu0
      %v1850 = vadd.f32 %v1436, %v1849
      %1851 = vmatprep.mubr.bf16.mxu0 %v1356
      %1852 = vmatmul.mubr.bf16.gmra.mrb[0].mxu0 %v1355
      %v1853 = vpop.f32.mrb[0].mxu0
      %v1854 = vadd.f32 %v1432, %v1853
      %v1855 = vpop.f32.mrb[0].mxu0
      %v1856 = vadd.f32 %v1436, %v1855
      %v1857 = vpop.f32.mrb[0].mxu0
      %v1858 = vadd.f32 %v1432, %v1857
      %v1859 = vpop.f32.mrb[0].mxu0
      %v1860 = vadd.f32 %v1436, %v1859
      %1861 = vmatprep.mubr.bf16.mxu0 %v1360
      %1862 = vmatmul.mubr.bf16.gmra.mrb[0].mxu0 %v1359
      %v1863 = vpop.f32.mrb[0].mxu0
      %v1864 = vadd.f32 %v1432, %v1863
      %v1865 = vpop.f32.mrb[0].mxu0
      %v1866 = vadd.f32 %v1436, %v1865
      %v1867 = vpop.f32.mrb[0].mxu0
      %v1868 = vadd.f32 %v1432, %v1867
      %v1869 = vpop.f32.mrb[0].mxu0
      %v1870 = vadd.f32 %v1436, %v1869
      %1871 = vdwg.mxu0
      %1872 = vmatprep.subr.bf16.mxu0 %v1664
      %1873 = vmatpush1.bf16.msra.mxu0 %v1663
      %1874 = vmatprep.subr.bf16.mxu0 %v1666
      %1875 = vmatpush1.bf16.msra.mxu0 %v1665
      %1876 = vmatprep.subr.bf16.mxu0 %v1668
      %1877 = vmatpush1.bf16.msra.mxu0 %v1667
      %1878 = vmatprep.subr.bf16.mxu0 %v1670
      %1879 = vmatpush1.bf16.msra.mxu0 %v1669
      %1880 = vmatprep.subr.bf16.mxu0 %v1672
      %1881 = vmatpush1.bf16.msra.mxu0 %v1671
      %1882 = vmatprep.subr.bf16.mxu0 %v1674
      %1883 = vmatpush1.bf16.msra.mxu0 %v1673
      %1884 = vmatprep.subr.bf16.mxu0 %v1676
      %1885 = vmatpush1.bf16.msra.mxu0 %v1675
      %1886 = vmatprep.subr.bf16.mxu0 %v1678
      %1887 = vmatpush1.bf16.msra.mxu0 %v1677
      %1888 = vmatprep.subr.bf16.mxu0 %v1680
      %1889 = vmatpush1.bf16.msra.mxu0 %v1679
      %1890 = vmatprep.subr.bf16.mxu0 %v1682
      %1891 = vmatpush1.bf16.msra.mxu0 %v1681
      %1892 = vmatprep.subr.bf16.mxu0 %v1684
      %1893 = vmatpush1.bf16.msra.mxu0 %v1683
      %1894 = vmatprep.subr.bf16.mxu0 %v1686
      %1895 = vmatpush1.bf16.msra.mxu0 %v1685
      %1896 = vmatprep.subr.bf16.mxu0 %v1688
      %1897 = vmatpush1.bf16.msra.mxu0 %v1687
      %1898 = vmatprep.subr.bf16.mxu0 %v1690
      %1899 = vmatpush1.bf16.msra.mxu0 %v1689
      %1900 = vmatprep.subr.bf16.mxu0 %v1692
      %1901 = vmatpush1.bf16.msra.mxu0 %v1691
      %1902 = vmatprep.subr.bf16.mxu0 %v1694
      %1903 = vmatpush1.bf16.msra.mxu0 %v1693
      %1904 = vmatprep.mubr.bf16.mxu0 %v1334
      %1905 = vmatmul.mubr.bf16.gmra.mrb[0].mxu0 %v1333
      %v1906 = vpop.f32.mrb[0].mxu0
      %v1907 = vadd.f32 %v1794, %v1906
      %v1908 = vpop.f32.mrb[0].mxu0
      %v1909 = vadd.f32 %v1796, %v1908
      %v1910 = vpop.f32.mrb[0].mxu0
      %v1911 = vadd.f32 %v1798, %v1910
      %v1912 = vpop.f32.mrb[0].mxu0
      %v1913 = vadd.f32 %v1800, %v1912
      %1914 = vmatprep.mubr.bf16.mxu0 %v1338
      %1915 = vmatmul.mubr.bf16.gmra.mrb[0].mxu0 %v1337
      %v1916 = vpop.f32.mrb[0].mxu0
      %v1917 = vadd.f32 %v1804, %v1916
      %v1918 = vpop.f32.mrb[0].mxu0
      %v1919 = vadd.f32 %v1806, %v1918
      %v1920 = vpop.f32.mrb[0].mxu0
      %v1921 = vadd.f32 %v1808, %v1920
      %v1922 = vpop.f32.mrb[0].mxu0
      %v1923 = vadd.f32 %v1810, %v1922
      %1924 = vmatprep.mubr.bf16.mxu0 %v1342
      %1925 = vmatmul.mubr.bf16.gmra.mrb[0].mxu0 %v1341
      %v1926 = vpop.f32.mrb[0].mxu0
      %v1927 = vadd.f32 %v1814, %v1926
      %v1928 = vpop.f32.mrb[0].mxu0
      %v1929 = vadd.f32 %v1816, %v1928
      %v1930 = vpop.f32.mrb[0].mxu0
      %v1931 = vadd.f32 %v1818, %v1930
      %v1932 = vpop.f32.mrb[0].mxu0
      %v1933 = vadd.f32 %v1820, %v1932
      %1934 = vmatprep.mubr.bf16.mxu0 %v1346
      %1935 = vmatmul.mubr.bf16.gmra.mrb[0].mxu0 %v1345
      %v1936 = vpop.f32.mrb[0].mxu0
      %v1937 = vadd.f32 %v1824, %v1936
      %v1938 = vpop.f32.mrb[0].mxu0
      %v1939 = vadd.f32 %v1826, %v1938
      %v1940 = vpop.f32.mrb[0].mxu0
      %v1941 = vadd.f32 %v1828, %v1940
      %v1942 = vpop.f32.mrb[0].mxu0
      %v1943 = vadd.f32 %v1830, %v1942
      %1944 = vmatprep.mubr.bf16.mxu0 %v1350
      %1945 = vmatmul.mubr.bf16.gmra.mrb[0].mxu0 %v1349
      %v1946 = vpop.f32.mrb[0].mxu0
      %v1947 = vadd.f32 %v1834, %v1946
      %v1948 = vpop.f32.mrb[0].mxu0
      %v1949 = vadd.f32 %v1836, %v1948
      %v1950 = vpop.f32.mrb[0].mxu0
      %v1951 = vadd.f32 %v1838, %v1950
      %v1952 = vpop.f32.mrb[0].mxu0
      %v1953 = vadd.f32 %v1840, %v1952
      %1954 = vmatprep.mubr.bf16.mxu0 %v1354
      %1955 = vmatmul.mubr.bf16.gmra.mrb[0].mxu0 %v1353
      %v1956 = vpop.f32.mrb[0].mxu0
      %v1957 = vadd.f32 %v1844, %v1956
      %v1958 = vpop.f32.mrb[0].mxu0
      %v1959 = vadd.f32 %v1846, %v1958
      %v1960 = vpop.f32.mrb[0].mxu0
      %v1961 = vadd.f32 %v1848, %v1960
      %v1962 = vpop.f32.mrb[0].mxu0
      %v1963 = vadd.f32 %v1850, %v1962
      %1964 = vmatprep.mubr.bf16.mxu0 %v1358
      %1965 = vmatmul.mubr.bf16.gmra.mrb[0].mxu0 %v1357
      %v1966 = vpop.f32.mrb[0].mxu0
      %v1967 = vadd.f32 %v1854, %v1966
      %v1968 = vpop.f32.mrb[0].mxu0
      %v1969 = vadd.f32 %v1856, %v1968
      %v1970 = vpop.f32.mrb[0].mxu0
      %v1971 = vadd.f32 %v1858, %v1970
      %v1972 = vpop.f32.mrb[0].mxu0
      %v1973 = vadd.f32 %v1860, %v1972
      %1974 = vmatprep.mubr.bf16.mxu0 %v1362
      %1975 = vmatmul.mubr.bf16.gmra.mrb[0].mxu0 %v1361
      %v1976 = vpop.f32.mrb[0].mxu0
      %v1977 = vadd.f32 %v1864, %v1976
      %v1978 = vpop.f32.mrb[0].mxu0
      %v1979 = vadd.f32 %v1866, %v1978
      %v1980 = vpop.f32.mrb[0].mxu0
      %v1981 = vadd.f32 %v1868, %v1980
      %v1982 = vpop.f32.mrb[0].mxu0
      %v1983 = vadd.f32 %v1870, %v1982
      %1984 = vdwg.mxu0
      %vm1985 = vcmp.gt.f32.partialorder %v1907, 0.0
      %vm1986 = vcmp.gt.f32.partialorder %v1909, 0.0
      %vm1987 = vcmp.gt.f32.partialorder %v1911, 0.0
      %vm1988 = vcmp.gt.f32.partialorder %v1913, 0.0
      %vm1989 = vcmp.gt.f32.partialorder %v1917, 0.0
      %vm1990 = vcmp.gt.f32.partialorder %v1919, 0.0
      %vm1991 = vcmp.gt.f32.partialorder %v1921, 0.0
      %vm1992 = vcmp.gt.f32.partialorder %v1923, 0.0
      %vm1993 = vcmp.gt.f32.partialorder %v1927, 0.0
      %vm1994 = vcmp.gt.f32.partialorder %v1929, 0.0
      %vm1995 = vcmp.gt.f32.partialorder %v1931, 0.0
      %vm1996 = vcmp.gt.f32.partialorder %v1933, 0.0
      %vm1997 = vcmp.gt.f32.partialorder %v1937, 0.0
      %vm1998 = vcmp.gt.f32.partialorder %v1939, 0.0
      %vm1999 = vcmp.gt.f32.partialorder %v1941, 0.0
      %vm2000 = vcmp.gt.f32.partialorder %v1943, 0.0
      %vm2001 = vcmp.gt.f32.partialorder %v1947, 0.0
      %vm2002 = vcmp.gt.f32.partialorder %v1949, 0.0
      %vm2003 = vcmp.gt.f32.partialorder %v1951, 0.0
      %vm2004 = vcmp.gt.f32.partialorder %v1953, 0.0
      %vm2005 = vcmp.gt.f32.partialorder %v1957, 0.0
      %vm2006 = vcmp.gt.f32.partialorder %v1959, 0.0
      %vm2007 = vcmp.gt.f32.partialorder %v1961, 0.0
      %vm2008 = vcmp.gt.f32.partialorder %v1963, 0.0
      %vm2009 = vcmp.gt.f32.partialorder %v1967, 0.0
      %vm2010 = vcmp.gt.f32.partialorder %v1969, 0.0
      %vm2011 = vcmp.gt.f32.partialorder %v1971, 0.0
      %vm2012 = vcmp.gt.f32.partialorder %v1973, 0.0
      %vm2013 = vcmp.gt.f32.partialorder %v1977, 0.0
      %vm2014 = vcmp.gt.f32.partialorder %v1979, 0.0
      %vm2015 = vcmp.gt.f32.partialorder %v1981, 0.0
      %vm2016 = vcmp.gt.f32.partialorder %v1983, 0.0
      %v2017 = vmul.f32 %v1907, 0.2
      %v2018 = vmul.f32 %v1909, 0.2
      %v2019 = vmul.f32 %v1911, 0.2
      %v2020 = vmul.f32 %v1913, 0.2
      %v2021 = vmul.f32 %v1917, 0.2
      %v2022 = vmul.f32 %v1919, 0.2
      %v2023 = vmul.f32 %v1921, 0.2
      %v2024 = vmul.f32 %v1923, 0.2
      %v2025 = vmul.f32 %v1927, 0.2
      %v2026 = vmul.f32 %v1929, 0.2
      %v2027 = vmul.f32 %v1931, 0.2
      %v2028 = vmul.f32 %v1933, 0.2
      %v2029 = vmul.f32 %v1937, 0.2
      %v2030 = vmul.f32 %v1939, 0.2
      %v2031 = vmul.f32 %v1941, 0.2
      %v2032 = vmul.f32 %v1943, 0.2
      %v2033 = vmul.f32 %v1947, 0.2
      %v2034 = vmul.f32 %v1949, 0.2
      %v2035 = vmul.f32 %v1951, 0.2
      %v2036 = vmul.f32 %v1953, 0.2
      %v2037 = vmul.f32 %v1957, 0.2
      %v2038 = vmul.f32 %v1959, 0.2
      %v2039 = vmul.f32 %v1961, 0.2
      %v2040 = vmul.f32 %v1963, 0.2
      %v2041 = vmul.f32 %v1967, 0.2
      %v2042 = vmul.f32 %v1969, 0.2
      %v2043 = vmul.f32 %v1971, 0.2
      %v2044 = vmul.f32 %v1973, 0.2
      %v2045 = vmul.f32 %v1977, 0.2
      %v2046 = vmul.f32 %v1979, 0.2
      %v2047 = vmul.f32 %v1981, 0.2
      %v2048 = vmul.f32 %v1983, 0.2
      %v2049 = vsel %vm1985, %v1907, %v2017
      %v2050 = vsel %vm1986, %v1909, %v2018
      %v2051 = vsel %vm1987, %v1911, %v2019
      %v2052 = vsel %vm1988, %v1913, %v2020
      %v2053 = vsel %vm1989, %v1917, %v2021
      %v2054 = vsel %vm1990, %v1919, %v2022
      %v2055 = vsel %vm1991, %v1921, %v2023
      %v2056 = vsel %vm1992, %v1923, %v2024
      %v2057 = vsel %vm1993, %v1927, %v2025
      %v2058 = vsel %vm1994, %v1929, %v2026
      %v2059 = vsel %vm1995, %v1931, %v2027
      %v2060 = vsel %vm1996, %v1933, %v2028
      %v2061 = vsel %vm1997, %v1937, %v2029
      %v2062 = vsel %vm1998, %v1939, %v2030
      %v2063 = vsel %vm1999, %v1941, %v2031
      %v2064 = vsel %vm2000, %v1943, %v2032
      %v2065 = vsel %vm2001, %v1947, %v2033
      %v2066 = vsel %vm2002, %v1949, %v2034
      %v2067 = vsel %vm2003, %v1951, %v2035
      %v2068 = vsel %vm2004, %v1953, %v2036
      %v2069 = vsel %vm2005, %v1957, %v2037
      %v2070 = vsel %vm2006, %v1959, %v2038
      %v2071 = vsel %vm2007, %v1961, %v2039
      %v2072 = vsel %vm2008, %v1963, %v2040
      %v2073 = vsel %vm2009, %v1967, %v2041
      %v2074 = vsel %vm2010, %v1969, %v2042
      %v2075 = vsel %vm2011, %v1971, %v2043
      %v2076 = vsel %vm2012, %v1973, %v2044
      %v2077 = vsel %vm2013, %v1977, %v2045
      %v2078 = vsel %vm2014, %v1979, %v2046
      %v2079 = vsel %vm2015, %v1981, %v2047
      %v2080 = vsel %vm2016, %v1983, %v2048
      %v2081 = vld [vmem:[%s5] sm:$0x3]
      %v2083 = vlaneseq
      %v2084 = vshrl.u32 %v2083, 7
      %v2085 = vsub.s32 0, %v2084
      %v2086 = vrot.slane %v2081, %v2085
      %v2087 = vlaneseq
      %v2088 = vshrl.u32 %v2087, 7
      %v2089 = vsub.s32 1, %v2088
      %v2090 = vrot.slane %v2081, %v2089
      %v2093 = vmul.f32 %v2049, %v2086
      %v2094 = vmul.f32 %v2050, %v2090
      %v2095 = vmul.f32 %v2051, %v2086
      %v2096 = vmul.f32 %v2052, %v2090
      %v2097 = vmul.f32 %v2053, %v2086
      %v2098 = vmul.f32 %v2054, %v2090
      %v2099 = vmul.f32 %v2055, %v2086
      %v2100 = vmul.f32 %v2056, %v2090
      %v2101 = vmul.f32 %v2057, %v2086
      %v2102 = vmul.f32 %v2058, %v2090
      %v2103 = vmul.f32 %v2059, %v2086
      %v2104 = vmul.f32 %v2060, %v2090
      %v2105 = vmul.f32 %v2061, %v2086
      %v2106 = vmul.f32 %v2062, %v2090
      %v2107 = vmul.f32 %v2063, %v2086
      %v2108 = vmul.f32 %v2064, %v2090
      %v2109 = vmul.f32 %v2065, %v2086
      %v2110 = vmul.f32 %v2066, %v2090
      %v2111 = vmul.f32 %v2067, %v2086
      %v2112 = vmul.f32 %v2068, %v2090
      %v2113 = vmul.f32 %v2069, %v2086
      %v2114 = vmul.f32 %v2070, %v2090
      %v2115 = vmul.f32 %v2071, %v2086
      %v2116 = vmul.f32 %v2072, %v2090
      %v2117 = vmul.f32 %v2073, %v2086
      %v2118 = vmul.f32 %v2074, %v2090
      %v2119 = vmul.f32 %v2075, %v2086
      %v2120 = vmul.f32 %v2076, %v2090
      %v2121 = vmul.f32 %v2077, %v2086
      %v2122 = vmul.f32 %v2078, %v2090
      %v2123 = vmul.f32 %v2079, %v2086
      %v2124 = vmul.f32 %v2080, %v2090
      %v2125 = vadd.f32 %v2093, %v2094
      %2126 = vadd.xlane.f32.xlu0 %v2125
      %v2127 = vpop.xlane.xlu0 %2126
      %v2128 = vadd.f32 %v2095, %v2096
      %2129 = vadd.xlane.f32.xlu0 %v2128
      %v2130 = vpop.xlane.xlu0 %2129
      %v2131 = vadd.f32 %v2097, %v2098
      %2132 = vadd.xlane.f32.xlu0 %v2131
      %v2133 = vpop.xlane.xlu0 %2132
      %v2134 = vadd.f32 %v2099, %v2100
      %2135 = vadd.xlane.f32.xlu0 %v2134
      %v2136 = vpop.xlane.xlu0 %2135
      %v2137 = vadd.f32 %v2101, %v2102
      %2138 = vadd.xlane.f32.xlu0 %v2137
      %v2139 = vpop.xlane.xlu0 %2138
      %v2140 = vadd.f32 %v2103, %v2104
      %2141 = vadd.xlane.f32.xlu0 %v2140
      %v2142 = vpop.xlane.xlu0 %2141
      %v2143 = vadd.f32 %v2105, %v2106
      %2144 = vadd.xlane.f32.xlu0 %v2143
      %v2145 = vpop.xlane.xlu0 %2144
      %v2146 = vadd.f32 %v2107, %v2108
      %2147 = vadd.xlane.f32.xlu0 %v2146
      %v2148 = vpop.xlane.xlu0 %2147
      %v2149 = vadd.f32 %v2109, %v2110
      %2150 = vadd.xlane.f32.xlu0 %v2149
      %v2151 = vpop.xlane.xlu0 %2150
      %v2152 = vadd.f32 %v2111, %v2112
      %2153 = vadd.xlane.f32.xlu0 %v2152
      %v2154 = vpop.xlane.xlu0 %2153
      %v2155 = vadd.f32 %v2113, %v2114
      %2156 = vadd.xlane.f32.xlu0 %v2155
      %v2157 = vpop.xlane.xlu0 %2156
      %v2158 = vadd.f32 %v2115, %v2116
      %2159 = vadd.xlane.f32.xlu0 %v2158
      %v2160 = vpop.xlane.xlu0 %2159
      %v2161 = vadd.f32 %v2117, %v2118
      %2162 = vadd.xlane.f32.xlu0 %v2161
      %v2163 = vpop.xlane.xlu0 %2162
      %v2164 = vadd.f32 %v2119, %v2120
      %2165 = vadd.xlane.f32.xlu0 %v2164
      %v2166 = vpop.xlane.xlu0 %2165
      %v2167 = vadd.f32 %v2121, %v2122
      %2168 = vadd.xlane.f32.xlu0 %v2167
      %v2169 = vpop.xlane.xlu0 %2168
      %v2170 = vadd.f32 %v2123, %v2124
      %2171 = vadd.xlane.f32.xlu0 %v2170
      %v2172 = vpop.xlane.xlu0 %2171
      %s2173 = sld [smem:[#allocation3]]
      %v2174 = vstv %s2173
      %v2175 = vadd.f32 %v2127, %v2174
      %v2176 = vadd.f32 %v2130, %v2174
      %v2177 = vadd.f32 %v2133, %v2174
      %v2178 = vadd.f32 %v2136, %v2174
      %v2179 = vadd.f32 %v2139, %v2174
      %v2180 = vadd.f32 %v2142, %v2174
      %v2181 = vadd.f32 %v2145, %v2174
      %v2182 = vadd.f32 %v2148, %v2174
      %v2183 = vadd.f32 %v2151, %v2174
      %v2184 = vadd.f32 %v2154, %v2174
      %v2185 = vadd.f32 %v2157, %v2174
      %v2186 = vadd.f32 %v2160, %v2174
      %v2187 = vadd.f32 %v2163, %v2174
      %v2188 = vadd.f32 %v2166, %v2174
      %v2189 = vadd.f32 %v2169, %v2174
      %v2190 = vadd.f32 %v2172, %v2174
      %v2191 = vxor.u32 %v2175, 2147483648
      %v2192 = vxor.u32 %v2176, 2147483648
      %v2193 = vxor.u32 %v2177, 2147483648
      %v2194 = vxor.u32 %v2178, 2147483648
      %v2195 = vxor.u32 %v2179, 2147483648
      %v2196 = vxor.u32 %v2180, 2147483648
      %v2197 = vxor.u32 %v2181, 2147483648
      %v2198 = vxor.u32 %v2182, 2147483648
      %v2199 = vxor.u32 %v2183, 2147483648
      %v2200 = vxor.u32 %v2184, 2147483648
      %v2201 = vxor.u32 %v2185, 2147483648
      %v2202 = vxor.u32 %v2186, 2147483648
      %v2203 = vxor.u32 %v2187, 2147483648
      %v2204 = vxor.u32 %v2188, 2147483648
      %v2205 = vxor.u32 %v2189, 2147483648
      %v2206 = vxor.u32 %v2190, 2147483648
      %v2207 = vmul.f32 %v2191, 1.442695
      %v2208 = vpow.pop %v2207
      %v2209 = vmul.f32 %v2192, 1.442695
      %v2210 = vpow.pop %v2209
      %v2211 = vmul.f32 %v2193, 1.442695
      %v2212 = vpow.pop %v2211
      %v2213 = vmul.f32 %v2194, 1.442695
      %v2214 = vpow.pop %v2213
      %v2215 = vmul.f32 %v2195, 1.442695
      %v2216 = vpow.pop %v2215
      %v2217 = vmul.f32 %v2196, 1.442695
      %v2218 = vpow.pop %v2217
      %v2219 = vmul.f32 %v2197, 1.442695
      %v2220 = vpow.pop %v2219
      %v2221 = vmul.f32 %v2198, 1.442695
      %v2222 = vpow.pop %v2221
      %v2223 = vmul.f32 %v2199, 1.442695
      %v2224 = vpow.pop %v2223
      %v2225 = vmul.f32 %v2200, 1.442695
      %v2226 = vpow.pop %v2225
      %v2227 = vmul.f32 %v2201, 1.442695
      %v2228 = vpow.pop %v2227
      %v2229 = vmul.f32 %v2202, 1.442695
      %v2230 = vpow.pop %v2229
      %v2231 = vmul.f32 %v2203, 1.442695
      %v2232 = vpow.pop %v2231
      %v2233 = vmul.f32 %v2204, 1.442695
      %v2234 = vpow.pop %v2233
      %v2235 = vmul.f32 %v2205, 1.442695
      %v2236 = vpow.pop %v2235
      %v2237 = vmul.f32 %v2206, 1.442695
      %v2238 = vpow.pop %v2237
      %v2239 = vadd.f32 %v2208, 1.0
      %v2240 = vadd.f32 %v2210, 1.0
      %v2241 = vadd.f32 %v2212, 1.0
      %v2242 = vadd.f32 %v2214, 1.0
      %v2243 = vadd.f32 %v2216, 1.0
      %v2244 = vadd.f32 %v2218, 1.0
      %v2245 = vadd.f32 %v2220, 1.0
      %v2246 = vadd.f32 %v2222, 1.0
      %v2247 = vadd.f32 %v2224, 1.0
      %v2248 = vadd.f32 %v2226, 1.0
      %v2249 = vadd.f32 %v2228, 1.0
      %v2250 = vadd.f32 %v2230, 1.0
      %v2251 = vadd.f32 %v2232, 1.0
      %v2252 = vadd.f32 %v2234, 1.0
      %v2253 = vadd.f32 %v2236, 1.0
      %v2254 = vadd.f32 %v2238, 1.0
      %v2255 = vrcp.pop %v2239
      %v2256 = vmul.f32 1.0, %v2255
      %v2257 = vrcp.pop %v2240
      %v2258 = vmul.f32 1.0, %v2257
      %v2259 = vrcp.pop %v2241
      %v2260 = vmul.f32 1.0, %v2259
      %v2261 = vrcp.pop %v2242
      %v2262 = vmul.f32 1.0, %v2261
      %v2263 = vrcp.pop %v2243
      %v2264 = vmul.f32 1.0, %v2263
      %v2265 = vrcp.pop %v2244
      %v2266 = vmul.f32 1.0, %v2265
      %v2267 = vrcp.pop %v2245
      %v2268 = vmul.f32 1.0, %v2267
      %v2269 = vrcp.pop %v2246
      %v2270 = vmul.f32 1.0, %v2269
      %v2271 = vrcp.pop %v2247
      %v2272 = vmul.f32 1.0, %v2271
      %v2273 = vrcp.pop %v2248
      %v2274 = vmul.f32 1.0, %v2273
      %v2275 = vrcp.pop %v2249
      %v2276 = vmul.f32 1.0, %v2275
      %v2277 = vrcp.pop %v2250
      %v2278 = vmul.f32 1.0, %v2277
      %v2279 = vrcp.pop %v2251
      %v2280 = vmul.f32 1.0, %v2279
      %v2281 = vrcp.pop %v2252
      %v2282 = vmul.f32 1.0, %v2281
      %v2283 = vrcp.pop %v2253
      %v2284 = vmul.f32 1.0, %v2283
      %v2285 = vrcp.pop %v2254
      %v2286 = vmul.f32 1.0, %v2285
      %vm2287 = vcmask 7168
      %2288 = vst.msk [vmem:[%s7] sm:$0xff] %vm2287, %v2256
      %2289 = vst.msk [vmem:[%s7 + $0x8] sm:$0xff] %vm2287, %v2258
      %2290 = vst.msk [vmem:[%s7 + $0x10] sm:$0xff] %vm2287, %v2260
      %2291 = vst.msk [vmem:[%s7 + $0x18] sm:$0xff] %vm2287, %v2262
      %2292 = vst.msk [vmem:[%s7 + $0x20] sm:$0xff] %vm2287, %v2264
      %2293 = vst.msk [vmem:[%s7 + $0x28] sm:$0xff] %vm2287, %v2266
      %2294 = vst.msk [vmem:[%s7 + $0x30] sm:$0xff] %vm2287, %v2268
      %2295 = vst.msk [vmem:[%s7 + $0x38] sm:$0xff] %vm2287, %v2270
      %2296 = vst.msk [vmem:[%s7 + $0x40] sm:$0xff] %vm2287, %v2272
      %2297 = vst.msk [vmem:[%s7 + $0x48] sm:$0xff] %vm2287, %v2274
      %2298 = vst.msk [vmem:[%s7 + $0x50] sm:$0xff] %vm2287, %v2276
      %2299 = vst.msk [vmem:[%s7 + $0x58] sm:$0xff] %vm2287, %v2278
      %2300 = vst.msk [vmem:[%s7 + $0x60] sm:$0xff] %vm2287, %v2280
      %2301 = vst.msk [vmem:[%s7 + $0x68] sm:$0xff] %vm2287, %v2282
      %2302 = vst.msk [vmem:[%s7 + $0x70] sm:$0xff] %vm2287, %v2284
      %2303 = vst.msk [vmem:[%s7 + $0x78] sm:$0xff] %vm2287, %v2286
    $region49: #{tpu_custom_call.1} parent=1 // pred_fallthru
      _
    // Predicated region
    $region50: #{tpu_custom_call.1} parent=1 // pred_check
      _
    $region51: #{tpu_custom_call.1} parent=1 // pred_check_branch
      %2305 = sbr.rel (0) target = $region53
    $region52: #{tpu_custom_call.1} parent=1 // pred_region
      _
    $region53: #{tpu_custom_call.1} parent=1 // pred_fallthru
      _
    // Predicated region
    $region54: #{tpu_custom_call.1} parent=1 // pred_check
      _
    $region55: #{tpu_custom_call.1} parent=1 // pred_check_branch
      %2307 = sbr.rel (0) target = $region57
    $region56: #{tpu_custom_call.1} parent=1 // pred_region
      _
    $region57: #{tpu_custom_call.1} parent=1 // pred_fallthru
      _
    %2308 = vsyncpa [#allocation5], 1
    %2309 = vsyncpa [#allocation7], 1

// kernel: tpu_custom_call.1
$region0: #{tpu_custom_call.1}
  #allocation0 [shape = 'u32[]', space=smem, size = 0x4, offset = 0x4, fixed_abs, tag = 'smem constant byte address 0x4 - core index']
  #allocation1 [shape = 'u32[144,128]{1,0:T(1,128)}', space=vmem, size = 0x12000, scoped, tag = 'internal scratch']
  #allocation2 [shape = 'f32[128,512]{1,0:T(8,128)}', space=vmem, size = 0x40000, scoped, tag = 'scratch operand']
  #allocation3 [shape = 'f32[1,1]{1,0:T(1,128)S(6)}', space=smem, size = 0x200, scoped, tag = 'scoped memory for tpu_custom_call.1']
  %s0 = inlined_call_operand.hbm [shape: f32[128,256], index: 0, kind: input, shape index: {}]
  %s1 = inlined_call_operand.hbm [shape: bf16[256,512], index: 1, kind: input, shape index: {}]
  %s2 = inlined_call_operand.vmem [shape: f32[1,512], index: 2, kind: input, shape index: {}]
  %s3 = inlined_call_operand.hbm [shape: bf16[512,256], index: 3, kind: input, shape index: {}]
  %s4 = inlined_call_operand.vmem [shape: f32[1,256], index: 4, kind: input, shape index: {}]
  %s5 = inlined_call_operand.vmem [shape: f32[1,256], index: 5, kind: input, shape index: {}]
  %s6 = inlined_call_operand.<no memory space> [shape: f32[1,1], index: 6, kind: input, shape index: {}]
  %s7 = inlined_call_operand.vmem [shape: f32[128,1], index: 7, kind: output, shape index: {}]
  %s8 = sld [smem:[#allocation0]]
  $region58: #{tpu_custom_call.1} parent=0
    _
  %s10 = ssub.s32 1, %s8
  %s11 = scalar_select 0, %s10, %s8
  %12 = sst [smem:[#allocation3]] %s6
  $region1: #{tpu_custom_call.1} parent=0
    #allocation4 [shape = 'u8[131072]{0}', space=vmem, size = 0x20000, scoped, tag = 'input window, operand 0, single buffered']
    #allocation5 [shape = 's32[1]{0}', space=sflag, size = 0x4, scoped, tag = 'scoped memory for tpu_custom_call.1']
    #allocation6 [shape = 'u8[262144]{0}', space=vmem, size = 0x40000, scoped, tag = 'input window, operand 1, single buffered']
    #allocation7 [shape = 's32[1]{0}', space=sflag, size = 0x4, scoped, tag = 'scoped memory for tpu_custom_call.1']
    #allocation8 [shape = 'u8[262144]{0}', space=vmem, size = 0x40000, scoped, tag = 'input window, operand 3, single buffered']
    %13 = vsyncpa [#allocation5], 0
    %14 = vsyncpa [#allocation7], 0
    // Predicated region
    $region2: #{tpu_custom_call.1} parent=1 // pred_check
      _
    $region3: #{tpu_custom_call.1} parent=1 // pred_check_branch
      %16 = sbr.rel (0) target = $region5
    $region4: #{tpu_custom_call.1} parent=1 // pred_region
      %s18 = ssub.s32 4096, 4096
      %19 = vsyncadd [#allocation5], %s18
      %s20 = sshll.u32 [#allocation4], 4
      %s21 = int_to_ptr.vmem [resolvable:$true] %s20
      %26 = dma.hbm_to_vmem [thread:$0]  %s0, 4096, %s21, [#allocation5], 256, 256, 16
    $region5: #{tpu_custom_call.1} parent=1 // pred_fallthru
      _
    // Predicated region
    $region6: #{tpu_custom_call.1} parent=1 // pred_check
      _
    $region7: #{tpu_custom_call.1} parent=1 // pred_check_branch
      %28 = sbr.rel (0) target = $region9
    $region8: #{tpu_custom_call.1} parent=1 // pred_region
      %s30 = ssub.s32 8192, 8192
      %31 = vsyncadd [#allocation7], %s30
      %s32 = sshll.u32 [#allocation6], 4
      %s33 = int_to_ptr.vmem [resolvable:$true] %s32
      %38 = dma.hbm_to_vmem [thread:$0]  %s1, 8192, %s33, [#allocation7], 256, 256, 16
    $region9: #{tpu_custom_call.1} parent=1 // pred_fallthru
      _
    // Predicated region
    $region10: #{tpu_custom_call.1} parent=1 // pred_check
      _
    $region11: #{tpu_custom_call.1} parent=1 // pred_check_branch
      %40 = sbr.rel (0) target = $region13
    $region12: #{tpu_custom_call.1} parent=1 // pred_region
      _
    $region13: #{tpu_custom_call.1} parent=1 // pred_fallthru
      _
    // Predicated region
    $region14: #{tpu_custom_call.1} parent=1 // pred_check
      _
    $region15: #{tpu_custom_call.1} parent=1 // pred_check_branch
      %42 = sbr.rel (0) target = $region17
    $region16: #{tpu_custom_call.1} parent=1 // pred_region
      %s44 = ssub.s32 8192, 8192
      %45 = vsyncadd [#allocation7], %s44
      %s46 = sshll.u32 [#allocation8], 4
      %s47 = int_to_ptr.vmem [resolvable:$true] %s46
      %52 = dma.hbm_to_vmem [thread:$0]  %s3, 8192, %s47, [#allocation7], 128, 128, 8
    $region17: #{tpu_custom_call.1} parent=1 // pred_fallthru
      _
    // Predicated region
    $region18: #{tpu_custom_call.1} parent=1 // pred_check
      _
    $region19: #{tpu_custom_call.1} parent=1 // pred_check_branch
      %54 = sbr.rel (0) target = $region21
    $region20: #{tpu_custom_call.1} parent=1 // pred_region
      _
    $region21: #{tpu_custom_call.1} parent=1 // pred_fallthru
      _
    // Predicated region
    $region22: #{tpu_custom_call.1} parent=1 // pred_check
      _
    $region23: #{tpu_custom_call.1} parent=1 // pred_check_branch
      %56 = sbr.rel (0) target = $region25
    $region24: #{tpu_custom_call.1} parent=1 // pred_region
      _
    $region25: #{tpu_custom_call.1} parent=1 // pred_fallthru
      _
    // Predicated region
    $region26: #{tpu_custom_call.1} parent=1 // pred_check
      _
    $region27: #{tpu_custom_call.1} parent=1 // pred_check_branch
      %58 = sbr.rel (0) target = $region29
    $region28: #{tpu_custom_call.1} parent=1 // pred_region
      _
    $region29: #{tpu_custom_call.1} parent=1 // pred_fallthru
      _
    // Predicated region
    $region30: #{tpu_custom_call.1} parent=1 // pred_check
      _
    $region31: #{tpu_custom_call.1} parent=1 // pred_check_branch
      %60 = sbr.rel (0) target = $region33
    $region32: #{tpu_custom_call.1} parent=1 // pred_region
      %61 = dma.done [#allocation5], 4096
    $region33: #{tpu_custom_call.1} parent=1 // pred_fallthru
      _
    // Predicated region
    $region34: #{tpu_custom_call.1} parent=1 // pred_check
      _
    $region35: #{tpu_custom_call.1} parent=1 // pred_check_branch
      %63 = sbr.rel (0) target = $region37
    $region36: #{tpu_custom_call.1} parent=1 // pred_region
      %64 = dma.done [#allocation7], 8192
    $region37: #{tpu_custom_call.1} parent=1 // pred_fallthru
      _
    // Predicated region
    $region38: #{tpu_custom_call.1} parent=1 // pred_check
      _
    $region39: #{tpu_custom_call.1} parent=1 // pred_check_branch
      %66 = sbr.rel (0) target = $region41
    $region40: #{tpu_custom_call.1} parent=1 // pred_region
      %67 = dma.done [#allocation7], 8192
    $region41: #{tpu_custom_call.1} parent=1 // pred_fallthru
      _
    %p68 = scmp.eq.s32.totalorder 0, 0
    // Predicated region
    $region42: #{tpu_custom_call.1} parent=1 // pred_check
      %p69 = pneg %p68
    $region43: #{tpu_custom_call.1} parent=1 // pred_check_branch
      %71 = sbr.rel (%p69) target = $region45
    $region44: #{tpu_custom_call.1} parent=1 // pred_region
      %72 = vst [vmem:[#allocation2] sm:$0xff] 0.0
      %73 = vst [vmem:[#allocation2 + $0x8] sm:$0xff] 0.0
      %74 = vst [vmem:[#allocation2 + $0x10] sm:$0xff] 0.0
      %75 = vst [vmem:[#allocation2 + $0x18] sm:$0xff] 0.0
      %76 = vst [vmem:[#allocation2 + $0x20] sm:$0xff] 0.0
      %77 = vst [vmem:[#allocation2 + $0x28] sm:$0xff] 0.0
      %78 = vst [vmem:[#allocation2 + $0x30] sm:$0xff] 0.0
      %79 = vst [vmem:[#allocation2 + $0x38] sm:$0xff] 0.0
      %80 = vst [vmem:[#allocation2 + $0x40] sm:$0xff] 0.0
      %81 = vst [vmem:[#allocation2 + $0x48] sm:$0xff] 0.0
      %82 = vst [vmem:[#allocation2 + $0x50] sm:$0xff] 0.0
      %83 = vst [vmem:[#allocation2 + $0x58] sm:$0xff] 0.0
      %84 = vst [vmem:[#allocation2 + $0x60] sm:$0xff] 0.0
      %85 = vst [vmem:[#allocation2 + $0x68] sm:$0xff] 0.0
      %86 = vst [vmem:[#allocation2 + $0x70] sm:$0xff] 0.0
      %87 = vst [vmem:[#allocation2 + $0x78] sm:$0xff] 0.0
      %88 = vst [vmem:[#allocation2 + $0x80] sm:$0xff] 0.0
      %89 = vst [vmem:[#allocation2 + $0x88] sm:$0xff] 0.0
      %90 = vst [vmem:[#allocation2 + $0x90] sm:$0xff] 0.0
      %91 = vst [vmem:[#allocation2 + $0x98] sm:$0xff] 0.0
      %92 = vst [vmem:[#allocation2 + $0xa0] sm:$0xff] 0.0
      %93 = vst [vmem:[#allocation2 + $0xa8] sm:$0xff] 0.0
      %94 = vst [vmem:[#allocation2 + $0xb0] sm:$0xff] 0.0
      %95 = vst [vmem:[#allocation2 + $0xb8] sm:$0xff] 0.0
      %96 = vst [vmem:[#allocation2 + $0xc0] sm:$0xff] 0.0
      %97 = vst [vmem:[#allocation2 + $0xc8] sm:$0xff] 0.0
      %98 = vst [vmem:[#allocation2 + $0xd0] sm:$0xff] 0.0
      %99 = vst [vmem:[#allocation2 + $0xd8] sm:$0xff] 0.0
      %100 = vst [vmem:[#allocation2 + $0xe0] sm:$0xff] 0.0
      %101 = vst [vmem:[#allocation2 + $0xe8] sm:$0xff] 0.0
      %102 = vst [vmem:[#allocation2 + $0xf0] sm:$0xff] 0.0
      %103 = vst [vmem:[#allocation2 + $0xf8] sm:$0xff] 0.0
      %104 = vst [vmem:[#allocation2 + $0x100] sm:$0xff] 0.0
      %105 = vst [vmem:[#allocation2 + $0x108] sm:$0xff] 0.0
      %106 = vst [vmem:[#allocation2 + $0x110] sm:$0xff] 0.0
      %107 = vst [vmem:[#allocation2 + $0x118] sm:$0xff] 0.0
      %108 = vst [vmem:[#allocation2 + $0x120] sm:$0xff] 0.0
      %109 = vst [vmem:[#allocation2 + $0x128] sm:$0xff] 0.0
      %110 = vst [vmem:[#allocation2 + $0x130] sm:$0xff] 0.0
      %111 = vst [vmem:[#allocation2 + $0x138] sm:$0xff] 0.0
      %112 = vst [vmem:[#allocation2 + $0x140] sm:$0xff] 0.0
      %113 = vst [vmem:[#allocation2 + $0x148] sm:$0xff] 0.0
      %114 = vst [vmem:[#allocation2 + $0x150] sm:$0xff] 0.0
      %115 = vst [vmem:[#allocation2 + $0x158] sm:$0xff] 0.0
      %116 = vst [vmem:[#allocation2 + $0x160] sm:$0xff] 0.0
      %117 = vst [vmem:[#allocation2 + $0x168] sm:$0xff] 0.0
      %118 = vst [vmem:[#allocation2 + $0x170] sm:$0xff] 0.0
      %119 = vst [vmem:[#allocation2 + $0x178] sm:$0xff] 0.0
      %120 = vst [vmem:[#allocation2 + $0x180] sm:$0xff] 0.0
      %121 = vst [vmem:[#allocation2 + $0x188] sm:$0xff] 0.0
      %122 = vst [vmem:[#allocation2 + $0x190] sm:$0xff] 0.0
      %123 = vst [vmem:[#allocation2 + $0x198] sm:$0xff] 0.0
      %124 = vst [vmem:[#allocation2 + $0x1a0] sm:$0xff] 0.0
      %125 = vst [vmem:[#allocation2 + $0x1a8] sm:$0xff] 0.0
      %126 = vst [vmem:[#allocation2 + $0x1b0] sm:$0xff] 0.0
      %127 = vst [vmem:[#allocation2 + $0x1b8] sm:$0xff] 0.0
      %128 = vst [vmem:[#allocation2 + $0x1c0] sm:$0xff] 0.0
      %129 = vst [vmem:[#allocation2 + $0x1c8] sm:$0xff] 0.0
      %130 = vst [vmem:[#allocation2 + $0x1d0] sm:$0xff] 0.0
      %131 = vst [vmem:[#allocation2 + $0x1d8] sm:$0xff] 0.0
      %132 = vst [vmem:[#allocation2 + $0x1e0] sm:$0xff] 0.0
      %133 = vst [vmem:[#allocation2 + $0x1e8] sm:$0xff] 0.0
      %134 = vst [vmem:[#allocation2 + $0x1f0] sm:$0xff] 0.0
      %135 = vst [vmem:[#allocation2 + $0x1f8] sm:$0xff] 0.0
    $region45: #{tpu_custom_call.1} parent=1 // pred_fallthru
      _
    %v136 = vld [vmem:[#allocation4] sm:$0xff]
    %v137 = vld [vmem:[#allocation4 + $0x8] sm:$0xff]
    %v138 = vld [vmem:[#allocation4 + $0x10] sm:$0xff]
    %v139 = vld [vmem:[#allocation4 + $0x18] sm:$0xff]
    %v140 = vld [vmem:[#allocation4 + $0x20] sm:$0xff]
    %v141 = vld [vmem:[#allocation4 + $0x28] sm:$0xff]
    %v142 = vld [vmem:[#allocation4 + $0x30] sm:$0xff]
    %v143 = vld [vmem:[#allocation4 + $0x38] sm:$0xff]
    %v144 = vld [vmem:[#allocation4 + $0x40] sm:$0xff]
    %v145 = vld [vmem:[#allocation4 + $0x48] sm:$0xff]
    %v146 = vld [vmem:[#allocation4 + $0x50] sm:$0xff]
    %v147 = vld [vmem:[#allocation4 + $0x58] sm:$0xff]
    %v148 = vld [vmem:[#allocation4 + $0x60] sm:$0xff]
    %v149 = vld [vmem:[#allocation4 + $0x68] sm:$0xff]
    %v150 = vld [vmem:[#allocation4 + $0x70] sm:$0xff]
    %v151 = vld [vmem:[#allocation4 + $0x78] sm:$0xff]
    %v152 = vld [vmem:[#allocation4 + $0x80] sm:$0xff]
    %v153 = vld [vmem:[#allocation4 + $0x88] sm:$0xff]
    %v154 = vld [vmem:[#allocation4 + $0x90] sm:$0xff]
    %v155 = vld [vmem:[#allocation4 + $0x98] sm:$0xff]
    %v156 = vld [vmem:[#allocation4 + $0xa0] sm:$0xff]
    %v157 = vld [vmem:[#allocation4 + $0xa8] sm:$0xff]
    %v158 = vld [vmem:[#allocation4 + $0xb0] sm:$0xff]
    %v159 = vld [vmem:[#allocation4 + $0xb8] sm:$0xff]
    %v160 = vld [vmem:[#allocation4 + $0xc0] sm:$0xff]
    %v161 = vld [vmem:[#allocation4 + $0xc8] sm:$0xff]
    %v162 = vld [vmem:[#allocation4 + $0xd0] sm:$0xff]
    %v163 = vld [vmem:[#allocation4 + $0xd8] sm:$0xff]
    %v164 = vld [vmem:[#allocation4 + $0xe0] sm:$0xff]
    %v165 = vld [vmem:[#allocation4 + $0xe8] sm:$0xff]
    %v166 = vld [vmem:[#allocation4 + $0xf0] sm:$0xff]
    %v167 = vld [vmem:[#allocation4 + $0xf8] sm:$0xff]
    %v168 = vpack.c.bf16 %v138, %v136
    %v169 = vpack.c.bf16 %v139, %v137
    %v170 = vpack.c.bf16 %v142, %v140
    %v171 = vpack.c.bf16 %v143, %v141
    %v172 = vpack.c.bf16 %v146, %v144
    %v173 = vpack.c.bf16 %v147, %v145
    %v174 = vpack.c.bf16 %v150, %v148
    %v175 = vpack.c.bf16 %v151, %v149
    %v176 = vpack.c.bf16 %v154, %v152
    %v177 = vpack.c.bf16 %v155, %v153
    %v178 = vpack.c.bf16 %v158, %v156
    %v179 = vpack.c.bf16 %v159, %v157
    %v180 = vpack.c.bf16 %v162, %v160
    %v181 = vpack.c.bf16 %v163, %v161
    %v182 = vpack.c.bf16 %v166, %v164
    %v183 = vpack.c.bf16 %v167, %v165
    %v184 = vld [vmem:[#allocation2] sm:$0xff]
    %v185 = vld [vmem:[#allocation2 + $0x8] sm:$0xff]
    %v186 = vld [vmem:[#allocation2 + $0x10] sm:$0xff]
    %v187 = vld [vmem:[#allocation2 + $0x18] sm:$0xff]
    %v188 = vld [vmem:[#allocation2 + $0x20] sm:$0xff]
    %v189 = vld [vmem:[#allocation2 + $0x28] sm:$0xff]
    %v190 = vld [vmem:[#allocation2 + $0x30] sm:$0xff]
    %v191 = vld [vmem:[#allocation2 + $0x38] sm:$0xff]
    %v192 = vld [vmem:[#allocation2 + $0x40] sm:$0xff]
    %v193 = vld [vmem:[#allocation2 + $0x48] sm:$0xff]
    %v194 = vld [vmem:[#allocation2 + $0x50] sm:$0xff]
    %v195 = vld [vmem:[#allocation2 + $0x58] sm:$0xff]
    %v196 = vld [vmem:[#allocation2 + $0x60] sm:$0xff]
    %v197 = vld [vmem:[#allocation2 + $0x68] sm:$0xff]
    %v198 = vld [vmem:[#allocation2 + $0x70] sm:$0xff]
    %v199 = vld [vmem:[#allocation2 + $0x78] sm:$0xff]
    %v200 = vld [vmem:[#allocation2 + $0x80] sm:$0xff]
    %v201 = vld [vmem:[#allocation2 + $0x88] sm:$0xff]
    %v202 = vld [vmem:[#allocation2 + $0x90] sm:$0xff]
    %v203 = vld [vmem:[#allocation2 + $0x98] sm:$0xff]
    %v204 = vld [vmem:[#allocation2 + $0xa0] sm:$0xff]
    %v205 = vld [vmem:[#allocation2 + $0xa8] sm:$0xff]
    %v206 = vld [vmem:[#allocation2 + $0xb0] sm:$0xff]
    %v207 = vld [vmem:[#allocation2 + $0xb8] sm:$0xff]
    %v208 = vld [vmem:[#allocation2 + $0xc0] sm:$0xff]
    %v209 = vld [vmem:[#allocation2 + $0xc8] sm:$0xff]
    %v210 = vld [vmem:[#allocation2 + $0xd0] sm:$0xff]
    %v211 = vld [vmem:[#allocation2 + $0xd8] sm:$0xff]
    %v212 = vld [vmem:[#allocation2 + $0xe0] sm:$0xff]
    %v213 = vld [vmem:[#allocation2 + $0xe8] sm:$0xff]
    %v214 = vld [vmem:[#allocation2 + $0xf0] sm:$0xff]
    %v215 = vld [vmem:[#allocation2 + $0xf8] sm:$0xff]
    %v216 = vld [vmem:[#allocation2 + $0x100] sm:$0xff]
    %v217 = vld [vmem:[#allocation2 + $0x108] sm:$0xff]
    %v218 = vld [vmem:[#allocation2 + $0x110] sm:$0xff]
    %v219 = vld [vmem:[#allocation2 + $0x118] sm:$0xff]
    %v220 = vld [vmem:[#allocation2 + $0x120] sm:$0xff]
    %v221 = vld [vmem:[#allocation2 + $0x128] sm:$0xff]
    %v222 = vld [vmem:[#allocation2 + $0x130] sm:$0xff]
    %v223 = vld [vmem:[#allocation2 + $0x138] sm:$0xff]
    %v224 = vld [vmem:[#allocation2 + $0x140] sm:$0xff]
    %v225 = vld [vmem:[#allocation2 + $0x148] sm:$0xff]
    %v226 = vld [vmem:[#allocation2 + $0x150] sm:$0xff]
    %v227 = vld [vmem:[#allocation2 + $0x158] sm:$0xff]
    %v228 = vld [vmem:[#allocation2 + $0x160] sm:$0xff]
    %v229 = vld [vmem:[#allocation2 + $0x168] sm:$0xff]
    %v230 = vld [vmem:[#allocation2 + $0x170] sm:$0xff]
    %v231 = vld [vmem:[#allocation2 + $0x178] sm:$0xff]
    %v232 = vld [vmem:[#allocation2 + $0x180] sm:$0xff]
    %v233 = vld [vmem:[#allocation2 + $0x188] sm:$0xff]
    %v234 = vld [vmem:[#allocation2 + $0x190] sm:$0xff]
    %v235 = vld [vmem:[#allocation2 + $0x198] sm:$0xff]
    %v236 = vld [vmem:[#allocation2 + $0x1a0] sm:$0xff]
    %v237 = vld [vmem:[#allocation2 + $0x1a8] sm:$0xff]
    %v238 = vld [vmem:[#allocation2 + $0x1b0] sm:$0xff]
    %v239 = vld [vmem:[#allocation2 + $0x1b8] sm:$0xff]
    %v240 = vld [vmem:[#allocation2 + $0x1c0] sm:$0xff]
    %v241 = vld [vmem:[#allocation2 + $0x1c8] sm:$0xff]
    %v242 = vld [vmem:[#allocation2 + $0x1d0] sm:$0xff]
    %v243 = vld [vmem:[#allocation2 + $0x1d8] sm:$0xff]
    %v244 = vld [vmem:[#allocation2 + $0x1e0] sm:$0xff]
    %v245 = vld [vmem:[#allocation2 + $0x1e8] sm:$0xff]
    %v246 = vld [vmem:[#allocation2 + $0x1f0] sm:$0xff]
    %v247 = vld [vmem:[#allocation2 + $0x1f8] sm:$0xff]
    %v248 = vld [vmem:[#allocation6] sm:$0xff]
    %v249 = vld [vmem:[#allocation6 + $0x8] sm:$0xff]
    %v250 = vld [vmem:[#allocation6 + $0x10] sm:$0xff]
    %v251 = vld [vmem:[#allocation6 + $0x18] sm:$0xff]
    %v252 = vld [vmem:[#allocation6 + $0x20] sm:$0xff]
    %v253 = vld [vmem:[#allocation6 + $0x28] sm:$0xff]
    %v254 = vld [vmem:[#allocation6 + $0x30] sm:$0xff]
    %v255 = vld [vmem:[#allocation6 + $0x38] sm:$0xff]
    %v256 = vld [vmem:[#allocation6 + $0x40] sm:$0xff]
    %v257 = vld [vmem:[#allocation6 + $0x48] sm:$0xff]
    %v258 = vld [vmem:[#allocation6 + $0x50] sm:$0xff]
    %v259 = vld [vmem:[#allocation6 + $0x58] sm:$0xff]
    %v260 = vld [vmem:[#allocation6 + $0x60] sm:$0xff]
    %v261 = vld [vmem:[#allocation6 + $0x68] sm:$0xff]
    %v262 = vld [vmem:[#allocation6 + $0x70] sm:$0xff]
    %v263 = vld [vmem:[#allocation6 + $0x78] sm:$0xff]
    %v264 = vld [vmem:[#allocation6 + $0x80] sm:$0xff]
    %v265 = vld [vmem:[#allocation6 + $0x88] sm:$0xff]
    %v266 = vld [vmem:[#allocation6 + $0x90] sm:$0xff]
    %v267 = vld [vmem:[#allocation6 + $0x98] sm:$0xff]
    %v268 = vld [vmem:[#allocation6 + $0xa0] sm:$0xff]
    %v269 = vld [vmem:[#allocation6 + $0xa8] sm:$0xff]
    %v270 = vld [vmem:[#allocation6 + $0xb0] sm:$0xff]
    %v271 = vld [vmem:[#allocation6 + $0xb8] sm:$0xff]
    %v272 = vld [vmem:[#allocation6 + $0xc0] sm:$0xff]
    %v273 = vld [vmem:[#allocation6 + $0xc8] sm:$0xff]
    %v274 = vld [vmem:[#allocation6 + $0xd0] sm:$0xff]
    %v275 = vld [vmem:[#allocation6 + $0xd8] sm:$0xff]
    %v276 = vld [vmem:[#allocation6 + $0xe0] sm:$0xff]
    %v277 = vld [vmem:[#allocation6 + $0xe8] sm:$0xff]
    %v278 = vld [vmem:[#allocation6 + $0xf0] sm:$0xff]
    %v279 = vld [vmem:[#allocation6 + $0xf8] sm:$0xff]
    %v280 = vld [vmem:[#allocation6 + $0x100] sm:$0xff]
    %v281 = vld [vmem:[#allocation6 + $0x108] sm:$0xff]
    %v282 = vld [vmem:[#allocation6 + $0x110] sm:$0xff]
    %v283 = vld [vmem:[#allocation6 + $0x118] sm:$0xff]
    %v284 = vld [vmem:[#allocation6 + $0x120] sm:$0xff]
    %v285 = vld [vmem:[#allocation6 + $0x128] sm:$0xff]
    %v286 = vld [vmem:[#allocation6 + $0x130] sm:$0xff]
    %v287 = vld [vmem:[#allocation6 + $0x138] sm:$0xff]
    %v288 = vld [vmem:[#allocation6 + $0x140] sm:$0xff]
    %v289 = vld [vmem:[#allocation6 + $0x148] sm:$0xff]
    %v290 = vld [vmem:[#allocation6 + $0x150] sm:$0xff]
    %v291 = vld [vmem:[#allocation6 + $0x158] sm:$0xff]
    %v292 = vld [vmem:[#allocation6 + $0x160] sm:$0xff]
    %v293 = vld [vmem:[#allocation6 + $0x168] sm:$0xff]
    %v294 = vld [vmem:[#allocation6 + $0x170] sm:$0xff]
    %v295 = vld [vmem:[#allocation6 + $0x178] sm:$0xff]
    %v296 = vld [vmem:[#allocation6 + $0x180] sm:$0xff]
    %v297 = vld [vmem:[#allocation6 + $0x188] sm:$0xff]
    %v298 = vld [vmem:[#allocation6 + $0x190] sm:$0xff]
    %v299 = vld [vmem:[#allocation6 + $0x198] sm:$0xff]
    %v300 = vld [vmem:[#allocation6 + $0x1a0] sm:$0xff]
    %v301 = vld [vmem:[#allocation6 + $0x1a8] sm:$0xff]
    %v302 = vld [vmem:[#allocation6 + $0x1b0] sm:$0xff]
    %v303 = vld [vmem:[#allocation6 + $0x1b8] sm:$0xff]
    %v304 = vld [vmem:[#allocation6 + $0x1c0] sm:$0xff]
    %v305 = vld [vmem:[#allocation6 + $0x1c8] sm:$0xff]
    %v306 = vld [vmem:[#allocation6 + $0x1d0] sm:$0xff]
    %v307 = vld [vmem:[#allocation6 + $0x1d8] sm:$0xff]
    %v308 = vld [vmem:[#allocation6 + $0x1e0] sm:$0xff]
    %v309 = vld [vmem:[#allocation6 + $0x1e8] sm:$0xff]
    %v310 = vld [vmem:[#allocation6 + $0x1f0] sm:$0xff]
    %v311 = vld [vmem:[#allocation6 + $0x1f8] sm:$0xff]
    %v376 = vunpack.c.l.b16 %v248
    %v377 = vunpack.c.h.b16 %v248
    %v378 = vunpack.c.l.b16 %v249
    %v379 = vunpack.c.h.b16 %v249
    %v380 = vunpack.c.l.b16 %v250
    %v381 = vunpack.c.h.b16 %v250
    %v382 = vunpack.c.l.b16 %v251
    %v383 = vunpack.c.h.b16 %v251
    %v384 = vunpack.c.l.b16 %v252
    %v385 = vunpack.c.h.b16 %v252
    %v386 = vunpack.c.l.b16 %v253
    %v387 = vunpack.c.h.b16 %v253
    %v388 = vunpack.c.l.b16 %v254
    %v389 = vunpack.c.h.b16 %v254
    %v390 = vunpack.c.l.b16 %v255
    %v391 = vunpack.c.h.b16 %v255
    %v392 = vunpack.c.l.b16 %v256
    %v393 = vunpack.c.h.b16 %v256
    %v394 = vunpack.c.l.b16 %v257
    %v395 = vunpack.c.h.b16 %v257
    %v396 = vunpack.c.l.b16 %v258
    %v397 = vunpack.c.h.b16 %v258
    %v398 = vunpack.c.l.b16 %v259
    %v399 = vunpack.c.h.b16 %v259
    %v400 = vunpack.c.l.b16 %v260
    %v401 = vunpack.c.h.b16 %v260
    %v402 = vunpack.c.l.b16 %v261
    %v403 = vunpack.c.h.b16 %v261
    %v404 = vunpack.c.l.b16 %v262
    %v405 = vunpack.c.h.b16 %v262
    %v406 = vunpack.c.l.b16 %v263
    %v407 = vunpack.c.h.b16 %v263
    %v408 = vunpack.c.l.b16 %v264
    %v409 = vunpack.c.h.b16 %v264
    %v410 = vunpack.c.l.b16 %v265
    %v411 = vunpack.c.h.b16 %v265
    %v412 = vunpack.c.l.b16 %v266
    %v413 = vunpack.c.h.b16 %v266
    %v414 = vunpack.c.l.b16 %v267
    %v415 = vunpack.c.h.b16 %v267
    %v416 = vunpack.c.l.b16 %v268
    %v417 = vunpack.c.h.b16 %v268
    %v418 = vunpack.c.l.b16 %v269
    %v419 = vunpack.c.h.b16 %v269
    %v420 = vunpack.c.l.b16 %v270
    %v421 = vunpack.c.h.b16 %v270
    %v422 = vunpack.c.l.b16 %v271
    %v423 = vunpack.c.h.b16 %v271
    %v424 = vunpack.c.l.b16 %v272
    %v425 = vunpack.c.h.b16 %v272
    %v426 = vunpack.c.l.b16 %v273
    %v427 = vunpack.c.h.b16 %v273
    %v428 = vunpack.c.l.b16 %v274
    %v429 = vunpack.c.h.b16 %v274
    %v430 = vunpack.c.l.b16 %v275
    %v431 = vunpack.c.h.b16 %v275
    %v432 = vunpack.c.l.b16 %v276
    %v433 = vunpack.c.h.b16 %v276
    %v434 = vunpack.c.l.b16 %v277
    %v435 = vunpack.c.h.b16 %v277
    %v436 = vunpack.c.l.b16 %v278
    %v437 = vunpack.c.h.b16 %v278
    %v438 = vunpack.c.l.b16 %v279
    %v439 = vunpack.c.h.b16 %v279
    %v440 = vunpack.c.l.b16 %v280
    %v441 = vunpack.c.h.b16 %v280
    %v442 = vunpack.c.l.b16 %v281
    %v443 = vunpack.c.h.b16 %v281
    %v444 = vunpack.c.l.b16 %v282
    %v445 = vunpack.c.h.b16 %v282
    %v446 = vunpack.c.l.b16 %v283
    %v447 = vunpack.c.h.b16 %v283
    %v448 = vunpack.c.l.b16 %v284
    %v449 = vunpack.c.h.b16 %v284
    %v450 = vunpack.c.l.b16 %v285
    %v451 = vunpack.c.h.b16 %v285
    %v452 = vunpack.c.l.b16 %v286
    %v453 = vunpack.c.h.b16 %v286
    %v454 = vunpack.c.l.b16 %v287
    %v455 = vunpack.c.h.b16 %v287
    %v456 = vunpack.c.l.b16 %v288
    %v457 = vunpack.c.h.b16 %v288
    %v458 = vunpack.c.l.b16 %v289
    %v459 = vunpack.c.h.b16 %v289
    %v460 = vunpack.c.l.b16 %v290
    %v461 = vunpack.c.h.b16 %v290
    %v462 = vunpack.c.l.b16 %v291
    %v463 = vunpack.c.h.b16 %v291
    %v464 = vunpack.c.l.b16 %v292
    %v465 = vunpack.c.h.b16 %v292
    %v466 = vunpack.c.l.b16 %v293
    %v467 = vunpack.c.h.b16 %v293
    %v468 = vunpack.c.l.b16 %v294
    %v469 = vunpack.c.h.b16 %v294
    %v470 = vunpack.c.l.b16 %v295
    %v471 = vunpack.c.h.b16 %v295
    %v472 = vunpack.c.l.b16 %v296
    %v473 = vunpack.c.h.b16 %v296
    %v474 = vunpack.c.l.b16 %v297
    %v475 = vunpack.c.h.b16 %v297
    %v476 = vunpack.c.l.b16 %v298
    %v477 = vunpack.c.h.b16 %v298
    %v478 = vunpack.c.l.b16 %v299
    %v479 = vunpack.c.h.b16 %v299
    %v480 = vunpack.c.l.b16 %v300
    %v481 = vunpack.c.h.b16 %v300
    %v482 = vunpack.c.l.b16 %v301
    %v483 = vunpack.c.h.b16 %v301
    %v484 = vunpack.c.l.b16 %v302
    %v485 = vunpack.c.h.b16 %v302
    %v486 = vunpack.c.l.b16 %v303
    %v487 = vunpack.c.h.b16 %v303
    %v488 = vunpack.c.l.b16 %v304
    %v489 = vunpack.c.h.b16 %v304
    %v490 = vunpack.c.l.b16 %v305
    %v491 = vunpack.c.h.b16 %v305
    %v492 = vunpack.c.l.b16 %v306
    %v493 = vunpack.c.h.b16 %v306
    %v494 = vunpack.c.l.b16 %v307
    %v495 = vunpack.c.h.b16 %v307
    %v496 = vunpack.c.l.b16 %v308
    %v497 = vunpack.c.h.b16 %v308
    %v498 = vunpack.c.l.b16 %v309
    %v499 = vunpack.c.h.b16 %v309
    %v500 = vunpack.c.l.b16 %v310
    %v501 = vunpack.c.h.b16 %v310
    %v502 = vunpack.c.l.b16 %v311
    %v503 = vunpack.c.h.b16 %v311
    %v504 = vpack.c.b16 %v380, %v376
    %v505 = vpack.c.b16 %v381, %v377
    %v506 = vpack.c.b16 %v382, %v378
    %v507 = vpack.c.b16 %v383, %v379
    %v508 = vpack.c.b16 %v388, %v384
    %v509 = vpack.c.b16 %v389, %v385
    %v510 = vpack.c.b16 %v390, %v386
    %v511 = vpack.c.b16 %v391, %v387
    %v512 = vpack.c.b16 %v396, %v392
    %v513 = vpack.c.b16 %v397, %v393
    %v514 = vpack.c.b16 %v398, %v394
    %v515 = vpack.c.b16 %v399, %v395
    %v516 = vpack.c.b16 %v404, %v400
    %v517 = vpack.c.b16 %v405, %v401
    %v518 = vpack.c.b16 %v406, %v402
    %v519 = vpack.c.b16 %v407, %v403
    %v520 = vpack.c.b16 %v412, %v408
    %v521 = vpack.c.b16 %v413, %v409
    %v522 = vpack.c.b16 %v414, %v410
    %v523 = vpack.c.b16 %v415, %v411
    %v524 = vpack.c.b16 %v420, %v416
    %v525 = vpack.c.b16 %v421, %v417
    %v526 = vpack.c.b16 %v422, %v418
    %v527 = vpack.c.b16 %v423, %v419
    %v528 = vpack.c.b16 %v428, %v424
    %v529 = vpack.c.b16 %v429, %v425
    %v530 = vpack.c.b16 %v430, %v426
    %v531 = vpack.c.b16 %v431, %v427
    %v532 = vpack.c.b16 %v436, %v432
    %v533 = vpack.c.b16 %v437, %v433
    %v534 = vpack.c.b16 %v438, %v434
    %v535 = vpack.c.b16 %v439, %v435
    %v536 = vpack.c.b16 %v444, %v440
    %v537 = vpack.c.b16 %v445, %v441
    %v538 = vpack.c.b16 %v446, %v442
    %v539 = vpack.c.b16 %v447, %v443
    %v540 = vpack.c.b16 %v452, %v448
    %v541 = vpack.c.b16 %v453, %v449
    %v542 = vpack.c.b16 %v454, %v450
    %v543 = vpack.c.b16 %v455, %v451
    %v544 = vpack.c.b16 %v460, %v456
    %v545 = vpack.c.b16 %v461, %v457
    %v546 = vpack.c.b16 %v462, %v458
    %v547 = vpack.c.b16 %v463, %v459
    %v548 = vpack.c.b16 %v468, %v464
    %v549 = vpack.c.b16 %v469, %v465
    %v550 = vpack.c.b16 %v470, %v466
    %v551 = vpack.c.b16 %v471, %v467
    %v552 = vpack.c.b16 %v476, %v472
    %v553 = vpack.c.b16 %v477, %v473
    %v554 = vpack.c.b16 %v478, %v474
    %v555 = vpack.c.b16 %v479, %v475
    %v556 = vpack.c.b16 %v484, %v480
    %v557 = vpack.c.b16 %v485, %v481
    %v558 = vpack.c.b16 %v486, %v482
    %v559 = vpack.c.b16 %v487, %v483
    %v560 = vpack.c.b16 %v492, %v488
    %v561 = vpack.c.b16 %v493, %v489
    %v562 = vpack.c.b16 %v494, %v490
    %v563 = vpack.c.b16 %v495, %v491
    %v564 = vpack.c.b16 %v500, %v496
    %v565 = vpack.c.b16 %v501, %v497
    %v566 = vpack.c.b16 %v502, %v498
    %v567 = vpack.c.b16 %v503, %v499
    %632 = vmatprep.subr.bf16.mxu0 %v505
    %633 = vmatpush1.bf16.msra.mxu0 %v504
    %634 = vmatprep.subr.bf16.mxu0 %v509
    %635 = vmatpush1.bf16.msra.mxu0 %v508
    %636 = vmatprep.subr.bf16.mxu0 %v513
    %637 = vmatpush1.bf16.msra.mxu0 %v512
    %638 = vmatprep.subr.bf16.mxu0 %v517
    %639 = vmatpush1.bf16.msra.mxu0 %v516
    %640 = vmatprep.subr.bf16.mxu0 %v521
    %641 = vmatpush1.bf16.msra.mxu0 %v520
    %642 = vmatprep.subr.bf16.mxu0 %v525
    %643 = vmatpush1.bf16.msra.mxu0 %v524
    %644 = vmatprep.subr.bf16.mxu0 %v529
    %645 = vmatpush1.bf16.msra.mxu0 %v528
    %646 = vmatprep.subr.bf16.mxu0 %v533
    %647 = vmatpush1.bf16.msra.mxu0 %v532
    %648 = vmatprep.subr.bf16.mxu0 %v537
    %649 = vmatpush1.bf16.msra.mxu0 %v536
    %650 = vmatprep.subr.bf16.mxu0 %v541
    %651 = vmatpush1.bf16.msra.mxu0 %v540
    %652 = vmatprep.subr.bf16.mxu0 %v545
    %653 = vmatpush1.bf16.msra.mxu0 %v544
    %654 = vmatprep.subr.bf16.mxu0 %v549
    %655 = vmatpush1.bf16.msra.mxu0 %v548
    %656 = vmatprep.subr.bf16.mxu0 %v553
    %657 = vmatpush1.bf16.msra.mxu0 %v552
    %658 = vmatprep.subr.bf16.mxu0 %v557
    %659 = vmatpush1.bf16.msra.mxu0 %v556
    %660 = vmatprep.subr.bf16.mxu0 %v561
    %661 = vmatpush1.bf16.msra.mxu0 %v560
    %662 = vmatprep.subr.bf16.mxu0 %v565
    %663 = vmatpush1.bf16.msra.mxu0 %v564
    %664 = vmatprep.mubr.bf16.mxu0 %v169
    %665 = vmatmul.mubr.bf16.gmra.mrb[0].mxu0 %v168
    %v666 = vpop.f32.mrb[0].mxu0
    %v667 = vadd.f32 0.0, %v666
    %v668 = vpop.f32.mrb[0].mxu0
    %v669 = vadd.f32 0.0, %v668
    %v670 = vpop.f32.mrb[0].mxu0
    %v671 = vadd.f32 0.0, %v670
    %v672 = vpop.f32.mrb[0].mxu0
    %v673 = vadd.f32 0.0, %v672
    %674 = vmatprep.mubr.bf16.mxu0 %v171
    %675 = vmatmul.mubr.bf16.gmra.mrb[0].mxu0 %v170
    %v676 = vpop.f32.mrb[0].mxu0
    %v677 = vadd.f32 0.0, %v676
    %v678 = vpop.f32.mrb[0].mxu0
    %v679 = vadd.f32 0.0, %v678
    %v680 = vpop.f32.mrb[0].mxu0
    %v681 = vadd.f32 0.0, %v680
    %v682 = vpop.f32.mrb[0].mxu0
    %v683 = vadd.f32 0.0, %v682
    %684 = vmatprep.mubr.bf16.mxu0 %v173
    %685 = vmatmul.mubr.bf16.gmra.mrb[0].mxu0 %v172
    %v686 = vpop.f32.mrb[0].mxu0
    %v687 = vadd.f32 0.0, %v686
    %v688 = vpop.f32.mrb[0].mxu0
    %v689 = vadd.f32 0.0, %v688
    %v690 = vpop.f32.mrb[0].mxu0
    %v691 = vadd.f32 0.0, %v690
    %v692 = vpop.f32.mrb[0].mxu0
    %v693 = vadd.f32 0.0, %v692
    %694 = vmatprep.mubr.bf16.mxu0 %v175
    %695 = vmatmul.mubr.bf16.gmra.mrb[0].mxu0 %v174
    %v696 = vpop.f32.mrb[0].mxu0
    %v697 = vadd.f32 0.0, %v696
    %v698 = vpop.f32.mrb[0].mxu0
    %v699 = vadd.f32 0.0, %v698
    %v700 = vpop.f32.mrb[0].mxu0
    %v701 = vadd.f32 0.0, %v700
    %v702 = vpop.f32.mrb[0].mxu0
    %v703 = vadd.f32 0.0, %v702
    %704 = vmatprep.mubr.bf16.mxu0 %v177
    %705 = vmatmul.mubr.bf16.gmra.mrb[0].mxu0 %v176
    %v706 = vpop.f32.mrb[0].mxu0
    %v707 = vadd.f32 0.0, %v706
    %v708 = vpop.f32.mrb[0].mxu0
    %v709 = vadd.f32 0.0, %v708
    %v710 = vpop.f32.mrb[0].mxu0
    %v711 = vadd.f32 0.0, %v710
    %v712 = vpop.f32.mrb[0].mxu0
    %v713 = vadd.f32 0.0, %v712
    %714 = vmatprep.mubr.bf16.mxu0 %v179
    %715 = vmatmul.mubr.bf16.gmra.mrb[0].mxu0 %v178
    %v716 = vpop.f32.mrb[0].mxu0
    %v717 = vadd.f32 0.0, %v716
    %v718 = vpop.f32.mrb[0].mxu0
    %v719 = vadd.f32 0.0, %v718
    %v720 = vpop.f32.mrb[0].mxu0
    %v721 = vadd.f32 0.0, %v720
    %v722 = vpop.f32.mrb[0].mxu0
    %v723 = vadd.f32 0.0, %v722
    %724 = vmatprep.mubr.bf16.mxu0 %v181
    %725 = vmatmul.mubr.bf16.gmra.mrb[0].mxu0 %v180
    %v726 = vpop.f32.mrb[0].mxu0
    %v727 = vadd.f32 0.0, %v726
    %v728 = vpop.f32.mrb[0].mxu0
    %v729 = vadd.f32 0.0, %v728
    %v730 = vpop.f32.mrb[0].mxu0
    %v731 = vadd.f32 0.0, %v730
    %v732 = vpop.f32.mrb[0].mxu0
    %v733 = vadd.f32 0.0, %v732
    %734 = vmatprep.mubr.bf16.mxu0 %v183
    %735 = vmatmul.mubr.bf16.gmra.mrb[0].mxu0 %v182
    %v736 = vpop.f32.mrb[0].mxu0
    %v737 = vadd.f32 0.0, %v736
    %v738 = vpop.f32.mrb[0].mxu0
    %v739 = vadd.f32 0.0, %v738
    %v740 = vpop.f32.mrb[0].mxu0
    %v741 = vadd.f32 0.0, %v740
    %v742 = vpop.f32.mrb[0].mxu0
    %v743 = vadd.f32 0.0, %v742
    %744 = vdwg.mxu0
    %745 = vmatprep.subr.bf16.mxu0 %v507
    %746 = vmatpush1.bf16.msra.mxu0 %v506
    %747 = vmatprep.subr.bf16.mxu0 %v511
    %748 = vmatpush1.bf16.msra.mxu0 %v510
    %749 = vmatprep.subr.bf16.mxu0 %v515
    %750 = vmatpush1.bf16.msra.mxu0 %v514
    %751 = vmatprep.subr.bf16.mxu0 %v519
    %752 = vmatpush1.bf16.msra.mxu0 %v518
    %753 = vmatprep.subr.bf16.mxu0 %v523
    %754 = vmatpush1.bf16.msra.mxu0 %v522
    %755 = vmatprep.subr.bf16.mxu0 %v527
    %756 = vmatpush1.bf16.msra.mxu0 %v526
    %757 = vmatprep.subr.bf16.mxu0 %v531
    %758 = vmatpush1.bf16.msra.mxu0 %v530
    %759 = vmatprep.subr.bf16.mxu0 %v535
    %760 = vmatpush1.bf16.msra.mxu0 %v534
    %761 = vmatprep.subr.bf16.mxu0 %v539
    %762 = vmatpush1.bf16.msra.mxu0 %v538
    %763 = vmatprep.subr.bf16.mxu0 %v543
    %764 = vmatpush1.bf16.msra.mxu0 %v542
    %765 = vmatprep.subr.bf16.mxu0 %v547
    %766 = vmatpush1.bf16.msra.mxu0 %v546
    %767 = vmatprep.subr.bf16.mxu0 %v551
    %768 = vmatpush1.bf16.msra.mxu0 %v550
    %769 = vmatprep.subr.bf16.mxu0 %v555
    %770 = vmatpush1.bf16.msra.mxu0 %v554
    %771 = vmatprep.subr.bf16.mxu0 %v559
    %772 = vmatpush1.bf16.msra.mxu0 %v558
    %773 = vmatprep.subr.bf16.mxu0 %v563
    %774 = vmatpush1.bf16.msra.mxu0 %v562
    %775 = vmatprep.subr.bf16.mxu0 %v567
    %776 = vmatpush1.bf16.msra.mxu0 %v566
    %777 = vmatprep.mubr.bf16.mxu0 %v169
    %778 = vmatmul.mubr.bf16.gmra.mrb[0].mxu0 %v168
    %v779 = vpop.f32.mrb[0].mxu0
    %v780 = vadd.f32 0.0, %v779
    %v781 = vpop.f32.mrb[0].mxu0
    %v782 = vadd.f32 0.0, %v781
    %v783 = vpop.f32.mrb[0].mxu0
    %v784 = vadd.f32 0.0, %v783
    %v785 = vpop.f32.mrb[0].mxu0
    %v786 = vadd.f32 0.0, %v785
    %787 = vmatprep.mubr.bf16.mxu0 %v171
    %788 = vmatmul.mubr.bf16.gmra.mrb[0].mxu0 %v170
    %v789 = vpop.f32.mrb[0].mxu0
    %v790 = vadd.f32 0.0, %v789
    %v791 = vpop.f32.mrb[0].mxu0
    %v792 = vadd.f32 0.0, %v791
    %v793 = vpop.f32.mrb[0].mxu0
    %v794 = vadd.f32 0.0, %v793
    %v795 = vpop.f32.mrb[0].mxu0
    %v796 = vadd.f32 0.0, %v795
    %797 = vmatprep.mubr.bf16.mxu0 %v173
    %798 = vmatmul.mubr.bf16.gmra.mrb[0].mxu0 %v172
    %v799 = vpop.f32.mrb[0].mxu0
    %v800 = vadd.f32 0.0, %v799
    %v801 = vpop.f32.mrb[0].mxu0
    %v802 = vadd.f32 0.0, %v801
    %v803 = vpop.f32.mrb[0].mxu0
    %v804 = vadd.f32 0.0, %v803
    %v805 = vpop.f32.mrb[0].mxu0
    %v806 = vadd.f32 0.0, %v805
    %807 = vmatprep.mubr.bf16.mxu0 %v175
    %808 = vmatmul.mubr.bf16.gmra.mrb[0].mxu0 %v174
    %v809 = vpop.f32.mrb[0].mxu0
    %v810 = vadd.f32 0.0, %v809
    %v811 = vpop.f32.mrb[0].mxu0
    %v812 = vadd.f32 0.0, %v811
    %v813 = vpop.f32.mrb[0].mxu0
    %v814 = vadd.f32 0.0, %v813
    %v815 = vpop.f32.mrb[0].mxu0
    %v816 = vadd.f32 0.0, %v815
    %817 = vmatprep.mubr.bf16.mxu0 %v177
    %818 = vmatmul.mubr.bf16.gmra.mrb[0].mxu0 %v176
    %v819 = vpop.f32.mrb[0].mxu0
    %v820 = vadd.f32 0.0, %v819
    %v821 = vpop.f32.mrb[0].mxu0
    %v822 = vadd.f32 0.0, %v821
    %v823 = vpop.f32.mrb[0].mxu0
    %v824 = vadd.f32 0.0, %v823
    %v825 = vpop.f32.mrb[0].mxu0
    %v826 = vadd.f32 0.0, %v825
    %827 = vmatprep.mubr.bf16.mxu0 %v179
    %828 = vmatmul.mubr.bf16.gmra.mrb[0].mxu0 %v178
    %v829 = vpop.f32.mrb[0].mxu0
    %v830 = vadd.f32 0.0, %v829
    %v831 = vpop.f32.mrb[0].mxu0
    %v832 = vadd.f32 0.0, %v831
    %v833 = vpop.f32.mrb[0].mxu0
    %v834 = vadd.f32 0.0, %v833
    %v835 = vpop.f32.mrb[0].mxu0
    %v836 = vadd.f32 0.0, %v835
    %837 = vmatprep.mubr.bf16.mxu0 %v181
    %838 = vmatmul.mubr.bf16.gmra.mrb[0].mxu0 %v180
    %v839 = vpop.f32.mrb[0].mxu0
    %v840 = vadd.f32 0.0, %v839
    %v841 = vpop.f32.mrb[0].mxu0
    %v842 = vadd.f32 0.0, %v841
    %v843 = vpop.f32.mrb[0].mxu0
    %v844 = vadd.f32 0.0, %v843
    %v845 = vpop.f32.mrb[0].mxu0
    %v846 = vadd.f32 0.0, %v845
    %847 = vmatprep.mubr.bf16.mxu0 %v183
    %848 = vmatmul.mubr.bf16.gmra.mrb[0].mxu0 %v182
    %v849 = vpop.f32.mrb[0].mxu0
    %v850 = vadd.f32 0.0, %v849
    %v851 = vpop.f32.mrb[0].mxu0
    %v852 = vadd.f32 0.0, %v851
    %v853 = vpop.f32.mrb[0].mxu0
    %v854 = vadd.f32 0.0, %v853
    %v855 = vpop.f32.mrb[0].mxu0
    %v856 = vadd.f32 0.0, %v855
    %857 = vdwg.mxu0
    %v858 = vadd.f32 %v184, %v667
    %v859 = vadd.f32 %v185, %v669
    %v860 = vadd.f32 %v186, %v780
    %v861 = vadd.f32 %v187, %v782
    %v862 = vadd.f32 %v188, %v671
    %v863 = vadd.f32 %v189, %v673
    %v864 = vadd.f32 %v190, %v784
    %v865 = vadd.f32 %v191, %v786
    %v866 = vadd.f32 %v192, %v677
    %v867 = vadd.f32 %v193, %v679
    %v868 = vadd.f32 %v194, %v790
    %v869 = vadd.f32 %v195, %v792
    %v870 = vadd.f32 %v196, %v681
    %v871 = vadd.f32 %v197, %v683
    %v872 = vadd.f32 %v198, %v794
    %v873 = vadd.f32 %v199, %v796
    %v874 = vadd.f32 %v200, %v687
    %v875 = vadd.f32 %v201, %v689
    %v876 = vadd.f32 %v202, %v800
    %v877 = vadd.f32 %v203, %v802
    %v878 = vadd.f32 %v204, %v691
    %v879 = vadd.f32 %v205, %v693
    %v880 = vadd.f32 %v206, %v804
    %v881 = vadd.f32 %v207, %v806
    %v882 = vadd.f32 %v208, %v697
    %v883 = vadd.f32 %v209, %v699
    %v884 = vadd.f32 %v210, %v810
    %v885 = vadd.f32 %v211, %v812
    %v886 = vadd.f32 %v212, %v701
    %v887 = vadd.f32 %v213, %v703
    %v888 = vadd.f32 %v214, %v814
    %v889 = vadd.f32 %v215, %v816
    %v890 = vadd.f32 %v216, %v707
    %v891 = vadd.f32 %v217, %v709
    %v892 = vadd.f32 %v218, %v820
    %v893 = vadd.f32 %v219, %v822
    %v894 = vadd.f32 %v220, %v711
    %v895 = vadd.f32 %v221, %v713
    %v896 = vadd.f32 %v222, %v824
    %v897 = vadd.f32 %v223, %v826
    %v898 = vadd.f32 %v224, %v717
    %v899 = vadd.f32 %v225, %v719
    %v900 = vadd.f32 %v226, %v830
    %v901 = vadd.f32 %v227, %v832
    %v902 = vadd.f32 %v228, %v721
    %v903 = vadd.f32 %v229, %v723
    %v904 = vadd.f32 %v230, %v834
    %v905 = vadd.f32 %v231, %v836
    %v906 = vadd.f32 %v232, %v727
    %v907 = vadd.f32 %v233, %v729
    %v908 = vadd.f32 %v234, %v840
    %v909 = vadd.f32 %v235, %v842
    %v910 = vadd.f32 %v236, %v731
    %v911 = vadd.f32 %v237, %v733
    %v912 = vadd.f32 %v238, %v844
    %v913 = vadd.f32 %v239, %v846
    %v914 = vadd.f32 %v240, %v737
    %v915 = vadd.f32 %v241, %v739
    %v916 = vadd.f32 %v242, %v850
    %v917 = vadd.f32 %v243, %v852
    %v918 = vadd.f32 %v244, %v741
    %v919 = vadd.f32 %v245, %v743
    %v920 = vadd.f32 %v246, %v854
    %v921 = vadd.f32 %v247, %v856
    %922 = vst [vmem:[#allocation2] sm:$0xff] %v858
    %923 = vst [vmem:[#allocation2 + $0x8] sm:$0xff] %v859
    %924 = vst [vmem:[#allocation2 + $0x10] sm:$0xff] %v860
    %925 = vst [vmem:[#allocation2 + $0x18] sm:$0xff] %v861
    %926 = vst [vmem:[#allocation2 + $0x20] sm:$0xff] %v862
    %927 = vst [vmem:[#allocation2 + $0x28] sm:$0xff] %v863
    %928 = vst [vmem:[#allocation2 + $0x30] sm:$0xff] %v864
    %929 = vst [vmem:[#allocation2 + $0x38] sm:$0xff] %v865
    %930 = vst [vmem:[#allocation2 + $0x40] sm:$0xff] %v866
    %931 = vst [vmem:[#allocation2 + $0x48] sm:$0xff] %v867
    %932 = vst [vmem:[#allocation2 + $0x50] sm:$0xff] %v868
    %933 = vst [vmem:[#allocation2 + $0x58] sm:$0xff] %v869
    %934 = vst [vmem:[#allocation2 + $0x60] sm:$0xff] %v870
    %935 = vst [vmem:[#allocation2 + $0x68] sm:$0xff] %v871
    %936 = vst [vmem:[#allocation2 + $0x70] sm:$0xff] %v872
    %937 = vst [vmem:[#allocation2 + $0x78] sm:$0xff] %v873
    %938 = vst [vmem:[#allocation2 + $0x80] sm:$0xff] %v874
    %939 = vst [vmem:[#allocation2 + $0x88] sm:$0xff] %v875
    %940 = vst [vmem:[#allocation2 + $0x90] sm:$0xff] %v876
    %941 = vst [vmem:[#allocation2 + $0x98] sm:$0xff] %v877
    %942 = vst [vmem:[#allocation2 + $0xa0] sm:$0xff] %v878
    %943 = vst [vmem:[#allocation2 + $0xa8] sm:$0xff] %v879
    %944 = vst [vmem:[#allocation2 + $0xb0] sm:$0xff] %v880
    %945 = vst [vmem:[#allocation2 + $0xb8] sm:$0xff] %v881
    %946 = vst [vmem:[#allocation2 + $0xc0] sm:$0xff] %v882
    %947 = vst [vmem:[#allocation2 + $0xc8] sm:$0xff] %v883
    %948 = vst [vmem:[#allocation2 + $0xd0] sm:$0xff] %v884
    %949 = vst [vmem:[#allocation2 + $0xd8] sm:$0xff] %v885
    %950 = vst [vmem:[#allocation2 + $0xe0] sm:$0xff] %v886
    %951 = vst [vmem:[#allocation2 + $0xe8] sm:$0xff] %v887
    %952 = vst [vmem:[#allocation2 + $0xf0] sm:$0xff] %v888
    %953 = vst [vmem:[#allocation2 + $0xf8] sm:$0xff] %v889
    %954 = vst [vmem:[#allocation2 + $0x100] sm:$0xff] %v890
    %955 = vst [vmem:[#allocation2 + $0x108] sm:$0xff] %v891
    %956 = vst [vmem:[#allocation2 + $0x110] sm:$0xff] %v892
    %957 = vst [vmem:[#allocation2 + $0x118] sm:$0xff] %v893
    %958 = vst [vmem:[#allocation2 + $0x120] sm:$0xff] %v894
    %959 = vst [vmem:[#allocation2 + $0x128] sm:$0xff] %v895
    %960 = vst [vmem:[#allocation2 + $0x130] sm:$0xff] %v896
    %961 = vst [vmem:[#allocation2 + $0x138] sm:$0xff] %v897
    %962 = vst [vmem:[#allocation2 + $0x140] sm:$0xff] %v898
    %963 = vst [vmem:[#allocation2 + $0x148] sm:$0xff] %v899
    %964 = vst [vmem:[#allocation2 + $0x150] sm:$0xff] %v900
    %965 = vst [vmem:[#allocation2 + $0x158] sm:$0xff] %v901
    %966 = vst [vmem:[#allocation2 + $0x160] sm:$0xff] %v902
    %967 = vst [vmem:[#allocation2 + $0x168] sm:$0xff] %v903
    %968 = vst [vmem:[#allocation2 + $0x170] sm:$0xff] %v904
    %969 = vst [vmem:[#allocation2 + $0x178] sm:$0xff] %v905
    %970 = vst [vmem:[#allocation2 + $0x180] sm:$0xff] %v906
    %971 = vst [vmem:[#allocation2 + $0x188] sm:$0xff] %v907
    %972 = vst [vmem:[#allocation2 + $0x190] sm:$0xff] %v908
    %973 = vst [vmem:[#allocation2 + $0x198] sm:$0xff] %v909
    %974 = vst [vmem:[#allocation2 + $0x1a0] sm:$0xff] %v910
    %975 = vst [vmem:[#allocation2 + $0x1a8] sm:$0xff] %v911
    %976 = vst [vmem:[#allocation2 + $0x1b0] sm:$0xff] %v912
    %977 = vst [vmem:[#allocation2 + $0x1b8] sm:$0xff] %v913
    %978 = vst [vmem:[#allocation2 + $0x1c0] sm:$0xff] %v914
    %979 = vst [vmem:[#allocation2 + $0x1c8] sm:$0xff] %v915
    %980 = vst [vmem:[#allocation2 + $0x1d0] sm:$0xff] %v916
    %981 = vst [vmem:[#allocation2 + $0x1d8] sm:$0xff] %v917
    %982 = vst [vmem:[#allocation2 + $0x1e0] sm:$0xff] %v918
    %983 = vst [vmem:[#allocation2 + $0x1e8] sm:$0xff] %v919
    %984 = vst [vmem:[#allocation2 + $0x1f0] sm:$0xff] %v920
    %985 = vst [vmem:[#allocation2 + $0x1f8] sm:$0xff] %v921
    // Predicated region
    $region46: #{tpu_custom_call.1} parent=1 // pred_check
      %p986 = pneg %p68
    $region47: #{tpu_custom_call.1} parent=1 // pred_check_branch
      %988 = sbr.rel (%p986) target = $region49
    $region48: #{tpu_custom_call.1} parent=1 // pred_region
      %v989 = vld [vmem:[#allocation2] sm:$0xff]
      %v990 = vld [vmem:[#allocation2 + $0x8] sm:$0xff]
      %v991 = vld [vmem:[#allocation2 + $0x10] sm:$0xff]
      %v992 = vld [vmem:[#allocation2 + $0x18] sm:$0xff]
      %v993 = vld [vmem:[#allocation2 + $0x20] sm:$0xff]
      %v994 = vld [vmem:[#allocation2 + $0x28] sm:$0xff]
      %v995 = vld [vmem:[#allocation2 + $0x30] sm:$0xff]
      %v996 = vld [vmem:[#allocation2 + $0x38] sm:$0xff]
      %v997 = vld [vmem:[#allocation2 + $0x40] sm:$0xff]
      %v998 = vld [vmem:[#allocation2 + $0x48] sm:$0xff]
      %v999 = vld [vmem:[#allocation2 + $0x50] sm:$0xff]
      %v1000 = vld [vmem:[#allocation2 + $0x58] sm:$0xff]
      %v1001 = vld [vmem:[#allocation2 + $0x60] sm:$0xff]
      %v1002 = vld [vmem:[#allocation2 + $0x68] sm:$0xff]
      %v1003 = vld [vmem:[#allocation2 + $0x70] sm:$0xff]
      %v1004 = vld [vmem:[#allocation2 + $0x78] sm:$0xff]
      %v1005 = vld [vmem:[#allocation2 + $0x80] sm:$0xff]
      %v1006 = vld [vmem:[#allocation2 + $0x88] sm:$0xff]
      %v1007 = vld [vmem:[#allocation2 + $0x90] sm:$0xff]
      %v1008 = vld [vmem:[#allocation2 + $0x98] sm:$0xff]
      %v1009 = vld [vmem:[#allocation2 + $0xa0] sm:$0xff]
      %v1010 = vld [vmem:[#allocation2 + $0xa8] sm:$0xff]
      %v1011 = vld [vmem:[#allocation2 + $0xb0] sm:$0xff]
      %v1012 = vld [vmem:[#allocation2 + $0xb8] sm:$0xff]
      %v1013 = vld [vmem:[#allocation2 + $0xc0] sm:$0xff]
      %v1014 = vld [vmem:[#allocation2 + $0xc8] sm:$0xff]
      %v1015 = vld [vmem:[#allocation2 + $0xd0] sm:$0xff]
      %v1016 = vld [vmem:[#allocation2 + $0xd8] sm:$0xff]
      %v1017 = vld [vmem:[#allocation2 + $0xe0] sm:$0xff]
      %v1018 = vld [vmem:[#allocation2 + $0xe8] sm:$0xff]
      %v1019 = vld [vmem:[#allocation2 + $0xf0] sm:$0xff]
      %v1020 = vld [vmem:[#allocation2 + $0xf8] sm:$0xff]
      %v1021 = vld [vmem:[#allocation2 + $0x100] sm:$0xff]
      %v1022 = vld [vmem:[#allocation2 + $0x108] sm:$0xff]
      %v1023 = vld [vmem:[#allocation2 + $0x110] sm:$0xff]
      %v1024 = vld [vmem:[#allocation2 + $0x118] sm:$0xff]
      %v1025 = vld [vmem:[#allocation2 + $0x120] sm:$0xff]
      %v1026 = vld [vmem:[#allocation2 + $0x128] sm:$0xff]
      %v1027 = vld [vmem:[#allocation2 + $0x130] sm:$0xff]
      %v1028 = vld [vmem:[#allocation2 + $0x138] sm:$0xff]
      %v1029 = vld [vmem:[#allocation2 + $0x140] sm:$0xff]
      %v1030 = vld [vmem:[#allocation2 + $0x148] sm:$0xff]
      %v1031 = vld [vmem:[#allocation2 + $0x150] sm:$0xff]
      %v1032 = vld [vmem:[#allocation2 + $0x158] sm:$0xff]
      %v1033 = vld [vmem:[#allocation2 + $0x160] sm:$0xff]
      %v1034 = vld [vmem:[#allocation2 + $0x168] sm:$0xff]
      %v1035 = vld [vmem:[#allocation2 + $0x170] sm:$0xff]
      %v1036 = vld [vmem:[#allocation2 + $0x178] sm:$0xff]
      %v1037 = vld [vmem:[#allocation2 + $0x180] sm:$0xff]
      %v1038 = vld [vmem:[#allocation2 + $0x188] sm:$0xff]
      %v1039 = vld [vmem:[#allocation2 + $0x190] sm:$0xff]
      %v1040 = vld [vmem:[#allocation2 + $0x198] sm:$0xff]
      %v1041 = vld [vmem:[#allocation2 + $0x1a0] sm:$0xff]
      %v1042 = vld [vmem:[#allocation2 + $0x1a8] sm:$0xff]
      %v1043 = vld [vmem:[#allocation2 + $0x1b0] sm:$0xff]
      %v1044 = vld [vmem:[#allocation2 + $0x1b8] sm:$0xff]
      %v1045 = vld [vmem:[#allocation2 + $0x1c0] sm:$0xff]
      %v1046 = vld [vmem:[#allocation2 + $0x1c8] sm:$0xff]
      %v1047 = vld [vmem:[#allocation2 + $0x1d0] sm:$0xff]
      %v1048 = vld [vmem:[#allocation2 + $0x1d8] sm:$0xff]
      %v1049 = vld [vmem:[#allocation2 + $0x1e0] sm:$0xff]
      %v1050 = vld [vmem:[#allocation2 + $0x1e8] sm:$0xff]
      %v1051 = vld [vmem:[#allocation2 + $0x1f0] sm:$0xff]
      %v1052 = vld [vmem:[#allocation2 + $0x1f8] sm:$0xff]
      %v1053 = vld [vmem:[%s2] sm:$0xf]
      %v1055 = vlaneseq
      %v1056 = vshrl.u32 %v1055, 7
      %v1057 = vsub.s32 0, %v1056
      %v1058 = vrot.slane %v1053, %v1057
      %v1059 = vlaneseq
      %v1060 = vshrl.u32 %v1059, 7
      %v1061 = vsub.s32 1, %v1060
      %v1062 = vrot.slane %v1053, %v1061
      %v1063 = vlaneseq
      %v1064 = vshrl.u32 %v1063, 7
      %v1065 = vsub.s32 2, %v1064
      %v1066 = vrot.slane %v1053, %v1065
      %v1067 = vlaneseq
      %v1068 = vshrl.u32 %v1067, 7
      %v1069 = vsub.s32 3, %v1068
      %v1070 = vrot.slane %v1053, %v1069
      %v1075 = vadd.f32 %v989, %v1058
      %v1076 = vadd.f32 %v990, %v1062
      %v1077 = vadd.f32 %v991, %v1066
      %v1078 = vadd.f32 %v992, %v1070
      %v1079 = vadd.f32 %v993, %v1058
      %v1080 = vadd.f32 %v994, %v1062
      %v1081 = vadd.f32 %v995, %v1066
      %v1082 = vadd.f32 %v996, %v1070
      %v1083 = vadd.f32 %v997, %v1058
      %v1084 = vadd.f32 %v998, %v1062
      %v1085 = vadd.f32 %v999, %v1066
      %v1086 = vadd.f32 %v1000, %v1070
      %v1087 = vadd.f32 %v1001, %v1058
      %v1088 = vadd.f32 %v1002, %v1062
      %v1089 = vadd.f32 %v1003, %v1066
      %v1090 = vadd.f32 %v1004, %v1070
      %v1091 = vadd.f32 %v1005, %v1058
      %v1092 = vadd.f32 %v1006, %v1062
      %v1093 = vadd.f32 %v1007, %v1066
      %v1094 = vadd.f32 %v1008, %v1070
      %v1095 = vadd.f32 %v1009, %v1058
      %v1096 = vadd.f32 %v1010, %v1062
      %v1097 = vadd.f32 %v1011, %v1066
      %v1098 = vadd.f32 %v1012, %v1070
      %v1099 = vadd.f32 %v1013, %v1058
      %v1100 = vadd.f32 %v1014, %v1062
      %v1101 = vadd.f32 %v1015, %v1066
      %v1102 = vadd.f32 %v1016, %v1070
      %v1103 = vadd.f32 %v1017, %v1058
      %v1104 = vadd.f32 %v1018, %v1062
      %v1105 = vadd.f32 %v1019, %v1066
      %v1106 = vadd.f32 %v1020, %v1070
      %v1107 = vadd.f32 %v1021, %v1058
      %v1108 = vadd.f32 %v1022, %v1062
      %v1109 = vadd.f32 %v1023, %v1066
      %v1110 = vadd.f32 %v1024, %v1070
      %v1111 = vadd.f32 %v1025, %v1058
      %v1112 = vadd.f32 %v1026, %v1062
      %v1113 = vadd.f32 %v1027, %v1066
      %v1114 = vadd.f32 %v1028, %v1070
      %v1115 = vadd.f32 %v1029, %v1058
      %v1116 = vadd.f32 %v1030, %v1062
      %v1117 = vadd.f32 %v1031, %v1066
      %v1118 = vadd.f32 %v1032, %v1070
      %v1119 = vadd.f32 %v1033, %v1058
      %v1120 = vadd.f32 %v1034, %v1062
      %v1121 = vadd.f32 %v1035, %v1066
      %v1122 = vadd.f32 %v1036, %v1070
      %v1123 = vadd.f32 %v1037, %v1058
      %v1124 = vadd.f32 %v1038, %v1062
      %v1125 = vadd.f32 %v1039, %v1066
      %v1126 = vadd.f32 %v1040, %v1070
      %v1127 = vadd.f32 %v1041, %v1058
      %v1128 = vadd.f32 %v1042, %v1062
      %v1129 = vadd.f32 %v1043, %v1066
      %v1130 = vadd.f32 %v1044, %v1070
      %v1131 = vadd.f32 %v1045, %v1058
      %v1132 = vadd.f32 %v1046, %v1062
      %v1133 = vadd.f32 %v1047, %v1066
      %v1134 = vadd.f32 %v1048, %v1070
      %v1135 = vadd.f32 %v1049, %v1058
      %v1136 = vadd.f32 %v1050, %v1062
      %v1137 = vadd.f32 %v1051, %v1066
      %v1138 = vadd.f32 %v1052, %v1070
      %vm1139 = vcmp.gt.f32.partialorder %v1075, 0.0
      %vm1140 = vcmp.gt.f32.partialorder %v1076, 0.0
      %vm1141 = vcmp.gt.f32.partialorder %v1077, 0.0
      %vm1142 = vcmp.gt.f32.partialorder %v1078, 0.0
      %vm1143 = vcmp.gt.f32.partialorder %v1079, 0.0
      %vm1144 = vcmp.gt.f32.partialorder %v1080, 0.0
      %vm1145 = vcmp.gt.f32.partialorder %v1081, 0.0
      %vm1146 = vcmp.gt.f32.partialorder %v1082, 0.0
      %vm1147 = vcmp.gt.f32.partialorder %v1083, 0.0
      %vm1148 = vcmp.gt.f32.partialorder %v1084, 0.0
      %vm1149 = vcmp.gt.f32.partialorder %v1085, 0.0
      %vm1150 = vcmp.gt.f32.partialorder %v1086, 0.0
      %vm1151 = vcmp.gt.f32.partialorder %v1087, 0.0
      %vm1152 = vcmp.gt.f32.partialorder %v1088, 0.0
      %vm1153 = vcmp.gt.f32.partialorder %v1089, 0.0
      %vm1154 = vcmp.gt.f32.partialorder %v1090, 0.0
      %vm1155 = vcmp.gt.f32.partialorder %v1091, 0.0
      %vm1156 = vcmp.gt.f32.partialorder %v1092, 0.0
      %vm1157 = vcmp.gt.f32.partialorder %v1093, 0.0
      %vm1158 = vcmp.gt.f32.partialorder %v1094, 0.0
      %vm1159 = vcmp.gt.f32.partialorder %v1095, 0.0
      %vm1160 = vcmp.gt.f32.partialorder %v1096, 0.0
      %vm1161 = vcmp.gt.f32.partialorder %v1097, 0.0
      %vm1162 = vcmp.gt.f32.partialorder %v1098, 0.0
      %vm1163 = vcmp.gt.f32.partialorder %v1099, 0.0
      %vm1164 = vcmp.gt.f32.partialorder %v1100, 0.0
      %vm1165 = vcmp.gt.f32.partialorder %v1101, 0.0
      %vm1166 = vcmp.gt.f32.partialorder %v1102, 0.0
      %vm1167 = vcmp.gt.f32.partialorder %v1103, 0.0
      %vm1168 = vcmp.gt.f32.partialorder %v1104, 0.0
      %vm1169 = vcmp.gt.f32.partialorder %v1105, 0.0
      %vm1170 = vcmp.gt.f32.partialorder %v1106, 0.0
      %vm1171 = vcmp.gt.f32.partialorder %v1107, 0.0
      %vm1172 = vcmp.gt.f32.partialorder %v1108, 0.0
      %vm1173 = vcmp.gt.f32.partialorder %v1109, 0.0
      %vm1174 = vcmp.gt.f32.partialorder %v1110, 0.0
      %vm1175 = vcmp.gt.f32.partialorder %v1111, 0.0
      %vm1176 = vcmp.gt.f32.partialorder %v1112, 0.0
      %vm1177 = vcmp.gt.f32.partialorder %v1113, 0.0
      %vm1178 = vcmp.gt.f32.partialorder %v1114, 0.0
      %vm1179 = vcmp.gt.f32.partialorder %v1115, 0.0
      %vm1180 = vcmp.gt.f32.partialorder %v1116, 0.0
      %vm1181 = vcmp.gt.f32.partialorder %v1117, 0.0
      %vm1182 = vcmp.gt.f32.partialorder %v1118, 0.0
      %vm1183 = vcmp.gt.f32.partialorder %v1119, 0.0
      %vm1184 = vcmp.gt.f32.partialorder %v1120, 0.0
      %vm1185 = vcmp.gt.f32.partialorder %v1121, 0.0
      %vm1186 = vcmp.gt.f32.partialorder %v1122, 0.0
      %vm1187 = vcmp.gt.f32.partialorder %v1123, 0.0
      %vm1188 = vcmp.gt.f32.partialorder %v1124, 0.0
      %vm1189 = vcmp.gt.f32.partialorder %v1125, 0.0
      %vm1190 = vcmp.gt.f32.partialorder %v1126, 0.0
      %vm1191 = vcmp.gt.f32.partialorder %v1127, 0.0
      %vm1192 = vcmp.gt.f32.partialorder %v1128, 0.0
      %vm1193 = vcmp.gt.f32.partialorder %v1129, 0.0
      %vm1194 = vcmp.gt.f32.partialorder %v1130, 0.0
      %vm1195 = vcmp.gt.f32.partialorder %v1131, 0.0
      %vm1196 = vcmp.gt.f32.partialorder %v1132, 0.0
      %vm1197 = vcmp.gt.f32.partialorder %v1133, 0.0
      %vm1198 = vcmp.gt.f32.partialorder %v1134, 0.0
      %vm1199 = vcmp.gt.f32.partialorder %v1135, 0.0
      %vm1200 = vcmp.gt.f32.partialorder %v1136, 0.0
      %vm1201 = vcmp.gt.f32.partialorder %v1137, 0.0
      %vm1202 = vcmp.gt.f32.partialorder %v1138, 0.0
      %v1203 = vmul.f32 %v1075, 0.2
      %v1204 = vmul.f32 %v1076, 0.2
      %v1205 = vmul.f32 %v1077, 0.2
      %v1206 = vmul.f32 %v1078, 0.2
      %v1207 = vmul.f32 %v1079, 0.2
      %v1208 = vmul.f32 %v1080, 0.2
      %v1209 = vmul.f32 %v1081, 0.2
      %v1210 = vmul.f32 %v1082, 0.2
      %v1211 = vmul.f32 %v1083, 0.2
      %v1212 = vmul.f32 %v1084, 0.2
      %v1213 = vmul.f32 %v1085, 0.2
      %v1214 = vmul.f32 %v1086, 0.2
      %v1215 = vmul.f32 %v1087, 0.2
      %v1216 = vmul.f32 %v1088, 0.2
      %v1217 = vmul.f32 %v1089, 0.2
      %v1218 = vmul.f32 %v1090, 0.2
      %v1219 = vmul.f32 %v1091, 0.2
      %v1220 = vmul.f32 %v1092, 0.2
      %v1221 = vmul.f32 %v1093, 0.2
      %v1222 = vmul.f32 %v1094, 0.2
      %v1223 = vmul.f32 %v1095, 0.2
      %v1224 = vmul.f32 %v1096, 0.2
      %v1225 = vmul.f32 %v1097, 0.2
      %v1226 = vmul.f32 %v1098, 0.2
      %v1227 = vmul.f32 %v1099, 0.2
      %v1228 = vmul.f32 %v1100, 0.2
      %v1229 = vmul.f32 %v1101, 0.2
      %v1230 = vmul.f32 %v1102, 0.2
      %v1231 = vmul.f32 %v1103, 0.2
      %v1232 = vmul.f32 %v1104, 0.2
      %v1233 = vmul.f32 %v1105, 0.2
      %v1234 = vmul.f32 %v1106, 0.2
      %v1235 = vmul.f32 %v1107, 0.2
      %v1236 = vmul.f32 %v1108, 0.2
      %v1237 = vmul.f32 %v1109, 0.2
      %v1238 = vmul.f32 %v1110, 0.2
      %v1239 = vmul.f32 %v1111, 0.2
      %v1240 = vmul.f32 %v1112, 0.2
      %v1241 = vmul.f32 %v1113, 0.2
      %v1242 = vmul.f32 %v1114, 0.2
      %v1243 = vmul.f32 %v1115, 0.2
      %v1244 = vmul.f32 %v1116, 0.2
      %v1245 = vmul.f32 %v1117, 0.2
      %v1246 = vmul.f32 %v1118, 0.2
      %v1247 = vmul.f32 %v1119, 0.2
      %v1248 = vmul.f32 %v1120, 0.2
      %v1249 = vmul.f32 %v1121, 0.2
      %v1250 = vmul.f32 %v1122, 0.2
      %v1251 = vmul.f32 %v1123, 0.2
      %v1252 = vmul.f32 %v1124, 0.2
      %v1253 = vmul.f32 %v1125, 0.2
      %v1254 = vmul.f32 %v1126, 0.2
      %v1255 = vmul.f32 %v1127, 0.2
      %v1256 = vmul.f32 %v1128, 0.2
      %v1257 = vmul.f32 %v1129, 0.2
      %v1258 = vmul.f32 %v1130, 0.2
      %v1259 = vmul.f32 %v1131, 0.2
      %v1260 = vmul.f32 %v1132, 0.2
      %v1261 = vmul.f32 %v1133, 0.2
      %v1262 = vmul.f32 %v1134, 0.2
      %v1263 = vmul.f32 %v1135, 0.2
      %v1264 = vmul.f32 %v1136, 0.2
      %v1265 = vmul.f32 %v1137, 0.2
      %v1266 = vmul.f32 %v1138, 0.2
      %v1267 = vsel %vm1139, %v1075, %v1203
      %v1268 = vsel %vm1140, %v1076, %v1204
      %v1269 = vsel %vm1141, %v1077, %v1205
      %v1270 = vsel %vm1142, %v1078, %v1206
      %v1271 = vsel %vm1143, %v1079, %v1207
      %v1272 = vsel %vm1144, %v1080, %v1208
      %v1273 = vsel %vm1145, %v1081, %v1209
      %v1274 = vsel %vm1146, %v1082, %v1210
      %v1275 = vsel %vm1147, %v1083, %v1211
      %v1276 = vsel %vm1148, %v1084, %v1212
      %v1277 = vsel %vm1149, %v1085, %v1213
      %v1278 = vsel %vm1150, %v1086, %v1214
      %v1279 = vsel %vm1151, %v1087, %v1215
      %v1280 = vsel %vm1152, %v1088, %v1216
      %v1281 = vsel %vm1153, %v1089, %v1217
      %v1282 = vsel %vm1154, %v1090, %v1218
      %v1283 = vsel %vm1155, %v1091, %v1219
      %v1284 = vsel %vm1156, %v1092, %v1220
      %v1285 = vsel %vm1157, %v1093, %v1221
      %v1286 = vsel %vm1158, %v1094, %v1222
      %v1287 = vsel %vm1159, %v1095, %v1223
      %v1288 = vsel %vm1160, %v1096, %v1224
      %v1289 = vsel %vm1161, %v1097, %v1225
      %v1290 = vsel %vm1162, %v1098, %v1226
      %v1291 = vsel %vm1163, %v1099, %v1227
      %v1292 = vsel %vm1164, %v1100, %v1228
      %v1293 = vsel %vm1165, %v1101, %v1229
      %v1294 = vsel %vm1166, %v1102, %v1230
      %v1295 = vsel %vm1167, %v1103, %v1231
      %v1296 = vsel %vm1168, %v1104, %v1232
      %v1297 = vsel %vm1169, %v1105, %v1233
      %v1298 = vsel %vm1170, %v1106, %v1234
      %v1299 = vsel %vm1171, %v1107, %v1235
      %v1300 = vsel %vm1172, %v1108, %v1236
      %v1301 = vsel %vm1173, %v1109, %v1237
      %v1302 = vsel %vm1174, %v1110, %v1238
      %v1303 = vsel %vm1175, %v1111, %v1239
      %v1304 = vsel %vm1176, %v1112, %v1240
      %v1305 = vsel %vm1177, %v1113, %v1241
      %v1306 = vsel %vm1178, %v1114, %v1242
      %v1307 = vsel %vm1179, %v1115, %v1243
      %v1308 = vsel %vm1180, %v1116, %v1244
      %v1309 = vsel %vm1181, %v1117, %v1245
      %v1310 = vsel %vm1182, %v1118, %v1246
      %v1311 = vsel %vm1183, %v1119, %v1247
      %v1312 = vsel %vm1184, %v1120, %v1248
      %v1313 = vsel %vm1185, %v1121, %v1249
      %v1314 = vsel %vm1186, %v1122, %v1250
      %v1315 = vsel %vm1187, %v1123, %v1251
      %v1316 = vsel %vm1188, %v1124, %v1252
      %v1317 = vsel %vm1189, %v1125, %v1253
      %v1318 = vsel %vm1190, %v1126, %v1254
      %v1319 = vsel %vm1191, %v1127, %v1255
      %v1320 = vsel %vm1192, %v1128, %v1256
      %v1321 = vsel %vm1193, %v1129, %v1257
      %v1322 = vsel %vm1194, %v1130, %v1258
      %v1323 = vsel %vm1195, %v1131, %v1259
      %v1324 = vsel %vm1196, %v1132, %v1260
      %v1325 = vsel %vm1197, %v1133, %v1261
      %v1326 = vsel %vm1198, %v1134, %v1262
      %v1327 = vsel %vm1199, %v1135, %v1263
      %v1328 = vsel %vm1200, %v1136, %v1264
      %v1329 = vsel %vm1201, %v1137, %v1265
      %v1330 = vsel %vm1202, %v1138, %v1266
      %v1331 = vpack.c.bf16 %v1271, %v1267
      %v1332 = vpack.c.bf16 %v1272, %v1268
      %v1333 = vpack.c.bf16 %v1273, %v1269
      %v1334 = vpack.c.bf16 %v1274, %v1270
      %v1335 = vpack.c.bf16 %v1279, %v1275
      %v1336 = vpack.c.bf16 %v1280, %v1276
      %v1337 = vpack.c.bf16 %v1281, %v1277
      %v1338 = vpack.c.bf16 %v1282, %v1278
      %v1339 = vpack.c.bf16 %v1287, %v1283
      %v1340 = vpack.c.bf16 %v1288, %v1284
      %v1341 = vpack.c.bf16 %v1289, %v1285
      %v1342 = vpack.c.bf16 %v1290, %v1286
      %v1343 = vpack.c.bf16 %v1295, %v1291
      %v1344 = vpack.c.bf16 %v1296, %v1292
      %v1345 = vpack.c.bf16 %v1297, %v1293
      %v1346 = vpack.c.bf16 %v1298, %v1294
      %v1347 = vpack.c.bf16 %v1303, %v1299
      %v1348 = vpack.c.bf16 %v1304, %v1300
      %v1349 = vpack.c.bf16 %v1305, %v1301
      %v1350 = vpack.c.bf16 %v1306, %v1302
      %v1351 = vpack.c.bf16 %v1311, %v1307
      %v1352 = vpack.c.bf16 %v1312, %v1308
      %v1353 = vpack.c.bf16 %v1313, %v1309
      %v1354 = vpack.c.bf16 %v1314, %v1310
      %v1355 = vpack.c.bf16 %v1319, %v1315
      %v1356 = vpack.c.bf16 %v1320, %v1316
      %v1357 = vpack.c.bf16 %v1321, %v1317
      %v1358 = vpack.c.bf16 %v1322, %v1318
      %v1359 = vpack.c.bf16 %v1327, %v1323
      %v1360 = vpack.c.bf16 %v1328, %v1324
      %v1361 = vpack.c.bf16 %v1329, %v1325
      %v1362 = vpack.c.bf16 %v1330, %v1326
      %v1363 = vld [vmem:[#allocation8] sm:$0xff]
      %v1364 = vld [vmem:[#allocation8 + $0x8] sm:$0xff]
      %v1365 = vld [vmem:[#allocation8 + $0x10] sm:$0xff]
      %v1366 = vld [vmem:[#allocation8 + $0x18] sm:$0xff]
      %v1367 = vld [vmem:[#allocation8 + $0x20] sm:$0xff]
      %v1368 = vld [vmem:[#allocation8 + $0x28] sm:$0xff]
      %v1369 = vld [vmem:[#allocation8 + $0x30] sm:$0xff]
      %v1370 = vld [vmem:[#allocation8 + $0x38] sm:$0xff]
      %v1371 = vld [vmem:[#allocation8 + $0x40] sm:$0xff]
      %v1372 = vld [vmem:[#allocation8 + $0x48] sm:$0xff]
      %v1373 = vld [vmem:[#allocation8 + $0x50] sm:$0xff]
      %v1374 = vld [vmem:[#allocation8 + $0x58] sm:$0xff]
      %v1375 = vld [vmem:[#allocation8 + $0x60] sm:$0xff]
      %v1376 = vld [vmem:[#allocation8 + $0x68] sm:$0xff]
      %v1377 = vld [vmem:[#allocation8 + $0x70] sm:$0xff]
      %v1378 = vld [vmem:[#allocation8 + $0x78] sm:$0xff]
      %v1379 = vld [vmem:[#allocation8 + $0x80] sm:$0xff]
      %v1380 = vld [vmem:[#allocation8 + $0x88] sm:$0xff]
      %v1381 = vld [vmem:[#allocation8 + $0x90] sm:$0xff]
      %v1382 = vld [vmem:[#allocation8 + $0x98] sm:$0xff]
      %v1383 = vld [vmem:[#allocation8 + $0xa0] sm:$0xff]
      %v1384 = vld [vmem:[#allocation8 + $0xa8] sm:$0xff]
      %v1385 = vld [vmem:[#allocation8 + $0xb0] sm:$0xff]
      %v1386 = vld [vmem:[#allocation8 + $0xb8] sm:$0xff]
      %v1387 = vld [vmem:[#allocation8 + $0xc0] sm:$0xff]
      %v1388 = vld [vmem:[#allocation8 + $0xc8] sm:$0xff]
      %v1389 = vld [vmem:[#allocation8 + $0xd0] sm:$0xff]
      %v1390 = vld [vmem:[#allocation8 + $0xd8] sm:$0xff]
      %v1391 = vld [vmem:[#allocation8 + $0xe0] sm:$0xff]
      %v1392 = vld [vmem:[#allocation8 + $0xe8] sm:$0xff]
      %v1393 = vld [vmem:[#allocation8 + $0xf0] sm:$0xff]
      %v1394 = vld [vmem:[#allocation8 + $0xf8] sm:$0xff]
      %v1395 = vld [vmem:[#allocation8 + $0x100] sm:$0xff]
      %v1396 = vld [vmem:[#allocation8 + $0x108] sm:$0xff]
      %v1397 = vld [vmem:[#allocation8 + $0x110] sm:$0xff]
      %v1398 = vld [vmem:[#allocation8 + $0x118] sm:$0xff]
      %v1399 = vld [vmem:[#allocation8 + $0x120] sm:$0xff]
      %v1400 = vld [vmem:[#allocation8 + $0x128] sm:$0xff]
      %v1401 = vld [vmem:[#allocation8 + $0x130] sm:$0xff]
      %v1402 = vld [vmem:[#allocation8 + $0x138] sm:$0xff]
      %v1403 = vld [vmem:[#allocation8 + $0x140] sm:$0xff]
      %v1404 = vld [vmem:[#allocation8 + $0x148] sm:$0xff]
      %v1405 = vld [vmem:[#allocation8 + $0x150] sm:$0xff]
      %v1406 = vld [vmem:[#allocation8 + $0x158] sm:$0xff]
      %v1407 = vld [vmem:[#allocation8 + $0x160] sm:$0xff]
      %v1408 = vld [vmem:[#allocation8 + $0x168] sm:$0xff]
      %v1409 = vld [vmem:[#allocation8 + $0x170] sm:$0xff]
      %v1410 = vld [vmem:[#allocation8 + $0x178] sm:$0xff]
      %v1411 = vld [vmem:[#allocation8 + $0x180] sm:$0xff]
      %v1412 = vld [vmem:[#allocation8 + $0x188] sm:$0xff]
      %v1413 = vld [vmem:[#allocation8 + $0x190] sm:$0xff]
      %v1414 = vld [vmem:[#allocation8 + $0x198] sm:$0xff]
      %v1415 = vld [vmem:[#allocation8 + $0x1a0] sm:$0xff]
      %v1416 = vld [vmem:[#allocation8 + $0x1a8] sm:$0xff]
      %v1417 = vld [vmem:[#allocation8 + $0x1b0] sm:$0xff]
      %v1418 = vld [vmem:[#allocation8 + $0x1b8] sm:$0xff]
      %v1419 = vld [vmem:[#allocation8 + $0x1c0] sm:$0xff]
      %v1420 = vld [vmem:[#allocation8 + $0x1c8] sm:$0xff]
      %v1421 = vld [vmem:[#allocation8 + $0x1d0] sm:$0xff]
      %v1422 = vld [vmem:[#allocation8 + $0x1d8] sm:$0xff]
      %v1423 = vld [vmem:[#allocation8 + $0x1e0] sm:$0xff]
      %v1424 = vld [vmem:[#allocation8 + $0x1e8] sm:$0xff]
      %v1425 = vld [vmem:[#allocation8 + $0x1f0] sm:$0xff]
      %v1426 = vld [vmem:[#allocation8 + $0x1f8] sm:$0xff]
      %v1427 = vld [vmem:[%s4] sm:$0x3]
      %v1429 = vlaneseq
      %v1430 = vshrl.u32 %v1429, 7
      %v1431 = vsub.s32 0, %v1430
      %v1432 = vrot.slane %v1427, %v1431
      %v1433 = vlaneseq
      %v1434 = vshrl.u32 %v1433, 7
      %v1435 = vsub.s32 1, %v1434
      %v1436 = vrot.slane %v1427, %v1435
      %v1503 = vunpack.c.l.b16 %v1363
      %v1504 = vunpack.c.h.b16 %v1363
      %v1505 = vunpack.c.l.b16 %v1364
      %v1506 = vunpack.c.h.b16 %v1364
      %v1507 = vunpack.c.l.b16 %v1365
      %v1508 = vunpack.c.h.b16 %v1365
      %v1509 = vunpack.c.l.b16 %v1366
      %v1510 = vunpack.c.h.b16 %v1366
      %v1511 = vunpack.c.l.b16 %v1367
      %v1512 = vunpack.c.h.b16 %v1367
      %v1513 = vunpack.c.l.b16 %v1368
      %v1514 = vunpack.c.h.b16 %v1368
      %v1515 = vunpack.c.l.b16 %v1369
      %v1516 = vunpack.c.h.b16 %v1369
      %v1517 = vunpack.c.l.b16 %v1370
      %v1518 = vunpack.c.h.b16 %v1370
      %v1519 = vunpack.c.l.b16 %v1371
      %v1520 = vunpack.c.h.b16 %v1371
      %v1521 = vunpack.c.l.b16 %v1372
      %v1522 = vunpack.c.h.b16 %v1372
      %v1523 = vunpack.c.l.b16 %v1373
      %v1524 = vunpack.c.h.b16 %v1373
      %v1525 = vunpack.c.l.b16 %v1374
      %v1526 = vunpack.c.h.b16 %v1374
      %v1527 = vunpack.c.l.b16 %v1375
      %v1528 = vunpack.c.h.b16 %v1375
      %v1529 = vunpack.c.l.b16 %v1376
      %v1530 = vunpack.c.h.b16 %v1376
      %v1531 = vunpack.c.l.b16 %v1377
      %v1532 = vunpack.c.h.b16 %v1377
      %v1533 = vunpack.c.l.b16 %v1378
      %v1534 = vunpack.c.h.b16 %v1378
      %v1535 = vunpack.c.l.b16 %v1379
      %v1536 = vunpack.c.h.b16 %v1379
      %v1537 = vunpack.c.l.b16 %v1380
      %v1538 = vunpack.c.h.b16 %v1380
      %v1539 = vunpack.c.l.b16 %v1381
      %v1540 = vunpack.c.h.b16 %v1381
      %v1541 = vunpack.c.l.b16 %v1382
      %v1542 = vunpack.c.h.b16 %v1382
      %v1543 = vunpack.c.l.b16 %v1383
      %v1544 = vunpack.c.h.b16 %v1383
      %v1545 = vunpack.c.l.b16 %v1384
      %v1546 = vunpack.c.h.b16 %v1384
      %v1547 = vunpack.c.l.b16 %v1385
      %v1548 = vunpack.c.h.b16 %v1385
      %v1549 = vunpack.c.l.b16 %v1386
      %v1550 = vunpack.c.h.b16 %v1386
      %v1551 = vunpack.c.l.b16 %v1387
      %v1552 = vunpack.c.h.b16 %v1387
      %v1553 = vunpack.c.l.b16 %v1388
      %v1554 = vunpack.c.h.b16 %v1388
      %v1555 = vunpack.c.l.b16 %v1389
      %v1556 = vunpack.c.h.b16 %v1389
      %v1557 = vunpack.c.l.b16 %v1390
      %v1558 = vunpack.c.h.b16 %v1390
      %v1559 = vunpack.c.l.b16 %v1391
      %v1560 = vunpack.c.h.b16 %v1391
      %v1561 = vunpack.c.l.b16 %v1392
      %v1562 = vunpack.c.h.b16 %v1392
      %v1563 = vunpack.c.l.b16 %v1393
      %v1564 = vunpack.c.h.b16 %v1393
      %v1565 = vunpack.c.l.b16 %v1394
      %v1566 = vunpack.c.h.b16 %v1394
      %v1567 = vunpack.c.l.b16 %v1395
      %v1568 = vunpack.c.h.b16 %v1395
      %v1569 = vunpack.c.l.b16 %v1396
      %v1570 = vunpack.c.h.b16 %v1396
      %v1571 = vunpack.c.l.b16 %v1397
      %v1572 = vunpack.c.h.b16 %v1397
      %v1573 = vunpack.c.l.b16 %v1398
      %v1574 = vunpack.c.h.b16 %v1398
      %v1575 = vunpack.c.l.b16 %v1399
      %v1576 = vunpack.c.h.b16 %v1399
      %v1577 = vunpack.c.l.b16 %v1400
      %v1578 = vunpack.c.h.b16 %v1400
      %v1579 = vunpack.c.l.b16 %v1401
      %v1580 = vunpack.c.h.b16 %v1401
      %v1581 = vunpack.c.l.b16 %v1402
      %v1582 = vunpack.c.h.b16 %v1402
      %v1583 = vunpack.c.l.b16 %v1403
      %v1584 = vunpack.c.h.b16 %v1403
      %v1585 = vunpack.c.l.b16 %v1404
      %v1586 = vunpack.c.h.b16 %v1404
      %v1587 = vunpack.c.l.b16 %v1405
      %v1588 = vunpack.c.h.b16 %v1405
      %v1589 = vunpack.c.l.b16 %v1406
      %v1590 = vunpack.c.h.b16 %v1406
      %v1591 = vunpack.c.l.b16 %v1407
      %v1592 = vunpack.c.h.b16 %v1407
      %v1593 = vunpack.c.l.b16 %v1408
      %v1594 = vunpack.c.h.b16 %v1408
      %v1595 = vunpack.c.l.b16 %v1409
      %v1596 = vunpack.c.h.b16 %v1409
      %v1597 = vunpack.c.l.b16 %v1410
      %v1598 = vunpack.c.h.b16 %v1410
      %v1599 = vunpack.c.l.b16 %v1411
      %v1600 = vunpack.c.h.b16 %v1411
      %v1601 = vunpack.c.l.b16 %v1412
      %v1602 = vunpack.c.h.b16 %v1412
      %v1603 = vunpack.c.l.b16 %v1413
      %v1604 = vunpack.c.h.b16 %v1413
      %v1605 = vunpack.c.l.b16 %v1414
      %v1606 = vunpack.c.h.b16 %v1414
      %v1607 = vunpack.c.l.b16 %v1415
      %v1608 = vunpack.c.h.b16 %v1415
      %v1609 = vunpack.c.l.b16 %v1416
      %v1610 = vunpack.c.h.b16 %v1416
      %v1611 = vunpack.c.l.b16 %v1417
      %v1612 = vunpack.c.h.b16 %v1417
      %v1613 = vunpack.c.l.b16 %v1418
      %v1614 = vunpack.c.h.b16 %v1418
      %v1615 = vunpack.c.l.b16 %v1419
      %v1616 = vunpack.c.h.b16 %v1419
      %v1617 = vunpack.c.l.b16 %v1420
      %v1618 = vunpack.c.h.b16 %v1420
      %v1619 = vunpack.c.l.b16 %v1421
      %v1620 = vunpack.c.h.b16 %v1421
      %v1621 = vunpack.c.l.b16 %v1422
      %v1622 = vunpack.c.h.b16 %v1422
      %v1623 = vunpack.c.l.b16 %v1423
      %v1624 = vunpack.c.h.b16 %v1423
      %v1625 = vunpack.c.l.b16 %v1424
      %v1626 = vunpack.c.h.b16 %v1424
      %v1627 = vunpack.c.l.b16 %v1425
      %v1628 = vunpack.c.h.b16 %v1425
      %v1629 = vunpack.c.l.b16 %v1426
      %v1630 = vunpack.c.h.b16 %v1426
      %v1631 = vpack.c.b16 %v1505, %v1503
      %v1632 = vpack.c.b16 %v1506, %v1504
      %v1633 = vpack.c.b16 %v1509, %v1507
      %v1634 = vpack.c.b16 %v1510, %v1508
      %v1635 = vpack.c.b16 %v1513, %v1511
      %v1636 = vpack.c.b16 %v1514, %v1512
      %v1637 = vpack.c.b16 %v1517, %v1515
      %v1638 = vpack.c.b16 %v1518, %v1516
      %v1639 = vpack.c.b16 %v1521, %v1519
      %v1640 = vpack.c.b16 %v1522, %v1520
      %v1641 = vpack.c.b16 %v1525, %v1523
      %v1642 = vpack.c.b16 %v1526, %v1524
      %v1643 = vpack.c.b16 %v1529, %v1527
      %v1644 = vpack.c.b16 %v1530, %v1528
      %v1645 = vpack.c.b16 %v1533, %v1531
      %v1646 = vpack.c.b16 %v1534, %v1532
      %v1647 = vpack.c.b16 %v1537, %v1535
      %v1648 = vpack.c.b16 %v1538, %v1536
      %v1649 = vpack.c.b16 %v1541, %v1539
      %v1650 = vpack.c.b16 %v1542, %v1540
      %v1651 = vpack.c.b16 %v1545, %v1543
      %v1652 = vpack.c.b16 %v1546, %v1544
      %v1653 = vpack.c.b16 %v1549, %v1547
      %v1654 = vpack.c.b16 %v1550, %v1548
      %v1655 = vpack.c.b16 %v1553, %v1551
      %v1656 = vpack.c.b16 %v1554, %v1552
      %v1657 = vpack.c.b16 %v1557, %v1555
      %v1658 = vpack.c.b16 %v1558, %v1556
      %v1659 = vpack.c.b16 %v1561, %v1559
      %v1660 = vpack.c.b16 %v1562, %v1560
      %v1661 = vpack.c.b16 %v1565, %v1563
      %v1662 = vpack.c.b16 %v1566, %v1564
      %v1663 = vpack.c.b16 %v1569, %v1567
      %v1664 = vpack.c.b16 %v1570, %v1568
      %v1665 = vpack.c.b16 %v1573, %v1571
      %v1666 = vpack.c.b16 %v1574, %v1572
      %v1667 = vpack.c.b16 %v1577, %v1575
      %v1668 = vpack.c.b16 %v1578, %v1576
      %v1669 = vpack.c.b16 %v1581, %v1579
      %v1670 = vpack.c.b16 %v1582, %v1580
      %v1671 = vpack.c.b16 %v1585, %v1583
      %v1672 = vpack.c.b16 %v1586, %v1584
      %v1673 = vpack.c.b16 %v1589, %v1587
      %v1674 = vpack.c.b16 %v1590, %v1588
      %v1675 = vpack.c.b16 %v1593, %v1591
      %v1676 = vpack.c.b16 %v1594, %v1592
      %v1677 = vpack.c.b16 %v1597, %v1595
      %v1678 = vpack.c.b16 %v1598, %v1596
      %v1679 = vpack.c.b16 %v1601, %v1599
      %v1680 = vpack.c.b16 %v1602, %v1600
      %v1681 = vpack.c.b16 %v1605, %v1603
      %v1682 = vpack.c.b16 %v1606, %v1604
      %v1683 = vpack.c.b16 %v1609, %v1607
      %v1684 = vpack.c.b16 %v1610, %v1608
      %v1685 = vpack.c.b16 %v1613, %v1611
      %v1686 = vpack.c.b16 %v1614, %v1612
      %v1687 = vpack.c.b16 %v1617, %v1615
      %v1688 = vpack.c.b16 %v1618, %v1616
      %v1689 = vpack.c.b16 %v1621, %v1619
      %v1690 = vpack.c.b16 %v1622, %v1620
      %v1691 = vpack.c.b16 %v1625, %v1623
      %v1692 = vpack.c.b16 %v1626, %v1624
      %v1693 = vpack.c.b16 %v1629, %v1627
      %v1694 = vpack.c.b16 %v1630, %v1628
      %1759 = vmatprep.subr.bf16.mxu0 %v1632
      %1760 = vmatpush1.bf16.msra.mxu0 %v1631
      %1761 = vmatprep.subr.bf16.mxu0 %v1634
      %1762 = vmatpush1.bf16.msra.mxu0 %v1633
      %1763 = vmatprep.subr.bf16.mxu0 %v1636
      %1764 = vmatpush1.bf16.msra.mxu0 %v1635
      %1765 = vmatprep.subr.bf16.mxu0 %v1638
      %1766 = vmatpush1.bf16.msra.mxu0 %v1637
      %1767 = vmatprep.subr.bf16.mxu0 %v1640
      %1768 = vmatpush1.bf16.msra.mxu0 %v1639
      %1769 = vmatprep.subr.bf16.mxu0 %v1642
      %1770 = vmatpush1.bf16.msra.mxu0 %v1641
      %1771 = vmatprep.subr.bf16.mxu0 %v1644
      %1772 = vmatpush1.bf16.msra.mxu0 %v1643
      %1773 = vmatprep.subr.bf16.mxu0 %v1646
      %1774 = vmatpush1.bf16.msra.mxu0 %v1645
      %1775 = vmatprep.subr.bf16.mxu0 %v1648
      %1776 = vmatpush1.bf16.msra.mxu0 %v1647
      %1777 = vmatprep.subr.bf16.mxu0 %v1650
      %1778 = vmatpush1.bf16.msra.mxu0 %v1649
      %1779 = vmatprep.subr.bf16.mxu0 %v1652
      %1780 = vmatpush1.bf16.msra.mxu0 %v1651
      %1781 = vmatprep.subr.bf16.mxu0 %v1654
      %1782 = vmatpush1.bf16.msra.mxu0 %v1653
      %1783 = vmatprep.subr.bf16.mxu0 %v1656
      %1784 = vmatpush1.bf16.msra.mxu0 %v1655
      %1785 = vmatprep.subr.bf16.mxu0 %v1658
      %1786 = vmatpush1.bf16.msra.mxu0 %v1657
      %1787 = vmatprep.subr.bf16.mxu0 %v1660
      %1788 = vmatpush1.bf16.msra.mxu0 %v1659
      %1789 = vmatprep.subr.bf16.mxu0 %v1662
      %1790 = vmatpush1.bf16.msra.mxu0 %v1661
      %1791 = vmatprep.mubr.bf16.mxu0 %v1332
      %1792 = vmatmul.mubr.bf16.gmra.mrb[0].mxu0 %v1331
      %v1793 = vpop.f32.mrb[0].mxu0
      %v1794 = vadd.f32 %v1432, %v1793
      %v1795 = vpop.f32.mrb[0].mxu0
      %v1796 = vadd.f32 %v1436, %v1795
      %v1797 = vpop.f32.mrb[0].mxu0
      %v1798 = vadd.f32 %v1432, %v1797
      %v1799 = vpop.f32.mrb[0].mxu0
      %v1800 = vadd.f32 %v1436, %v1799
      %1801 = vmatprep.mubr.bf16.mxu0 %v1336
      %1802 = vmatmul.mubr.bf16.gmra.mrb[0].mxu0 %v1335
      %v1803 = vpop.f32.mrb[0].mxu0
      %v1804 = vadd.f32 %v1432, %v1803
      %v1805 = vpop.f32.mrb[0].mxu0
      %v1806 = vadd.f32 %v1436, %v1805
      %v1807 = vpop.f32.mrb[0].mxu0
      %v1808 = vadd.f32 %v1432, %v1807
      %v1809 = vpop.f32.mrb[0].mxu0
      %v1810 = vadd.f32 %v1436, %v1809
      %1811 = vmatprep.mubr.bf16.mxu0 %v1340
      %1812 = vmatmul.mubr.bf16.gmra.mrb[0].mxu0 %v1339
      %v1813 = vpop.f32.mrb[0].mxu0
      %v1814 = vadd.f32 %v1432, %v1813
      %v1815 = vpop.f32.mrb[0].mxu0
      %v1816 = vadd.f32 %v1436, %v1815
      %v1817 = vpop.f32.mrb[0].mxu0
      %v1818 = vadd.f32 %v1432, %v1817
      %v1819 = vpop.f32.mrb[0].mxu0
      %v1820 = vadd.f32 %v1436, %v1819
      %1821 = vmatprep.mubr.bf16.mxu0 %v1344
      %1822 = vmatmul.mubr.bf16.gmra.mrb[0].mxu0 %v1343
      %v1823 = vpop.f32.mrb[0].mxu0
      %v1824 = vadd.f32 %v1432, %v1823
      %v1825 = vpop.f32.mrb[0].mxu0
      %v1826 = vadd.f32 %v1436, %v1825
      %v1827 = vpop.f32.mrb[0].mxu0
      %v1828 = vadd.f32 %v1432, %v1827
      %v1829 = vpop.f32.mrb[0].mxu0
      %v1830 = vadd.f32 %v1436, %v1829
      %1831 = vmatprep.mubr.bf16.mxu0 %v1348
      %1832 = vmatmul.mubr.bf16.gmra.mrb[0].mxu0 %v1347
      %v1833 = vpop.f32.mrb[0].mxu0
      %v1834 = vadd.f32 %v1432, %v1833
      %v1835 = vpop.f32.mrb[0].mxu0
      %v1836 = vadd.f32 %v1436, %v1835
      %v1837 = vpop.f32.mrb[0].mxu0
      %v1838 = vadd.f32 %v1432, %v1837
      %v1839 = vpop.f32.mrb[0].mxu0
      %v1840 = vadd.f32 %v1436, %v1839
      %1841 = vmatprep.mubr.bf16.mxu0 %v1352
      %1842 = vmatmul.mubr.bf16.gmra.mrb[0].mxu0 %v1351
      %v1843 = vpop.f32.mrb[0].mxu0
      %v1844 = vadd.f32 %v1432, %v1843
      %v1845 = vpop.f32.mrb[0].mxu0
      %v1846 = vadd.f32 %v1436, %v1845
      %v1847 = vpop.f32.mrb[0].mxu0
      %v1848 = vadd.f32 %v1432, %v1847
      %v1849 = vpop.f32.mrb[0].mxu0
      %v1850 = vadd.f32 %v1436, %v1849
      %1851 = vmatprep.mubr.bf16.mxu0 %v1356
      %1852 = vmatmul.mubr.bf16.gmra.mrb[0].mxu0 %v1355
      %v1853 = vpop.f32.mrb[0].mxu0
      %v1854 = vadd.f32 %v1432, %v1853
      %v1855 = vpop.f32.mrb[0].mxu0
      %v1856 = vadd.f32 %v1436, %v1855
      %v1857 = vpop.f32.mrb[0].mxu0
      %v1858 = vadd.f32 %v1432, %v1857
      %v1859 = vpop.f32.mrb[0].mxu0
      %v1860 = vadd.f32 %v1436, %v1859
      %1861 = vmatprep.mubr.bf16.mxu0 %v1360
      %1862 = vmatmul.mubr.bf16.gmra.mrb[0].mxu0 %v1359
      %v1863 = vpop.f32.mrb[0].mxu0
      %v1864 = vadd.f32 %v1432, %v1863
      %v1865 = vpop.f32.mrb[0].mxu0
      %v1866 = vadd.f32 %v1436, %v1865
      %v1867 = vpop.f32.mrb[0].mxu0
      %v1868 = vadd.f32 %v1432, %v1867
      %v1869 = vpop.f32.mrb[0].mxu0
      %v1870 = vadd.f32 %v1436, %v1869
      %1871 = vdwg.mxu0
      %1872 = vmatprep.subr.bf16.mxu0 %v1664
      %1873 = vmatpush1.bf16.msra.mxu0 %v1663
      %1874 = vmatprep.subr.bf16.mxu0 %v1666
      %1875 = vmatpush1.bf16.msra.mxu0 %v1665
      %1876 = vmatprep.subr.bf16.mxu0 %v1668
      %1877 = vmatpush1.bf16.msra.mxu0 %v1667
      %1878 = vmatprep.subr.bf16.mxu0 %v1670
      %1879 = vmatpush1.bf16.msra.mxu0 %v1669
      %1880 = vmatprep.subr.bf16.mxu0 %v1672
      %1881 = vmatpush1.bf16.msra.mxu0 %v1671
      %1882 = vmatprep.subr.bf16.mxu0 %v1674
      %1883 = vmatpush1.bf16.msra.mxu0 %v1673
      %1884 = vmatprep.subr.bf16.mxu0 %v1676
      %1885 = vmatpush1.bf16.msra.mxu0 %v1675
      %1886 = vmatprep.subr.bf16.mxu0 %v1678
      %1887 = vmatpush1.bf16.msra.mxu0 %v1677
      %1888 = vmatprep.subr.bf16.mxu0 %v1680
      %1889 = vmatpush1.bf16.msra.mxu0 %v1679
      %1890 = vmatprep.subr.bf16.mxu0 %v1682
      %1891 = vmatpush1.bf16.msra.mxu0 %v1681
      %1892 = vmatprep.subr.bf16.mxu0 %v1684
      %1893 = vmatpush1.bf16.msra.mxu0 %v1683
      %1894 = vmatprep.subr.bf16.mxu0 %v1686
      %1895 = vmatpush1.bf16.msra.mxu0 %v1685
      %1896 = vmatprep.subr.bf16.mxu0 %v1688
      %1897 = vmatpush1.bf16.msra.mxu0 %v1687
      %1898 = vmatprep.subr.bf16.mxu0 %v1690
      %1899 = vmatpush1.bf16.msra.mxu0 %v1689
      %1900 = vmatprep.subr.bf16.mxu0 %v1692
      %1901 = vmatpush1.bf16.msra.mxu0 %v1691
      %1902 = vmatprep.subr.bf16.mxu0 %v1694
      %1903 = vmatpush1.bf16.msra.mxu0 %v1693
      %1904 = vmatprep.mubr.bf16.mxu0 %v1334
      %1905 = vmatmul.mubr.bf16.gmra.mrb[0].mxu0 %v1333
      %v1906 = vpop.f32.mrb[0].mxu0
      %v1907 = vadd.f32 %v1794, %v1906
      %v1908 = vpop.f32.mrb[0].mxu0
      %v1909 = vadd.f32 %v1796, %v1908
      %v1910 = vpop.f32.mrb[0].mxu0
      %v1911 = vadd.f32 %v1798, %v1910
      %v1912 = vpop.f32.mrb[0].mxu0
      %v1913 = vadd.f32 %v1800, %v1912
      %1914 = vmatprep.mubr.bf16.mxu0 %v1338
      %1915 = vmatmul.mubr.bf16.gmra.mrb[0].mxu0 %v1337
      %v1916 = vpop.f32.mrb[0].mxu0
      %v1917 = vadd.f32 %v1804, %v1916
      %v1918 = vpop.f32.mrb[0].mxu0
      %v1919 = vadd.f32 %v1806, %v1918
      %v1920 = vpop.f32.mrb[0].mxu0
      %v1921 = vadd.f32 %v1808, %v1920
      %v1922 = vpop.f32.mrb[0].mxu0
      %v1923 = vadd.f32 %v1810, %v1922
      %1924 = vmatprep.mubr.bf16.mxu0 %v1342
      %1925 = vmatmul.mubr.bf16.gmra.mrb[0].mxu0 %v1341
      %v1926 = vpop.f32.mrb[0].mxu0
      %v1927 = vadd.f32 %v1814, %v1926
      %v1928 = vpop.f32.mrb[0].mxu0
      %v1929 = vadd.f32 %v1816, %v1928
      %v1930 = vpop.f32.mrb[0].mxu0
      %v1931 = vadd.f32 %v1818, %v1930
      %v1932 = vpop.f32.mrb[0].mxu0
      %v1933 = vadd.f32 %v1820, %v1932
      %1934 = vmatprep.mubr.bf16.mxu0 %v1346
      %1935 = vmatmul.mubr.bf16.gmra.mrb[0].mxu0 %v1345
      %v1936 = vpop.f32.mrb[0].mxu0
      %v1937 = vadd.f32 %v1824, %v1936
      %v1938 = vpop.f32.mrb[0].mxu0
      %v1939 = vadd.f32 %v1826, %v1938
      %v1940 = vpop.f32.mrb[0].mxu0
      %v1941 = vadd.f32 %v1828, %v1940
      %v1942 = vpop.f32.mrb[0].mxu0
      %v1943 = vadd.f32 %v1830, %v1942
      %1944 = vmatprep.mubr.bf16.mxu0 %v1350
      %1945 = vmatmul.mubr.bf16.gmra.mrb[0].mxu0 %v1349
      %v1946 = vpop.f32.mrb[0].mxu0
      %v1947 = vadd.f32 %v1834, %v1946
      %v1948 = vpop.f32.mrb[0].mxu0
      %v1949 = vadd.f32 %v1836, %v1948
      %v1950 = vpop.f32.mrb[0].mxu0
      %v1951 = vadd.f32 %v1838, %v1950
      %v1952 = vpop.f32.mrb[0].mxu0
      %v1953 = vadd.f32 %v1840, %v1952
      %1954 = vmatprep.mubr.bf16.mxu0 %v1354
      %1955 = vmatmul.mubr.bf16.gmra.mrb[0].mxu0 %v1353
      %v1956 = vpop.f32.mrb[0].mxu0
      %v1957 = vadd.f32 %v1844, %v1956
      %v1958 = vpop.f32.mrb[0].mxu0
      %v1959 = vadd.f32 %v1846, %v1958
      %v1960 = vpop.f32.mrb[0].mxu0
      %v1961 = vadd.f32 %v1848, %v1960
      %v1962 = vpop.f32.mrb[0].mxu0
      %v1963 = vadd.f32 %v1850, %v1962
      %1964 = vmatprep.mubr.bf16.mxu0 %v1358
      %1965 = vmatmul.mubr.bf16.gmra.mrb[0].mxu0 %v1357
      %v1966 = vpop.f32.mrb[0].mxu0
      %v1967 = vadd.f32 %v1854, %v1966
      %v1968 = vpop.f32.mrb[0].mxu0
      %v1969 = vadd.f32 %v1856, %v1968
      %v1970 = vpop.f32.mrb[0].mxu0
      %v1971 = vadd.f32 %v1858, %v1970
      %v1972 = vpop.f32.mrb[0].mxu0
      %v1973 = vadd.f32 %v1860, %v1972
      %1974 = vmatprep.mubr.bf16.mxu0 %v1362
      %1975 = vmatmul.mubr.bf16.gmra.mrb[0].mxu0 %v1361
      %v1976 = vpop.f32.mrb[0].mxu0
      %v1977 = vadd.f32 %v1864, %v1976
      %v1978 = vpop.f32.mrb[0].mxu0
      %v1979 = vadd.f32 %v1866, %v1978
      %v1980 = vpop.f32.mrb[0].mxu0
      %v1981 = vadd.f32 %v1868, %v1980
      %v1982 = vpop.f32.mrb[0].mxu0
      %v1983 = vadd.f32 %v1870, %v1982
      %1984 = vdwg.mxu0
      %vm1985 = vcmp.gt.f32.partialorder %v1907, 0.0
      %vm1986 = vcmp.gt.f32.partialorder %v1909, 0.0
      %vm1987 = vcmp.gt.f32.partialorder %v1911, 0.0
      %vm1988 = vcmp.gt.f32.partialorder %v1913, 0.0
      %vm1989 = vcmp.gt.f32.partialorder %v1917, 0.0
      %vm1990 = vcmp.gt.f32.partialorder %v1919, 0.0
      %vm1991 = vcmp.gt.f32.partialorder %v1921, 0.0
      %vm1992 = vcmp.gt.f32.partialorder %v1923, 0.0
      %vm1993 = vcmp.gt.f32.partialorder %v1927, 0.0
      %vm1994 = vcmp.gt.f32.partialorder %v1929, 0.0
      %vm1995 = vcmp.gt.f32.partialorder %v1931, 0.0
      %vm1996 = vcmp.gt.f32.partialorder %v1933, 0.0
      %vm1997 = vcmp.gt.f32.partialorder %v1937, 0.0
      %vm1998 = vcmp.gt.f32.partialorder %v1939, 0.0
      %vm1999 = vcmp.gt.f32.partialorder %v1941, 0.0
      %vm2000 = vcmp.gt.f32.partialorder %v1943, 0.0
      %vm2001 = vcmp.gt.f32.partialorder %v1947, 0.0
      %vm2002 = vcmp.gt.f32.partialorder %v1949, 0.0
      %vm2003 = vcmp.gt.f32.partialorder %v1951, 0.0
      %vm2004 = vcmp.gt.f32.partialorder %v1953, 0.0
      %vm2005 = vcmp.gt.f32.partialorder %v1957, 0.0
      %vm2006 = vcmp.gt.f32.partialorder %v1959, 0.0
      %vm2007 = vcmp.gt.f32.partialorder %v1961, 0.0
      %vm2008 = vcmp.gt.f32.partialorder %v1963, 0.0
      %vm2009 = vcmp.gt.f32.partialorder %v1967, 0.0
      %vm2010 = vcmp.gt.f32.partialorder %v1969, 0.0
      %vm2011 = vcmp.gt.f32.partialorder %v1971, 0.0
      %vm2012 = vcmp.gt.f32.partialorder %v1973, 0.0
      %vm2013 = vcmp.gt.f32.partialorder %v1977, 0.0
      %vm2014 = vcmp.gt.f32.partialorder %v1979, 0.0
      %vm2015 = vcmp.gt.f32.partialorder %v1981, 0.0
      %vm2016 = vcmp.gt.f32.partialorder %v1983, 0.0
      %v2017 = vmul.f32 %v1907, 0.2
      %v2018 = vmul.f32 %v1909, 0.2
      %v2019 = vmul.f32 %v1911, 0.2
      %v2020 = vmul.f32 %v1913, 0.2
      %v2021 = vmul.f32 %v1917, 0.2
      %v2022 = vmul.f32 %v1919, 0.2
      %v2023 = vmul.f32 %v1921, 0.2
      %v2024 = vmul.f32 %v1923, 0.2
      %v2025 = vmul.f32 %v1927, 0.2
      %v2026 = vmul.f32 %v1929, 0.2
      %v2027 = vmul.f32 %v1931, 0.2
      %v2028 = vmul.f32 %v1933, 0.2
      %v2029 = vmul.f32 %v1937, 0.2
      %v2030 = vmul.f32 %v1939, 0.2
      %v2031 = vmul.f32 %v1941, 0.2
      %v2032 = vmul.f32 %v1943, 0.2
      %v2033 = vmul.f32 %v1947, 0.2
      %v2034 = vmul.f32 %v1949, 0.2
      %v2035 = vmul.f32 %v1951, 0.2
      %v2036 = vmul.f32 %v1953, 0.2
      %v2037 = vmul.f32 %v1957, 0.2
      %v2038 = vmul.f32 %v1959, 0.2
      %v2039 = vmul.f32 %v1961, 0.2
      %v2040 = vmul.f32 %v1963, 0.2
      %v2041 = vmul.f32 %v1967, 0.2
      %v2042 = vmul.f32 %v1969, 0.2
      %v2043 = vmul.f32 %v1971, 0.2
      %v2044 = vmul.f32 %v1973, 0.2
      %v2045 = vmul.f32 %v1977, 0.2
      %v2046 = vmul.f32 %v1979, 0.2
      %v2047 = vmul.f32 %v1981, 0.2
      %v2048 = vmul.f32 %v1983, 0.2
      %v2049 = vsel %vm1985, %v1907, %v2017
      %v2050 = vsel %vm1986, %v1909, %v2018
      %v2051 = vsel %vm1987, %v1911, %v2019
      %v2052 = vsel %vm1988, %v1913, %v2020
      %v2053 = vsel %vm1989, %v1917, %v2021
      %v2054 = vsel %vm1990, %v1919, %v2022
      %v2055 = vsel %vm1991, %v1921, %v2023
      %v2056 = vsel %vm1992, %v1923, %v2024
      %v2057 = vsel %vm1993, %v1927, %v2025
      %v2058 = vsel %vm1994, %v1929, %v2026
      %v2059 = vsel %vm1995, %v1931, %v2027
      %v2060 = vsel %vm1996, %v1933, %v2028
      %v2061 = vsel %vm1997, %v1937, %v2029
      %v2062 = vsel %vm1998, %v1939, %v2030
      %v2063 = vsel %vm1999, %v1941, %v2031
      %v2064 = vsel %vm2000, %v1943, %v2032
      %v2065 = vsel %vm2001, %v1947, %v2033
      %v2066 = vsel %vm2002, %v1949, %v2034
      %v2067 = vsel %vm2003, %v1951, %v2035
      %v2068 = vsel %vm2004, %v1953, %v2036
      %v2069 = vsel %vm2005, %v1957, %v2037
      %v2070 = vsel %vm2006, %v1959, %v2038
      %v2071 = vsel %vm2007, %v1961, %v2039
      %v2072 = vsel %vm2008, %v1963, %v2040
      %v2073 = vsel %vm2009, %v1967, %v2041
      %v2074 = vsel %vm2010, %v1969, %v2042
      %v2075 = vsel %vm2011, %v1971, %v2043
      %v2076 = vsel %vm2012, %v1973, %v2044
      %v2077 = vsel %vm2013, %v1977, %v2045
      %v2078 = vsel %vm2014, %v1979, %v2046
      %v2079 = vsel %vm2015, %v1981, %v2047
      %v2080 = vsel %vm2016, %v1983, %v2048
      %v2081 = vld [vmem:[%s5] sm:$0x3]
      %v2083 = vlaneseq
      %v2084 = vshrl.u32 %v2083, 7
      %v2085 = vsub.s32 0, %v2084
      %v2086 = vrot.slane %v2081, %v2085
      %v2087 = vlaneseq
      %v2088 = vshrl.u32 %v2087, 7
      %v2089 = vsub.s32 1, %v2088
      %v2090 = vrot.slane %v2081, %v2089
      %v2093 = vmul.f32 %v2049, %v2086
      %v2094 = vmul.f32 %v2050, %v2090
      %v2095 = vmul.f32 %v2051, %v2086
      %v2096 = vmul.f32 %v2052, %v2090
      %v2097 = vmul.f32 %v2053, %v2086
      %v2098 = vmul.f32 %v2054, %v2090
      %v2099 = vmul.f32 %v2055, %v2086
      %v2100 = vmul.f32 %v2056, %v2090
      %v2101 = vmul.f32 %v2057, %v2086
      %v2102 = vmul.f32 %v2058, %v2090
      %v2103 = vmul.f32 %v2059, %v2086
      %v2104 = vmul.f32 %v2060, %v2090
      %v2105 = vmul.f32 %v2061, %v2086
      %v2106 = vmul.f32 %v2062, %v2090
      %v2107 = vmul.f32 %v2063, %v2086
      %v2108 = vmul.f32 %v2064, %v2090
      %v2109 = vmul.f32 %v2065, %v2086
      %v2110 = vmul.f32 %v2066, %v2090
      %v2111 = vmul.f32 %v2067, %v2086
      %v2112 = vmul.f32 %v2068, %v2090
      %v2113 = vmul.f32 %v2069, %v2086
      %v2114 = vmul.f32 %v2070, %v2090
      %v2115 = vmul.f32 %v2071, %v2086
      %v2116 = vmul.f32 %v2072, %v2090
      %v2117 = vmul.f32 %v2073, %v2086
      %v2118 = vmul.f32 %v2074, %v2090
      %v2119 = vmul.f32 %v2075, %v2086
      %v2120 = vmul.f32 %v2076, %v2090
      %v2121 = vmul.f32 %v2077, %v2086
      %v2122 = vmul.f32 %v2078, %v2090
      %v2123 = vmul.f32 %v2079, %v2086
      %v2124 = vmul.f32 %v2080, %v2090
      %v2125 = vadd.f32 %v2093, %v2094
      %2126 = vadd.xlane.f32.xlu0 %v2125
      %v2127 = vpop.xlane.xlu0 %2126
      %v2128 = vadd.f32 %v2095, %v2096
      %2129 = vadd.xlane.f32.xlu0 %v2128
      %v2130 = vpop.xlane.xlu0 %2129
      %v2131 = vadd.f32 %v2097, %v2098
      %2132 = vadd.xlane.f32.xlu0 %v2131
      %v2133 = vpop.xlane.xlu0 %2132
      %v2134 = vadd.f32 %v2099, %v2100
      %2135 = vadd.xlane.f32.xlu0 %v2134
      %v2136 = vpop.xlane.xlu0 %2135
      %v2137 = vadd.f32 %v2101, %v2102
      %2138 = vadd.xlane.f32.xlu0 %v2137
      %v2139 = vpop.xlane.xlu0 %2138
      %v2140 = vadd.f32 %v2103, %v2104
      %2141 = vadd.xlane.f32.xlu0 %v2140
      %v2142 = vpop.xlane.xlu0 %2141
      %v2143 = vadd.f32 %v2105, %v2106
      %2144 = vadd.xlane.f32.xlu0 %v2143
      %v2145 = vpop.xlane.xlu0 %2144
      %v2146 = vadd.f32 %v2107, %v2108
      %2147 = vadd.xlane.f32.xlu0 %v2146
      %v2148 = vpop.xlane.xlu0 %2147
      %v2149 = vadd.f32 %v2109, %v2110
      %2150 = vadd.xlane.f32.xlu0 %v2149
      %v2151 = vpop.xlane.xlu0 %2150
      %v2152 = vadd.f32 %v2111, %v2112
      %2153 = vadd.xlane.f32.xlu0 %v2152
      %v2154 = vpop.xlane.xlu0 %2153
      %v2155 = vadd.f32 %v2113, %v2114
      %2156 = vadd.xlane.f32.xlu0 %v2155
      %v2157 = vpop.xlane.xlu0 %2156
      %v2158 = vadd.f32 %v2115, %v2116
      %2159 = vadd.xlane.f32.xlu0 %v2158
      %v2160 = vpop.xlane.xlu0 %2159
      %v2161 = vadd.f32 %v2117, %v2118
      %2162 = vadd.xlane.f32.xlu0 %v2161
      %v2163 = vpop.xlane.xlu0 %2162
      %v2164 = vadd.f32 %v2119, %v2120
      %2165 = vadd.xlane.f32.xlu0 %v2164
      %v2166 = vpop.xlane.xlu0 %2165
      %v2167 = vadd.f32 %v2121, %v2122
      %2168 = vadd.xlane.f32.xlu0 %v2167
      %v2169 = vpop.xlane.xlu0 %2168
      %v2170 = vadd.f32 %v2123, %v2124
      %2171 = vadd.xlane.f32.xlu0 %v2170
      %v2172 = vpop.xlane.xlu0 %2171
      %s2173 = sld [smem:[#allocation3]]
      %v2174 = vstv %s2173
      %v2175 = vadd.f32 %v2127, %v2174
      %v2176 = vadd.f32 %v2130, %v2174
      %v2177 = vadd.f32 %v2133, %v2174
      %v2178 = vadd.f32 %v2136, %v2174
      %v2179 = vadd.f32 %v2139, %v2174
      %v2180 = vadd.f32 %v2142, %v2174
      %v2181 = vadd.f32 %v2145, %v2174
      %v2182 = vadd.f32 %v2148, %v2174
      %v2183 = vadd.f32 %v2151, %v2174
      %v2184 = vadd.f32 %v2154, %v2174
      %v2185 = vadd.f32 %v2157, %v2174
      %v2186 = vadd.f32 %v2160, %v2174
      %v2187 = vadd.f32 %v2163, %v2174
      %v2188 = vadd.f32 %v2166, %v2174
      %v2189 = vadd.f32 %v2169, %v2174
      %v2190 = vadd.f32 %v2172, %v2174
      %v2191 = vxor.u32 %v2175, 2147483648
      %v2192 = vxor.u32 %v2176, 2147483648
      %v2193 = vxor.u32 %v2177, 2147483648
      %v2194 = vxor.u32 %v2178, 2147483648
      %v2195 = vxor.u32 %v2179, 2147483648
      %v2196 = vxor.u32 %v2180, 2147483648
      %v2197 = vxor.u32 %v2181, 2147483648
      %v2198 = vxor.u32 %v2182, 2147483648
      %v2199 = vxor.u32 %v2183, 2147483648
      %v2200 = vxor.u32 %v2184, 2147483648
      %v2201 = vxor.u32 %v2185, 2147483648
      %v2202 = vxor.u32 %v2186, 2147483648
      %v2203 = vxor.u32 %v2187, 2147483648
      %v2204 = vxor.u32 %v2188, 2147483648
      %v2205 = vxor.u32 %v2189, 2147483648
      %v2206 = vxor.u32 %v2190, 2147483648
      %v2207 = vmul.f32 %v2191, 1.442695
      %v2208 = vpow.pop %v2207
      %v2209 = vmul.f32 %v2192, 1.442695
      %v2210 = vpow.pop %v2209
      %v2211 = vmul.f32 %v2193, 1.442695
      %v2212 = vpow.pop %v2211
      %v2213 = vmul.f32 %v2194, 1.442695
      %v2214 = vpow.pop %v2213
      %v2215 = vmul.f32 %v2195, 1.442695
      %v2216 = vpow.pop %v2215
      %v2217 = vmul.f32 %v2196, 1.442695
      %v2218 = vpow.pop %v2217
      %v2219 = vmul.f32 %v2197, 1.442695
      %v2220 = vpow.pop %v2219
      %v2221 = vmul.f32 %v2198, 1.442695
      %v2222 = vpow.pop %v2221
      %v2223 = vmul.f32 %v2199, 1.442695
      %v2224 = vpow.pop %v2223
      %v2225 = vmul.f32 %v2200, 1.442695
      %v2226 = vpow.pop %v2225
      %v2227 = vmul.f32 %v2201, 1.442695
      %v2228 = vpow.pop %v2227
      %v2229 = vmul.f32 %v2202, 1.442695
      %v2230 = vpow.pop %v2229
      %v2231 = vmul.f32 %v2203, 1.442695
      %v2232 = vpow.pop %v2231
      %v2233 = vmul.f32 %v2204, 1.442695
      %v2234 = vpow.pop %v2233
      %v2235 = vmul.f32 %v2205, 1.442695
      %v2236 = vpow.pop %v2235
      %v2237 = vmul.f32 %v2206, 1.442695
      %v2238 = vpow.pop %v2237
      %v2239 = vadd.f32 %v2208, 1.0
      %v2240 = vadd.f32 %v2210, 1.0
      %v2241 = vadd.f32 %v2212, 1.0
      %v2242 = vadd.f32 %v2214, 1.0
      %v2243 = vadd.f32 %v2216, 1.0
      %v2244 = vadd.f32 %v2218, 1.0
      %v2245 = vadd.f32 %v2220, 1.0
      %v2246 = vadd.f32 %v2222, 1.0
      %v2247 = vadd.f32 %v2224, 1.0
      %v2248 = vadd.f32 %v2226, 1.0
      %v2249 = vadd.f32 %v2228, 1.0
      %v2250 = vadd.f32 %v2230, 1.0
      %v2251 = vadd.f32 %v2232, 1.0
      %v2252 = vadd.f32 %v2234, 1.0
      %v2253 = vadd.f32 %v2236, 1.0
      %v2254 = vadd.f32 %v2238, 1.0
      %v2255 = vrcp.pop %v2239
      %v2256 = vmul.f32 1.0, %v2255
      %v2257 = vrcp.pop %v2240
      %v2258 = vmul.f32 1.0, %v2257
      %v2259 = vrcp.pop %v2241
      %v2260 = vmul.f32 1.0, %v2259
      %v2261 = vrcp.pop %v2242
      %v2262 = vmul.f32 1.0, %v2261
      %v2263 = vrcp.pop %v2243
      %v2264 = vmul.f32 1.0, %v2263
      %v2265 = vrcp.pop %v2244
      %v2266 = vmul.f32 1.0, %v2265
      %v2267 = vrcp.pop %v2245
      %v2268 = vmul.f32 1.0, %v2267
      %v2269 = vrcp.pop %v2246
      %v2270 = vmul.f32 1.0, %v2269
      %v2271 = vrcp.pop %v2247
      %v2272 = vmul.f32 1.0, %v2271
      %v2273 = vrcp.pop %v2248
      %v2274 = vmul.f32 1.0, %v2273
      %v2275 = vrcp.pop %v2249
      %v2276 = vmul.f32 1.0, %v2275
      %v2277 = vrcp.pop %v2250
      %v2278 = vmul.f32 1.0, %v2277
      %v2279 = vrcp.pop %v2251
      %v2280 = vmul.f32 1.0, %v2279
      %v2281 = vrcp.pop %v2252
      %v2282 = vmul.f32 1.0, %v2281
      %v2283 = vrcp.pop %v2253
      %v2284 = vmul.f32 1.0, %v2283
      %v2285 = vrcp.pop %v2254
      %v2286 = vmul.f32 1.0, %v2285
      %vm2287 = vcmask 7168
      %2288 = vst.msk [vmem:[%s7] sm:$0xff] %vm2287, %v2256
      %2289 = vst.msk [vmem:[%s7 + $0x8] sm:$0xff] %vm2287, %v2258
      %2290 = vst.msk [vmem:[%s7 + $0x10] sm:$0xff] %vm2287, %v2260
      %2291 = vst.msk [vmem:[%s7 + $0x18] sm:$0xff] %vm2287, %v2262
      %2292 = vst.msk [vmem:[%s7 + $0x20] sm:$0xff] %vm2287, %v2264
      %2293 = vst.msk [vmem:[%s7 + $0x28] sm:$0xff] %vm2287, %v2266
      %2294 = vst.msk [vmem:[%s7 + $0x30] sm:$0xff] %vm2287, %v2268
      %2295 = vst.msk [vmem:[%s7 + $0x38] sm:$0xff] %vm2287, %v2270
      %2296 = vst.msk [vmem:[%s7 + $0x40] sm:$0xff] %vm2287, %v2272
      %2297 = vst.msk [vmem:[%s7 + $0x48] sm:$0xff] %vm2287, %v2274
      %2298 = vst.msk [vmem:[%s7 + $0x50] sm:$0xff] %vm2287, %v2276
      %2299 = vst.msk [vmem:[%s7 + $0x58] sm:$0xff] %vm2287, %v2278
      %2300 = vst.msk [vmem:[%s7 + $0x60] sm:$0xff] %vm2287, %v2280
      %2301 = vst.msk [vmem:[%s7 + $0x68] sm:$0xff] %vm2287, %v2282
      %2302 = vst.msk [vmem:[%s7 + $0x70] sm:$0xff] %vm2287, %v2284
      %2303 = vst.msk [vmem:[%s7 + $0x78] sm:$0xff] %vm2287, %v2286
    $region49: #{tpu_custom_call.1} parent=1 // pred_fallthru
      _
    // Predicated region
    $region50: #{tpu_custom_call.1} parent=1 // pred_check
      _
    $region51: #{tpu_custom_call.1} parent=1 // pred_check_branch
      %2305 = sbr.rel (0) target = $region53
    $region52: #{tpu_custom_call.1} parent=1 // pred_region
      _
    $region53: #{tpu_custom_call.1} parent=1 // pred_fallthru
      _
    // Predicated region
    $region54: #{tpu_custom_call.1} parent=1 // pred_check
      _
    $region55: #{tpu_custom_call.1} parent=1 // pred_check_branch
      %2307 = sbr.rel (0) target = $region57
    $region56: #{tpu_custom_call.1} parent=1 // pred_region
      _
    $region57: #{tpu_custom_call.1} parent=1 // pred_fallthru
      _
    %2308 = vsyncpa [#allocation5], 1
    %2309 = vsyncpa [#allocation7], 1

</llo_original>
